<compile_context>
chip_gen: v7x
topology: tpu7x:2x2x1
jax: 0.10.0
libtpu: 0.0.40
codegen_flags: <defaults>
</compile_context>

<pallas_src>
import functools

import jax
import jax.numpy as jnp
from jax.experimental import pallas as pl
from jax.experimental.pallas import tpu as pltpu


def _divisor_tile(n, prefs, cap=None):
    """Largest preferred tile that divides n (and is <= cap, if given), else None."""
    for t in prefs:
        if (cap is None or t <= cap) and n % t == 0:
            return t
    return None


# ---------------------------------------------------------------------------
# Pairwise -||xi - xj||^2 (feeds knn top-k)
# ---------------------------------------------------------------------------

def _pairwise_kernel(xr_ref, xf_ref, cn_ref, o_ref):
    xr = xr_ref[...]                                 # (TM, C) row tile (bf16 or f32)
    xf = xf_ref[...]                                 # (N,  C) all points (resident)
    # gram tile xr @ xf^T with f32 accumulation (bf16 operands hit the MXU fast path).
    g = jax.lax.dot_general(xr, xf, (((1,), (1,)), ((), ())),
                            preferred_element_type=jnp.float32)          # (TM, N)
    xr32 = xr.astype(jnp.float32)
    rn = jnp.sum(xr32 * xr32, axis=-1, keepdims=True)                    # (TM, 1)
    # column norms are precomputed once in the wrapper (cn_ref) — not per row tile.
    o_ref[...] = 2.0 * g - rn - cn_ref[...]


def pallas_pairwise(xt):
    """xt: (B, N, C) -> (B, N, N) negative squared pairwise distances (f32)."""
    B, N, C = xt.shape
    x32 = xt.astype(jnp.float32)
    cn = jnp.sum(x32 * x32, axis=-1).reshape(B, 1, N)     # tiny, once per layer
    cap = max(8, (16 * 1024 * 1024) // max(N * 4 * 2, 1))  # out-tile (f32, 2x buffered)
    tm = _divisor_tile(N, (512, 256, 128, 64, 32, 16, 8), cap) or N
    return pl.pallas_call(
        _pairwise_kernel,
        out_shape=jax.ShapeDtypeStruct((B, N, N), jnp.float32),
        grid=(B, N // tm),
        in_specs=[
            pl.BlockSpec((None, tm, C), lambda b, i: (b, i, 0)),
            pl.BlockSpec((None, N, C), lambda b, i: (b, 0, 0)),
            pl.BlockSpec((None, 1, N), lambda b, i: (b, 0, 0)),
        ],
        out_specs=pl.BlockSpec((None, tm, N), lambda b, i: (b, i, 0)),
        compiler_params=pltpu.CompilerParams(
            dimension_semantics=("parallel", "parallel"),
            vmem_limit_bytes=48 * 1024 * 1024),
    )(xt, xt, cn)


# ---------------------------------------------------------------------------
# Edge conv: LeakyReLU(BN(Conv1x1)) followed by max over the k neighbors
#   z_j = (nbr_j - ctr) @ Wa + ctr @ Wb   (Wa/Wb = scale-folded halves of W)
#       = nbr_j @ Wa + ctr @ (Wb - Wa)
#   max_j z_j = max_j(nbr_j @ Wa) + ctr @ (Wb - Wa)     (second term constant over k)
#   bias + LeakyReLU applied after the max (bias constant over k, LeakyReLU monotone).
# ---------------------------------------------------------------------------

def _edge_conv_kernel(nbr_ref, ctr_ref, wa_ref, wd_ref, b_ref, o_ref, *, k, tm):
    c = nbr_ref.shape[-1]
    flat = nbr_ref[...].reshape(k * tm, c)           # collapses leading dims only (free)
    y = jnp.dot(flat, wa_ref[...], preferred_element_type=jnp.float32)   # ONE MXU matmul
    acc = y[0:tm]
    for j in range(1, k):                            # max over contiguous neighbor slabs
        acc = jnp.maximum(acc, y[j * tm:(j + 1) * tm])
    acc = acc + jnp.dot(ctr_ref[...], wd_ref[...], preferred_element_type=jnp.float32)
    acc = acc + b_ref[...]                           # BN bias after the max (exact)
    acc = jnp.where(acc > 0, acc, 0.2 * acc)         # LeakyReLU(0.2), monotone -> exact
    o_ref[...] = acc.astype(o_ref.dtype)


def pallas_edge_conv(nbr, ctr, wa, wd, bias):
    """nbr: (k, R, C), ctr: (R, C) -> (R, Cout) bf16."""
    k, R, C = nbr.shape
    Cout = wa.shape[1]
    # per-row VMEM footprint: nbr (bf16, 2x buf) + ctr + y (f32) + acc + out (bf16, 2x buf)
    per_row = k * C * 4 + C * 4 + k * Cout * 4 + Cout * 4 + Cout * 4
    cap = max(8, (20 * 1024 * 1024) // max(per_row, 1))
    tm = _divisor_tile(R, (1024, 512, 256, 128, 64, 32, 16, 8), cap)
    nbr = nbr.astype(jnp.bfloat16)                   # no-op when activations already bf16
    ctr = ctr.astype(jnp.bfloat16)
    if tm is None:                                   # R has no nice divisor: pad rows
        tm = min(512, max(8, (cap // 8) * 8))
        Rp = ((R + tm - 1) // tm) * tm
        nbr = jnp.pad(nbr, ((0, 0), (0, Rp - R), (0, 0)))
        ctr = jnp.pad(ctr, ((0, Rp - R), (0, 0)))
    else:
        Rp = R
    kernel = functools.partial(_edge_conv_kernel, k=k, tm=tm)
    out = pl.pallas_call(
        kernel,
        out_shape=jax.ShapeDtypeStruct((Rp, Cout), jnp.bfloat16),
        grid=(Rp // tm,),
        in_specs=[
            pl.BlockSpec((k, tm, C), lambda i: (0, i, 0)),
            pl.BlockSpec((tm, C), lambda i: (i, 0)),
            pl.BlockSpec((C, Cout), lambda i: (0, 0)),
            pl.BlockSpec((C, Cout), lambda i: (0, 0)),
            pl.BlockSpec((1, Cout), lambda i: (0, 0)),
        ],
        out_specs=pl.BlockSpec((tm, Cout), lambda i: (i, 0)),
        compiler_params=pltpu.CompilerParams(
            dimension_semantics=("parallel",),
            vmem_limit_bytes=48 * 1024 * 1024),
    )(nbr, ctr, wa, wd, bias)
    return out if Rp == R else out[:R]


# ---------------------------------------------------------------------------
# Fused head: conv5 + BN + LeakyReLU + max/avg pool + inv_head, N tiled ("arbitrary")
# ---------------------------------------------------------------------------

def _head_kernel(x_ref, w5_ref, b5_ref, w1a_ref, w1b_ref, b1_ref, s6_ref, t6_ref,
                 w2_ref, b2_ref, feat_ref, inv_ref, m_sc, s_sc, *, emb, n_total):
    j = pl.program_id(1)

    @pl.when(j == 0)
    def _():
        m_sc[...] = jnp.full_like(m_sc, -jnp.inf)
        s_sc[...] = jnp.zeros_like(s_sc)

    # conv5 (1x1) with BN scale folded into w5; bias + LeakyReLU BEFORE pooling
    # (mean does not commute with LeakyReLU, so no post-pool trick here).
    y = jnp.dot(x_ref[...], w5_ref[...], preferred_element_type=jnp.float32) + b5_ref[...]
    y = jnp.where(y > 0, y, 0.2 * y)                         # (tn, emb) f32
    m_sc[...] = jnp.maximum(m_sc[...], jnp.max(y, axis=0, keepdims=True))
    s_sc[...] = s_sc[...] + jnp.sum(y, axis=0, keepdims=True)

    @pl.when(j == pl.num_programs(1) - 1)
    def _():
        mx = m_sc[...]                                       # adaptive max pool (1, emb)
        mn = s_sc[...] * (1.0 / float(n_total))              # adaptive avg pool (1, emb)
        feat_ref[:, 0:emb] = mx                              # lane-sliced stores
        feat_ref[:, emb:2 * emb] = mn
        # inv_head: Linear(2emb->emb) + BatchNorm1d(eval) + ReLU + Linear(emb->512)
        h = (jnp.dot(mx, w1a_ref[...], preferred_element_type=jnp.float32)
             + jnp.dot(mn, w1b_ref[...], preferred_element_type=jnp.float32)
             + b1_ref[...])
        h = jnp.maximum(h * s6_ref[...] + t6_ref[...], 0.0)
        inv_ref[...] = jnp.dot(h, w2_ref[...], preferred_element_type=jnp.float32) + b2_ref[...]


def pallas_head(cat, prep, emb):
    """cat: (B, N, 512) -> (feat (B, 2*emb), inv_feat (B, 512)) in one fused kernel."""
    B, N, Cin = cat.shape
    xb = cat.astype(jnp.bfloat16)                            # no-op when already bf16
    tn = _divisor_tile(N, (4096, 2048, 1024, 512, 256, 128, 64, 32, 16, 8)) or N
    # TODO(synk): with B == 1 on v7x only one TensorCore is used here (the N axis is a
    # reduction); the edge convs dominate, so B stays the sole parallel axis.
    kernel = functools.partial(_head_kernel, emb=emb, n_total=N)
    feat, inv = pl.pallas_call(
        kernel,
        out_shape=(jax.ShapeDtypeStruct((B, 1, 2 * emb), jnp.float32),
                   jax.ShapeDtypeStruct((B, 1, 512), jnp.float32)),
        grid=(B, N // tn),
        in_specs=[
            pl.BlockSpec((None, tn, Cin), lambda b, j: (b, j, 0)),
            pl.BlockSpec((Cin, emb), lambda b, j: (0, 0)),
            pl.BlockSpec((1, emb), lambda b, j: (0, 0)),
            pl.BlockSpec((emb, emb), lambda b, j: (0, 0)),
            pl.BlockSpec((emb, emb), lambda b, j: (0, 0)),
            pl.BlockSpec((1, emb), lambda b, j: (0, 0)),
            pl.BlockSpec((1, emb), lambda b, j: (0, 0)),
            pl.BlockSpec((1, emb), lambda b, j: (0, 0)),
            pl.BlockSpec((emb, 512), lambda b, j: (0, 0)),
            pl.BlockSpec((1, 512), lambda b, j: (0, 0)),
        ],
        out_specs=(pl.BlockSpec((None, 1, 2 * emb), lambda b, j: (b, 0, 0)),
                   pl.BlockSpec((None, 1, 512), lambda b, j: (b, 0, 0))),
        scratch_shapes=[pltpu.VMEM((1, emb), jnp.float32),
                        pltpu.VMEM((1, emb), jnp.float32)],
        compiler_params=pltpu.CompilerParams(
            dimension_semantics=("parallel", "arbitrary")),
    )(xb, prep['w5'], prep['b5'], prep['w1a'], prep['w1b'], prep['lb1'],
      prep['ls'], prep['lbt'], prep['lw2'], prep['lb2'])
    return feat.reshape(B, 2 * emb), inv.reshape(B, 512)


# ---------------------------------------------------------------------------
# Glue (knn top-k + data-dependent neighbor gather) — plain JAX
# ---------------------------------------------------------------------------

def knn_idx(xt, k):
    # TODO(synk): top-k neighbor selection has no clean Pallas equivalent; the
    # pairwise-distance matmul runs in Pallas, the selection uses jax.lax.top_k.
    d = pallas_pairwise(xt)                          # (B, N, N), larger = closer
    _, idx = jax.lax.top_k(d, k)
    return idx                                       # (B, N, k)


def get_graph_feature_kmajor(xt, k):
    """xt: (B, N, C) -> (nbr (k, B*N, C), ctr (B*N, C)) in the activation dtype.

    Neighbor-major layout: slab j holds the j-th nearest neighbor of every point so the
    edge-conv kernel reduces over k with contiguous (8,128)-aligned slabs.  No concat and
    no ctr broadcast here — the Wa/Wb split in the kernel handles [nbr-ctr, ctr] exactly."""
    B, N, C = xt.shape
    idx = knn_idx(xt, k)                                               # (B, N, k)
    flat = xt.reshape(B * N, C)
    fidx = idx + (jnp.arange(B, dtype=idx.dtype) * N)[:, None, None]   # global row ids
    fidx = jnp.transpose(fidx, (2, 0, 1)).reshape(k, B * N)            # tiny int transpose
    nbr = flat[fidx]                                                   # (k, B*N, C)
    return nbr, flat


# ---------------------------------------------------------------------------
# Parameters (deterministic synthetic init, eval-mode BN folded) and forward
# ---------------------------------------------------------------------------

def init_params(key, emb_dims=64):
    keys = jax.random.split(key, 16)

    def w(kk, shape, scale=0.1):
        return scale * jax.random.normal(kk, shape, jnp.float32)

    def bn(kk, c):
        k1, k2, k3, k4 = jax.random.split(kk, 4)
        gamma = 1.0 + 0.1 * jax.random.normal(k1, (c,), jnp.float32)
        beta = 0.1 * jax.random.normal(k2, (c,), jnp.float32)
        mean = 0.1 * jax.random.normal(k3, (c,), jnp.float32)
        var = 1.0 + 0.1 * jax.random.uniform(k4, (c,), jnp.float32)
        scale = gamma / jnp.sqrt(var + 1e-5)
        bias = beta - mean * scale
        return scale.reshape(1, c), bias.reshape(1, c)

    p = {}
    p['w1'] = w(keys[0], (6, 64));         p['s1'], p['b1'] = bn(keys[1], 64)
    p['w2'] = w(keys[2], (128, 64));       p['s2'], p['b2'] = bn(keys[3], 64)
    p['w3'] = w(keys[4], (128, 128));      p['s3'], p['b3'] = bn(keys[5], 128)
    p['w4'] = w(keys[6], (256, 256));      p['s4'], p['b4'] = bn(keys[7], 256)
    p['w5'] = w(keys[8], (512, emb_dims)); p['s5'], p['b5'] = bn(keys[9], emb_dims)
    # inv_head: Linear(2*emb, emb) -> BN -> ReLU -> Linear(emb, 512)
    p['lw1'] = w(keys[10], (2 * emb_dims, emb_dims))
    p['lb1'] = w(keys[11], (1, emb_dims))
    p['ls'], p['lbt'] = bn(keys[12], emb_dims)
    p['lw2'] = w(keys[13], (emb_dims, 512))
    p['lb2'] = w(keys[14], (1, 512))
    return p


def prepare_params(p, emb_dims=64):
    """One-time preprocessing (BN folds, Wa/Wd split, bf16 casts) hoisted out of forward."""
    prep = {'edge': []}
    for wn, sn, bn_ in (('w1', 's1', 'b1'), ('w2', 's2', 'b2'),
                        ('w3', 's3', 'b3'), ('w4', 's4', 'b4')):
        ws = p[wn] * p[sn]                                   # fold BN scale (f32)
        cin = ws.shape[0] // 2
        wa = ws[:cin]                                        # multiplies (nbr - ctr)
        wd = ws[cin:] - ws[:cin]                             # ctr term: Wb - Wa
        prep['edge'].append((wa.astype(jnp.bfloat16), wd.astype(jnp.bfloat16), p[bn_]))
    prep['w5'] = (p['w5'] * p['s5']).astype(jnp.bfloat16)
    prep['b5'] = p['b5']
    prep['w1a'] = p['lw1'][:emb_dims]                        # multiplies max-pool half
    prep['w1b'] = p['lw1'][emb_dims:]                        # multiplies avg-pool half
    prep['lb1'] = p['lb1']
    prep['ls'] = p['ls']
    prep['lbt'] = p['lbt']
    prep['lw2'] = p['lw2']
    prep['lb2'] = p['lb2']
    return prep


def dgcnn_forward(x, prep, k=4, emb_dims=64):
    """x: (B, 3, N) point cloud (PyTorch NCW layout).  Returns (x, inv_feat, feat)."""
    B, _, N = x.shape
    xt = jnp.transpose(x, (0, 2, 1))                                   # (B, N, 3) f32

    act = xt
    feats = []
    for (wa, wd, bias) in prep['edge']:
        nbr, ctr = get_graph_feature_kmajor(act, k)                    # bf16 after layer 1
        xi = pallas_edge_conv(nbr, ctr, wa, wd, bias)                  # (B*N, Cout) bf16
        feats.append(xi)
        act = xi.reshape(B, N, -1)

    # TODO(synk): writing each layer's output into a lane slice of a preallocated
    # (B*N, 512) buffer via input_output_aliases needs 128-divisible column blocks;
    # conv1/conv2 are 64-wide, so the concat stays in XLA (bf16, so it is cheap).
    cat = jnp.concatenate(feats, axis=-1).reshape(B, N, 512)
    feat, inv_feat = pallas_head(cat, prep, emb_dims)                  # (B,2emb),(B,512)
    # cls == -1: classifier head inactive, so the first output equals feat.
    return feat, inv_feat, feat


if __name__ == "__main__":
    key = jax.random.PRNGKey(0)
    kp, kx = jax.random.split(key)

    EMB_DIMS = 64
    K = 4
    B, C, N = 2, 3, 16

    params = init_params(kp, EMB_DIMS)
    prep = prepare_params(params, EMB_DIMS)
    x = jax.random.normal(kx, (B, C, N), jnp.float32)

    fwd = jax.jit(lambda xx: dgcnn_forward(xx, prep, k=K, emb_dims=EMB_DIMS))
    out, inv_feat, feat = fwd(x)
    jax.block_until_ready((out, inv_feat, feat))

    assert out.shape == (B, 2 * EMB_DIMS)
    assert inv_feat.shape == (B, 512)
    assert feat.shape == (B, 2 * EMB_DIMS)
    assert bool(jnp.all(jnp.isfinite(out))) and bool(jnp.all(jnp.isfinite(inv_feat)))

    print("KERNEL_OK")
</pallas_src>

<mosaic_0001>
module attributes {stable_mosaic.version = 11 : i64} {
  func.func @_pairwise_kernel(%arg0: i32, %arg1: i32, %arg2: memref<1x16x3xf32, #tpu.memory_space<vmem>>, %arg3: memref<1x16x3xf32, #tpu.memory_space<vmem>>, %arg4: memref<1x1x16xf32, #tpu.memory_space<vmem>>, %arg5: memref<1x16x16xf32, #tpu.memory_space<vmem>>) attributes {dimension_semantics = [#tpu.dimension_semantics<parallel>, #tpu.dimension_semantics<parallel>], iteration_bounds = array<i64: 2, 1>, scalar_prefetch = 0 : i64, scratch_operands = 0 : i64, tpu.core_type = #tpu.core_type<tc>, window_params = [{transform_indices = @transform_0, window_bounds = array<i64: 1, 16, 3>}, {transform_indices = @transform_1, window_bounds = array<i64: 1, 16, 3>}, {transform_indices = @transform_2, window_bounds = array<i64: 1, 1, 16>}, {transform_indices = @transform_3, window_bounds = array<i64: 1, 16, 16>}]} {
    %c0 = arith.constant 0 : index
    %c0_0 = arith.constant 0 : index
    %c0_1 = arith.constant 0 : index
    %0 = vector.load %arg2[%c0, %c0_0, %c0_1] : memref<1x16x3xf32, #tpu.memory_space<vmem>>, vector<1x16x3xf32>
    %1 = vector.shape_cast %0 : vector<1x16x3xf32> to vector<16x3xf32>
    %c0_2 = arith.constant 0 : index
    %c0_3 = arith.constant 0 : index
    %c0_4 = arith.constant 0 : index
    %2 = vector.load %arg3[%c0_2, %c0_3, %c0_4] : memref<1x16x3xf32, #tpu.memory_space<vmem>>, vector<1x16x3xf32>
    %3 = vector.shape_cast %2 : vector<1x16x3xf32> to vector<16x3xf32>
    %cst = arith.constant dense<0.000000e+00> : vector<16x16xf32>
    %4 = tpu.matmul %1, %3, %cst {dimension_numbers = #tpu.dot_dimension_numbers<[1], [1], [0], [0], [0, 0, 1, 0], [], []>} : vector<16x3xf32>, vector<16x3xf32>, vector<16x16xf32> -> vector<16x16xf32>
    %5 = arith.mulf %1, %1 : vector<16x3xf32>
    %cst_5 = arith.constant dense<0.000000e+00> : vector<16xf32>
    %6 = vector.multi_reduction <add>, %5, %cst_5 [1] : vector<16x3xf32> to vector<16xf32>
    %7 = vector.shape_cast %6 : vector<16xf32> to vector<16x1xf32>
    %cst_6 = arith.constant 2.000000e+00 : f32
    %8 = vector.broadcast %cst_6 : f32 to vector<16x16xf32>
    %9 = arith.mulf %8, %4 : vector<16x16xf32>
    %10 = vector.broadcast %7 : vector<16x1xf32> to vector<16x16xf32>
    %11 = arith.subf %9, %10 : vector<16x16xf32>
    %c0_7 = arith.constant 0 : index
    %c0_8 = arith.constant 0 : index
    %c0_9 = arith.constant 0 : index
    %12 = vector.load %arg4[%c0_7, %c0_8, %c0_9] : memref<1x1x16xf32, #tpu.memory_space<vmem>>, vector<1x1x16xf32>
    %13 = vector.shape_cast %12 : vector<1x1x16xf32> to vector<1x16xf32>
    %14 = vector.broadcast %13 : vector<1x16xf32> to vector<16x16xf32>
    %15 = arith.subf %11, %14 : vector<16x16xf32>
    %c0_10 = arith.constant 0 : index
    %c0_11 = arith.constant 0 : index
    %c0_12 = arith.constant 0 : index
    %16 = vector.load %arg5[%c0_10, %c0_11, %c0_12] : memref<1x16x16xf32, #tpu.memory_space<vmem>>, vector<1x16x16xf32>
    %17 = vector.shape_cast %16 : vector<1x16x16xf32> to vector<16x16xf32>
    %18 = vector.shape_cast %15 : vector<16x16xf32> to vector<1x16x16xf32>
    tpu.vector_store %arg5[%c0_10, %c0_11, %c0_12], %18 {strides = array<i32>} : memref<1x16x16xf32, #tpu.memory_space<vmem>>, vector<1x16x16xf32>,
    return
  }
  func.func @transform_0(%arg0: i32, %arg1: i32) -> (i32, i32, i32) {
    %c0_i32 = arith.constant 0 : i32
    %c0_i32_0 = arith.constant 0 : i32
    return %arg0, %arg1, %c0_i32 : i32, i32, i32
  }
  func.func @transform_1(%arg0: i32, %arg1: i32) -> (i32, i32, i32) {
    %c0_i32 = arith.constant 0 : i32
    %c0_i32_0 = arith.constant 0 : i32
    %c0_i32_1 = arith.constant 0 : i32
    return %arg0, %c0_i32, %c0_i32_0 : i32, i32, i32
  }
  func.func @transform_2(%arg0: i32, %arg1: i32) -> (i32, i32, i32) {
    %c0_i32 = arith.constant 0 : i32
    %c0_i32_0 = arith.constant 0 : i32
    %c0_i32_1 = arith.constant 0 : i32
    return %arg0, %c0_i32, %c0_i32_0 : i32, i32, i32
  }
  func.func @transform_3(%arg0: i32, %arg1: i32) -> (i32, i32, i32) {
    %c0_i32 = arith.constant 0 : i32
    %c0_i32_0 = arith.constant 0 : i32
    return %arg0, %arg1, %c0_i32 : i32, i32, i32
  }
}

module attributes {stable_mosaic.version = 11 : i64} {
  func.func @_edge_conv_kernel(%arg0: i32, %arg1: memref<4x32x3xbf16, #tpu.memory_space<vmem>>, %arg2: memref<32x3xbf16, #tpu.memory_space<vmem>>, %arg3: memref<3x64xbf16, #tpu.memory_space<vmem>>, %arg4: memref<3x64xbf16, #tpu.memory_space<vmem>>, %arg5: memref<1x64xf32, #tpu.memory_space<vmem>>, %arg6: memref<32x64xbf16, #tpu.memory_space<vmem>>) attributes {dimension_semantics = [#tpu.dimension_semantics<parallel>], iteration_bounds = array<i64: 1>, scalar_prefetch = 0 : i64, scratch_operands = 0 : i64, tpu.core_type = #tpu.core_type<tc>, window_params = [{transform_indices = @transform_0, window_bounds = array<i64: 4, 32, 3>}, {transform_indices = @transform_1, window_bounds = array<i64: 32, 3>}, {pipeline_mode = #tpu.pipeline_mode<synchronous>, transform_indices = @transform_2, window_bounds = array<i64: 3, 64>}, {pipeline_mode = #tpu.pipeline_mode<synchronous>, transform_indices = @transform_3, window_bounds = array<i64: 3, 64>}, {pipeline_mode = #tpu.pipeline_mode<synchronous>, transform_indices = @transform_4, window_bounds = array<i64: 1, 64>}, {transform_indices = @transform_5, window_bounds = array<i64: 32, 64>}]} {
    %c0 = arith.constant 0 : index
    %c0_0 = arith.constant 0 : index
    %c0_1 = arith.constant 0 : index
    %0 = vector.load %arg1[%c0, %c0_0, %c0_1] : memref<4x32x3xbf16, #tpu.memory_space<vmem>>, vector<4x32x3xbf16>
    %1 = vector.shape_cast %0 : vector<4x32x3xbf16> to vector<128x3xbf16>
    %c0_2 = arith.constant 0 : index
    %c0_3 = arith.constant 0 : index
    %2 = vector.load %arg3[%c0_2, %c0_3] : memref<3x64xbf16, #tpu.memory_space<vmem>>, vector<3x64xbf16>
    %cst = arith.constant dense<0.000000e+00> : vector<128x64xf32>
    %3 = tpu.matmul %1, %2, %cst {dimension_numbers = #tpu.dot_dimension_numbers<[1], [0], [0], [1], [0, 0, 1, 1], [], []>} : vector<128x3xbf16>, vector<3x64xbf16>, vector<128x64xf32> -> vector<128x64xf32>
    %4 = vector.extract_strided_slice %3 {offsets = [0, 0], sizes = [32, 64], strides = [1, 1]} : vector<128x64xf32> to vector<32x64xf32>
    %5 = vector.extract_strided_slice %3 {offsets = [32, 0], sizes = [32, 64], strides = [1, 1]} : vector<128x64xf32> to vector<32x64xf32>
    %6 = arith.maximumf %4, %5 : vector<32x64xf32>
    %7 = vector.extract_strided_slice %3 {offsets = [64, 0], sizes = [32, 64], strides = [1, 1]} : vector<128x64xf32> to vector<32x64xf32>
    %8 = arith.maximumf %6, %7 : vector<32x64xf32>
    %9 = vector.extract_strided_slice %3 {offsets = [96, 0], sizes = [32, 64], strides = [1, 1]} : vector<128x64xf32> to vector<32x64xf32>
    %10 = arith.maximumf %8, %9 : vector<32x64xf32>
    %c0_4 = arith.constant 0 : index
    %c0_5 = arith.constant 0 : index
    %11 = vector.load %arg2[%c0_4, %c0_5] : memref<32x3xbf16, #tpu.memory_space<vmem>>, vector<32x3xbf16>
    %c0_6 = arith.constant 0 : index
    %c0_7 = arith.constant 0 : index
    %12 = vector.load %arg4[%c0_6, %c0_7] : memref<3x64xbf16, #tpu.memory_space<vmem>>, vector<3x64xbf16>
    %cst_8 = arith.constant dense<0.000000e+00> : vector<32x64xf32>
    %13 = tpu.matmul %11, %12, %cst_8 {dimension_numbers = #tpu.dot_dimension_numbers<[1], [0], [0], [1], [0, 0, 1, 1], [], []>} : vector<32x3xbf16>, vector<3x64xbf16>, vector<32x64xf32> -> vector<32x64xf32>
    %14 = arith.addf %10, %13 : vector<32x64xf32>
    %c0_9 = arith.constant 0 : index
    %c0_10 = arith.constant 0 : index
    %15 = vector.load %arg5[%c0_9, %c0_10] : memref<1x64xf32, #tpu.memory_space<vmem>>, vector<1x64xf32>
    %16 = vector.broadcast %15 : vector<1x64xf32> to vector<32x64xf32>
    %17 = arith.addf %14, %16 : vector<32x64xf32>
    %cst_11 = arith.constant 0.000000e+00 : f32
    %18 = vector.broadcast %cst_11 : f32 to vector<32x64xf32>
    %19 = arith.cmpf ogt, %17, %18 : vector<32x64xf32>
    %cst_12 = arith.constant 2.000000e-01 : f32
    %20 = vector.broadcast %cst_12 : f32 to vector<32x64xf32>
    %21 = arith.mulf %20, %17 : vector<32x64xf32>
    %22 = arith.select %19, %17, %21 : vector<32x64xi1>, vector<32x64xf32>
    %23 = arith.truncf %22 : vector<32x64xf32> to vector<32x64xbf16>
    %c0_13 = arith.constant 0 : index
    %c0_14 = arith.constant 0 : index
    %24 = vector.load %arg6[%c0_13, %c0_14] : memref<32x64xbf16, #tpu.memory_space<vmem>>, vector<32x64xbf16>
    tpu.vector_store %arg6[%c0_13, %c0_14], %23 {strides = array<i32>} : memref<32x64xbf16, #tpu.memory_space<vmem>>, vector<32x64xbf16>,
    return
  }
  func.func @transform_0(%arg0: i32) -> (i32, i32, i32) {
    %c0_i32 = arith.constant 0 : i32
    %c0_i32_0 = arith.constant 0 : i32
    %c0_i32_1 = arith.constant 0 : i32
    return %c0_i32, %arg0, %c0_i32_0 : i32, i32, i32
  }
  func.func @transform_1(%arg0: i32) -> (i32, i32) {
    %c0_i32 = arith.constant 0 : i32
    %c0_i32_0 = arith.constant 0 : i32
    return %arg0, %c0_i32 : i32, i32
  }
  func.func @transform_2(%arg0: i32) -> (i32, i32) {
    %c0_i32 = arith.constant 0 : i32
    %c0_i32_0 = arith.constant 0 : i32
    %c0_i32_1 = arith.constant 0 : i32
    return %c0_i32, %c0_i32_0 : i32, i32
  }
  func.func @transform_3(%arg0: i32) -> (i32, i32) {
    %c0_i32 = arith.constant 0 : i32
    %c0_i32_0 = arith.constant 0 : i32
    %c0_i32_1 = arith.constant 0 : i32
    return %c0_i32, %c0_i32_0 : i32, i32
  }
  func.func @transform_4(%arg0: i32) -> (i32, i32) {
    %c0_i32 = arith.constant 0 : i32
    %c0_i32_0 = arith.constant 0 : i32
    %c0_i32_1 = arith.constant 0 : i32
    return %c0_i32, %c0_i32_0 : i32, i32
  }
  func.func @transform_5(%arg0: i32) -> (i32, i32) {
    %c0_i32 = arith.constant 0 : i32
    %c0_i32_0 = arith.constant 0 : i32
    return %arg0, %c0_i32 : i32, i32
  }
}

module attributes {stable_mosaic.version = 11 : i64} {
  func.func @_pairwise_kernel(%arg0: i32, %arg1: i32, %arg2: memref<1x16x64xbf16, #tpu.memory_space<vmem>>, %arg3: memref<1x16x64xbf16, #tpu.memory_space<vmem>>, %arg4: memref<1x1x16xf32, #tpu.memory_space<vmem>>, %arg5: memref<1x16x16xf32, #tpu.memory_space<vmem>>) attributes {dimension_semantics = [#tpu.dimension_semantics<parallel>, #tpu.dimension_semantics<parallel>], iteration_bounds = array<i64: 2, 1>, scalar_prefetch = 0 : i64, scratch_operands = 0 : i64, tpu.core_type = #tpu.core_type<tc>, window_params = [{transform_indices = @transform_0, window_bounds = array<i64: 1, 16, 64>}, {transform_indices = @transform_1, window_bounds = array<i64: 1, 16, 64>}, {transform_indices = @transform_2, window_bounds = array<i64: 1, 1, 16>}, {transform_indices = @transform_3, window_bounds = array<i64: 1, 16, 16>}]} {
    %c0 = arith.constant 0 : index
    %c0_0 = arith.constant 0 : index
    %c0_1 = arith.constant 0 : index
    %0 = vector.load %arg2[%c0, %c0_0, %c0_1] : memref<1x16x64xbf16, #tpu.memory_space<vmem>>, vector<1x16x64xbf16>
    %1 = vector.shape_cast %0 : vector<1x16x64xbf16> to vector<16x64xbf16>
    %c0_2 = arith.constant 0 : index
    %c0_3 = arith.constant 0 : index
    %c0_4 = arith.constant 0 : index
    %2 = vector.load %arg3[%c0_2, %c0_3, %c0_4] : memref<1x16x64xbf16, #tpu.memory_space<vmem>>, vector<1x16x64xbf16>
    %3 = vector.shape_cast %2 : vector<1x16x64xbf16> to vector<16x64xbf16>
    %cst = arith.constant dense<0.000000e+00> : vector<16x16xf32>
    %4 = tpu.matmul %1, %3, %cst {dimension_numbers = #tpu.dot_dimension_numbers<[1], [1], [0], [0], [0, 0, 1, 0], [], []>} : vector<16x64xbf16>, vector<16x64xbf16>, vector<16x16xf32> -> vector<16x16xf32>
    %5 = arith.extf %1 : vector<16x64xbf16> to vector<16x64xf32>
    %6 = arith.mulf %5, %5 : vector<16x64xf32>
    %cst_5 = arith.constant dense<0.000000e+00> : vector<16xf32>
    %7 = vector.multi_reduction <add>, %6, %cst_5 [1] : vector<16x64xf32> to vector<16xf32>
    %8 = vector.shape_cast %7 : vector<16xf32> to vector<16x1xf32>
    %cst_6 = arith.constant 2.000000e+00 : f32
    %9 = vector.broadcast %cst_6 : f32 to vector<16x16xf32>
    %10 = arith.mulf %9, %4 : vector<16x16xf32>
    %11 = vector.broadcast %8 : vector<16x1xf32> to vector<16x16xf32>
    %12 = arith.subf %10, %11 : vector<16x16xf32>
    %c0_7 = arith.constant 0 : index
    %c0_8 = arith.constant 0 : index
    %c0_9 = arith.constant 0 : index
    %13 = vector.load %arg4[%c0_7, %c0_8, %c0_9] : memref<1x1x16xf32, #tpu.memory_space<vmem>>, vector<1x1x16xf32>
    %14 = vector.shape_cast %13 : vector<1x1x16xf32> to vector<1x16xf32>
    %15 = vector.broadcast %14 : vector<1x16xf32> to vector<16x16xf32>
    %16 = arith.subf %12, %15 : vector<16x16xf32>
    %c0_10 = arith.constant 0 : index
    %c0_11 = arith.constant 0 : index
    %c0_12 = arith.constant 0 : index
    %17 = vector.load %arg5[%c0_10, %c0_11, %c0_12] : memref<1x16x16xf32, #tpu.memory_space<vmem>>, vector<1x16x16xf32>
    %18 = vector.shape_cast %17 : vector<1x16x16xf32> to vector<16x16xf32>
    %19 = vector.shape_cast %16 : vector<16x16xf32> to vector<1x16x16xf32>
    tpu.vector_store %arg5[%c0_10, %c0_11, %c0_12], %19 {strides = array<i32>} : memref<1x16x16xf32, #tpu.memory_space<vmem>>, vector<1x16x16xf32>,
    return
  }
  func.func @transform_0(%arg0: i32, %arg1: i32) -> (i32, i32, i32) {
    %c0_i32 = arith.constant 0 : i32
    %c0_i32_0 = arith.constant 0 : i32
    return %arg0, %arg1, %c0_i32 : i32, i32, i32
  }
  func.func @transform_1(%arg0: i32, %arg1: i32) -> (i32, i32, i32) {
    %c0_i32 = arith.constant 0 : i32
    %c0_i32_0 = arith.constant 0 : i32
    %c0_i32_1 = arith.constant 0 : i32
    return %arg0, %c0_i32, %c0_i32_0 : i32, i32, i32
  }
  func.func @transform_2(%arg0: i32, %arg1: i32) -> (i32, i32, i32) {
    %c0_i32 = arith.constant 0 : i32
    %c0_i32_0 = arith.constant 0 : i32
    %c0_i32_1 = arith.constant 0 : i32
    return %arg0, %c0_i32, %c0_i32_0 : i32, i32, i32
  }
  func.func @transform_3(%arg0: i32, %arg1: i32) -> (i32, i32, i32) {
    %c0_i32 = arith.constant 0 : i32
    %c0_i32_0 = arith.constant 0 : i32
    return %arg0, %arg1, %c0_i32 : i32, i32, i32
  }
}

module attributes {stable_mosaic.version = 11 : i64} {
  func.func @_edge_conv_kernel(%arg0: i32, %arg1: memref<4x32x64xbf16, #tpu.memory_space<vmem>>, %arg2: memref<32x64xbf16, #tpu.memory_space<vmem>>, %arg3: memref<64x64xbf16, #tpu.memory_space<vmem>>, %arg4: memref<64x64xbf16, #tpu.memory_space<vmem>>, %arg5: memref<1x64xf32, #tpu.memory_space<vmem>>, %arg6: memref<32x64xbf16, #tpu.memory_space<vmem>>) attributes {dimension_semantics = [#tpu.dimension_semantics<parallel>], iteration_bounds = array<i64: 1>, scalar_prefetch = 0 : i64, scratch_operands = 0 : i64, tpu.core_type = #tpu.core_type<tc>, window_params = [{transform_indices = @transform_0, window_bounds = array<i64: 4, 32, 64>}, {transform_indices = @transform_1, window_bounds = array<i64: 32, 64>}, {pipeline_mode = #tpu.pipeline_mode<synchronous>, transform_indices = @transform_2, window_bounds = array<i64: 64, 64>}, {pipeline_mode = #tpu.pipeline_mode<synchronous>, transform_indices = @transform_3, window_bounds = array<i64: 64, 64>}, {pipeline_mode = #tpu.pipeline_mode<synchronous>, transform_indices = @transform_4, window_bounds = array<i64: 1, 64>}, {transform_indices = @transform_5, window_bounds = array<i64: 32, 64>}]} {
    %c0 = arith.constant 0 : index
    %c0_0 = arith.constant 0 : index
    %c0_1 = arith.constant 0 : index
    %0 = vector.load %arg1[%c0, %c0_0, %c0_1] : memref<4x32x64xbf16, #tpu.memory_space<vmem>>, vector<4x32x64xbf16>
    %1 = vector.shape_cast %0 : vector<4x32x64xbf16> to vector<128x64xbf16>
    %c0_2 = arith.constant 0 : index
    %c0_3 = arith.constant 0 : index
    %2 = vector.load %arg3[%c0_2, %c0_3] : memref<64x64xbf16, #tpu.memory_space<vmem>>, vector<64x64xbf16>
    %cst = arith.constant dense<0.000000e+00> : vector<128x64xf32>
    %3 = tpu.matmul %1, %2, %cst {dimension_numbers = #tpu.dot_dimension_numbers<[1], [0], [0], [1], [0, 0, 1, 1], [], []>} : vector<128x64xbf16>, vector<64x64xbf16>, vector<128x64xf32> -> vector<128x64xf32>
    %4 = vector.extract_strided_slice %3 {offsets = [0, 0], sizes = [32, 64], strides = [1, 1]} : vector<128x64xf32> to vector<32x64xf32>
    %5 = vector.extract_strided_slice %3 {offsets = [32, 0], sizes = [32, 64], strides = [1, 1]} : vector<128x64xf32> to vector<32x64xf32>
    %6 = arith.maximumf %4, %5 : vector<32x64xf32>
    %7 = vector.extract_strided_slice %3 {offsets = [64, 0], sizes = [32, 64], strides = [1, 1]} : vector<128x64xf32> to vector<32x64xf32>
    %8 = arith.maximumf %6, %7 : vector<32x64xf32>
    %9 = vector.extract_strided_slice %3 {offsets = [96, 0], sizes = [32, 64], strides = [1, 1]} : vector<128x64xf32> to vector<32x64xf32>
    %10 = arith.maximumf %8, %9 : vector<32x64xf32>
    %c0_4 = arith.constant 0 : index
    %c0_5 = arith.constant 0 : index
    %11 = vector.load %arg2[%c0_4, %c0_5] : memref<32x64xbf16, #tpu.memory_space<vmem>>, vector<32x64xbf16>
    %c0_6 = arith.constant 0 : index
    %c0_7 = arith.constant 0 : index
    %12 = vector.load %arg4[%c0_6, %c0_7] : memref<64x64xbf16, #tpu.memory_space<vmem>>, vector<64x64xbf16>
    %cst_8 = arith.constant dense<0.000000e+00> : vector<32x64xf32>
    %13 = tpu.matmul %11, %12, %cst_8 {dimension_numbers = #tpu.dot_dimension_numbers<[1], [0], [0], [1], [0, 0, 1, 1], [], []>} : vector<32x64xbf16>, vector<64x64xbf16>, vector<32x64xf32> -> vector<32x64xf32>
    %14 = arith.addf %10, %13 : vector<32x64xf32>
    %c0_9 = arith.constant 0 : index
    %c0_10 = arith.constant 0 : index
    %15 = vector.load %arg5[%c0_9, %c0_10] : memref<1x64xf32, #tpu.memory_space<vmem>>, vector<1x64xf32>
    %16 = vector.broadcast %15 : vector<1x64xf32> to vector<32x64xf32>
    %17 = arith.addf %14, %16 : vector<32x64xf32>
    %cst_11 = arith.constant 0.000000e+00 : f32
    %18 = vector.broadcast %cst_11 : f32 to vector<32x64xf32>
    %19 = arith.cmpf ogt, %17, %18 : vector<32x64xf32>
    %cst_12 = arith.constant 2.000000e-01 : f32
    %20 = vector.broadcast %cst_12 : f32 to vector<32x64xf32>
    %21 = arith.mulf %20, %17 : vector<32x64xf32>
    %22 = arith.select %19, %17, %21 : vector<32x64xi1>, vector<32x64xf32>
    %23 = arith.truncf %22 : vector<32x64xf32> to vector<32x64xbf16>
    %c0_13 = arith.constant 0 : index
    %c0_14 = arith.constant 0 : index
    %24 = vector.load %arg6[%c0_13, %c0_14] : memref<32x64xbf16, #tpu.memory_space<vmem>>, vector<32x64xbf16>
    tpu.vector_store %arg6[%c0_13, %c0_14], %23 {strides = array<i32>} : memref<32x64xbf16, #tpu.memory_space<vmem>>, vector<32x64xbf16>,
    return
  }
  func.func @transform_0(%arg0: i32) -> (i32, i32, i32) {
    %c0_i32 = arith.constant 0 : i32
    %c0_i32_0 = arith.constant 0 : i32
    %c0_i32_1 = arith.constant 0 : i32
    return %c0_i32, %arg0, %c0_i32_0 : i32, i32, i32
  }
  func.func @transform_1(%arg0: i32) -> (i32, i32) {
    %c0_i32 = arith.constant 0 : i32
    %c0_i32_0 = arith.constant 0 : i32
    return %arg0, %c0_i32 : i32, i32
  }
  func.func @transform_2(%arg0: i32) -> (i32, i32) {
    %c0_i32 = arith.constant 0 : i32
    %c0_i32_0 = arith.constant 0 : i32
    %c0_i32_1 = arith.constant 0 : i32
    return %c0_i32, %c0_i32_0 : i32, i32
  }
  func.func @transform_3(%arg0: i32) -> (i32, i32) {
    %c0_i32 = arith.constant 0 : i32
    %c0_i32_0 = arith.constant 0 : i32
    %c0_i32_1 = arith.constant 0 : i32
    return %c0_i32, %c0_i32_0 : i32, i32
  }
  func.func @transform_4(%arg0: i32) -> (i32, i32) {
    %c0_i32 = arith.constant 0 : i32
    %c0_i32_0 = arith.constant 0 : i32
    %c0_i32_1 = arith.constant 0 : i32
    return %c0_i32, %c0_i32_0 : i32, i32
  }
  func.func @transform_5(%arg0: i32) -> (i32, i32) {
    %c0_i32 = arith.constant 0 : i32
    %c0_i32_0 = arith.constant 0 : i32
    return %arg0, %c0_i32 : i32, i32
  }
}

module attributes {stable_mosaic.version = 11 : i64} {
  func.func @_pairwise_kernel(%arg0: i32, %arg1: i32, %arg2: memref<1x16x128xbf16, #tpu.memory_space<vmem>>, %arg3: memref<1x16x128xbf16, #tpu.memory_space<vmem>>, %arg4: memref<1x1x16xf32, #tpu.memory_space<vmem>>, %arg5: memref<1x16x16xf32, #tpu.memory_space<vmem>>) attributes {dimension_semantics = [#tpu.dimension_semantics<parallel>, #tpu.dimension_semantics<parallel>], iteration_bounds = array<i64: 2, 1>, scalar_prefetch = 0 : i64, scratch_operands = 0 : i64, tpu.core_type = #tpu.core_type<tc>, window_params = [{transform_indices = @transform_0, window_bounds = array<i64: 1, 16, 128>}, {transform_indices = @transform_1, window_bounds = array<i64: 1, 16, 128>}, {transform_indices = @transform_2, window_bounds = array<i64: 1, 1, 16>}, {transform_indices = @transform_3, window_bounds = array<i64: 1, 16, 16>}]} {
    %c0 = arith.constant 0 : index
    %c0_0 = arith.constant 0 : index
    %c0_1 = arith.constant 0 : index
    %0 = vector.load %arg2[%c0, %c0_0, %c0_1] : memref<1x16x128xbf16, #tpu.memory_space<vmem>>, vector<1x16x128xbf16>
    %1 = vector.shape_cast %0 : vector<1x16x128xbf16> to vector<16x128xbf16>
    %c0_2 = arith.constant 0 : index
    %c0_3 = arith.constant 0 : index
    %c0_4 = arith.constant 0 : index
    %2 = vector.load %arg3[%c0_2, %c0_3, %c0_4] : memref<1x16x128xbf16, #tpu.memory_space<vmem>>, vector<1x16x128xbf16>
    %3 = vector.shape_cast %2 : vector<1x16x128xbf16> to vector<16x128xbf16>
    %cst = arith.constant dense<0.000000e+00> : vector<16x16xf32>
    %4 = tpu.matmul %1, %3, %cst {dimension_numbers = #tpu.dot_dimension_numbers<[1], [1], [0], [0], [0, 0, 1, 0], [], []>} : vector<16x128xbf16>, vector<16x128xbf16>, vector<16x16xf32> -> vector<16x16xf32>
    %5 = arith.extf %1 : vector<16x128xbf16> to vector<16x128xf32>
    %6 = arith.mulf %5, %5 : vector<16x128xf32>
    %cst_5 = arith.constant dense<0.000000e+00> : vector<16xf32>
    %7 = vector.multi_reduction <add>, %6, %cst_5 [1] : vector<16x128xf32> to vector<16xf32>
    %8 = vector.shape_cast %7 : vector<16xf32> to vector<16x1xf32>
    %cst_6 = arith.constant 2.000000e+00 : f32
    %9 = vector.broadcast %cst_6 : f32 to vector<16x16xf32>
    %10 = arith.mulf %9, %4 : vector<16x16xf32>
    %11 = vector.broadcast %8 : vector<16x1xf32> to vector<16x16xf32>
    %12 = arith.subf %10, %11 : vector<16x16xf32>
    %c0_7 = arith.constant 0 : index
    %c0_8 = arith.constant 0 : index
    %c0_9 = arith.constant 0 : index
    %13 = vector.load %arg4[%c0_7, %c0_8, %c0_9] : memref<1x1x16xf32, #tpu.memory_space<vmem>>, vector<1x1x16xf32>
    %14 = vector.shape_cast %13 : vector<1x1x16xf32> to vector<1x16xf32>
    %15 = vector.broadcast %14 : vector<1x16xf32> to vector<16x16xf32>
    %16 = arith.subf %12, %15 : vector<16x16xf32>
    %c0_10 = arith.constant 0 : index
    %c0_11 = arith.constant 0 : index
    %c0_12 = arith.constant 0 : index
    %17 = vector.load %arg5[%c0_10, %c0_11, %c0_12] : memref<1x16x16xf32, #tpu.memory_space<vmem>>, vector<1x16x16xf32>
    %18 = vector.shape_cast %17 : vector<1x16x16xf32> to vector<16x16xf32>
    %19 = vector.shape_cast %16 : vector<16x16xf32> to vector<1x16x16xf32>
    tpu.vector_store %arg5[%c0_10, %c0_11, %c0_12], %19 {strides = array<i32>} : memref<1x16x16xf32, #tpu.memory_space<vmem>>, vector<1x16x16xf32>,
    return
  }
  func.func @transform_0(%arg0: i32, %arg1: i32) -> (i32, i32, i32) {
    %c0_i32 = arith.constant 0 : i32
    %c0_i32_0 = arith.constant 0 : i32
    return %arg0, %arg1, %c0_i32 : i32, i32, i32
  }
  func.func @transform_1(%arg0: i32, %arg1: i32) -> (i32, i32, i32) {
    %c0_i32 = arith.constant 0 : i32
    %c0_i32_0 = arith.constant 0 : i32
    %c0_i32_1 = arith.constant 0 : i32
    return %arg0, %c0_i32, %c0_i32_0 : i32, i32, i32
  }
  func.func @transform_2(%arg0: i32, %arg1: i32) -> (i32, i32, i32) {
    %c0_i32 = arith.constant 0 : i32
    %c0_i32_0 = arith.constant 0 : i32
    %c0_i32_1 = arith.constant 0 : i32
    return %arg0, %c0_i32, %c0_i32_0 : i32, i32, i32
  }
  func.func @transform_3(%arg0: i32, %arg1: i32) -> (i32, i32, i32) {
    %c0_i32 = arith.constant 0 : i32
    %c0_i32_0 = arith.constant 0 : i32
    return %arg0, %arg1, %c0_i32 : i32, i32, i32
  }
}

module attributes {stable_mosaic.version = 11 : i64} {
  func.func @_edge_conv_kernel(%arg0: i32, %arg1: memref<4x32x64xbf16, #tpu.memory_space<vmem>>, %arg2: memref<32x64xbf16, #tpu.memory_space<vmem>>, %arg3: memref<64x128xbf16, #tpu.memory_space<vmem>>, %arg4: memref<64x128xbf16, #tpu.memory_space<vmem>>, %arg5: memref<1x128xf32, #tpu.memory_space<vmem>>, %arg6: memref<32x128xbf16, #tpu.memory_space<vmem>>) attributes {dimension_semantics = [#tpu.dimension_semantics<parallel>], iteration_bounds = array<i64: 1>, scalar_prefetch = 0 : i64, scratch_operands = 0 : i64, tpu.core_type = #tpu.core_type<tc>, window_params = [{transform_indices = @transform_0, window_bounds = array<i64: 4, 32, 64>}, {transform_indices = @transform_1, window_bounds = array<i64: 32, 64>}, {pipeline_mode = #tpu.pipeline_mode<synchronous>, transform_indices = @transform_2, window_bounds = array<i64: 64, 128>}, {pipeline_mode = #tpu.pipeline_mode<synchronous>, transform_indices = @transform_3, window_bounds = array<i64: 64, 128>}, {pipeline_mode = #tpu.pipeline_mode<synchronous>, transform_indices = @transform_4, window_bounds = array<i64: 1, 128>}, {transform_indices = @transform_5, window_bounds = array<i64: 32, 128>}]} {
    %c0 = arith.constant 0 : index
    %c0_0 = arith.constant 0 : index
    %c0_1 = arith.constant 0 : index
    %0 = vector.load %arg1[%c0, %c0_0, %c0_1] : memref<4x32x64xbf16, #tpu.memory_space<vmem>>, vector<4x32x64xbf16>
    %1 = vector.shape_cast %0 : vector<4x32x64xbf16> to vector<128x64xbf16>
    %c0_2 = arith.constant 0 : index
    %c0_3 = arith.constant 0 : index
    %2 = vector.load %arg3[%c0_2, %c0_3] : memref<64x128xbf16, #tpu.memory_space<vmem>>, vector<64x128xbf16>
    %cst = arith.constant dense<0.000000e+00> : vector<128x128xf32>
    %3 = tpu.matmul %1, %2, %cst {dimension_numbers = #tpu.dot_dimension_numbers<[1], [0], [0], [1], [0, 0, 1, 1], [], []>} : vector<128x64xbf16>, vector<64x128xbf16>, vector<128x128xf32> -> vector<128x128xf32>
    %4 = vector.extract_strided_slice %3 {offsets = [0, 0], sizes = [32, 128], strides = [1, 1]} : vector<128x128xf32> to vector<32x128xf32>
    %5 = vector.extract_strided_slice %3 {offsets = [32, 0], sizes = [32, 128], strides = [1, 1]} : vector<128x128xf32> to vector<32x128xf32>
    %6 = arith.maximumf %4, %5 : vector<32x128xf32>
    %7 = vector.extract_strided_slice %3 {offsets = [64, 0], sizes = [32, 128], strides = [1, 1]} : vector<128x128xf32> to vector<32x128xf32>
    %8 = arith.maximumf %6, %7 : vector<32x128xf32>
    %9 = vector.extract_strided_slice %3 {offsets = [96, 0], sizes = [32, 128], strides = [1, 1]} : vector<128x128xf32> to vector<32x128xf32>
    %10 = arith.maximumf %8, %9 : vector<32x128xf32>
    %c0_4 = arith.constant 0 : index
    %c0_5 = arith.constant 0 : index
    %11 = vector.load %arg2[%c0_4, %c0_5] : memref<32x64xbf16, #tpu.memory_space<vmem>>, vector<32x64xbf16>
    %c0_6 = arith.constant 0 : index
    %c0_7 = arith.constant 0 : index
    %12 = vector.load %arg4[%c0_6, %c0_7] : memref<64x128xbf16, #tpu.memory_space<vmem>>, vector<64x128xbf16>
    %cst_8 = arith.constant dense<0.000000e+00> : vector<32x128xf32>
    %13 = tpu.matmul %11, %12, %cst_8 {dimension_numbers = #tpu.dot_dimension_numbers<[1], [0], [0], [1], [0, 0, 1, 1], [], []>} : vector<32x64xbf16>, vector<64x128xbf16>, vector<32x128xf32> -> vector<32x128xf32>
    %14 = arith.addf %10, %13 : vector<32x128xf32>
    %c0_9 = arith.constant 0 : index
    %c0_10 = arith.constant 0 : index
    %15 = vector.load %arg5[%c0_9, %c0_10] : memref<1x128xf32, #tpu.memory_space<vmem>>, vector<1x128xf32>
    %16 = vector.broadcast %15 : vector<1x128xf32> to vector<32x128xf32>
    %17 = arith.addf %14, %16 : vector<32x128xf32>
    %cst_11 = arith.constant 0.000000e+00 : f32
    %18 = vector.broadcast %cst_11 : f32 to vector<32x128xf32>
    %19 = arith.cmpf ogt, %17, %18 : vector<32x128xf32>
    %cst_12 = arith.constant 2.000000e-01 : f32
    %20 = vector.broadcast %cst_12 : f32 to vector<32x128xf32>
    %21 = arith.mulf %20, %17 : vector<32x128xf32>
    %22 = arith.select %19, %17, %21 : vector<32x128xi1>, vector<32x128xf32>
    %23 = arith.truncf %22 : vector<32x128xf32> to vector<32x128xbf16>
    %c0_13 = arith.constant 0 : index
    %c0_14 = arith.constant 0 : index
    %24 = vector.load %arg6[%c0_13, %c0_14] : memref<32x128xbf16, #tpu.memory_space<vmem>>, vector<32x128xbf16>
    tpu.vector_store %arg6[%c0_13, %c0_14], %23 {strides = array<i32>} : memref<32x128xbf16, #tpu.memory_space<vmem>>, vector<32x128xbf16>,
    return
  }
  func.func @transform_0(%arg0: i32) -> (i32, i32, i32) {
    %c0_i32 = arith.constant 0 : i32
    %c0_i32_0 = arith.constant 0 : i32
    %c0_i32_1 = arith.constant 0 : i32
    return %c0_i32, %arg0, %c0_i32_0 : i32, i32, i32
  }
  func.func @transform_1(%arg0: i32) -> (i32, i32) {
    %c0_i32 = arith.constant 0 : i32
    %c0_i32_0 = arith.constant 0 : i32
    return %arg0, %c0_i32 : i32, i32
  }
  func.func @transform_2(%arg0: i32) -> (i32, i32) {
    %c0_i32 = arith.constant 0 : i32
    %c0_i32_0 = arith.constant 0 : i32
    %c0_i32_1 = arith.constant 0 : i32
    return %c0_i32, %c0_i32_0 : i32, i32
  }
  func.func @transform_3(%arg0: i32) -> (i32, i32) {
    %c0_i32 = arith.constant 0 : i32
    %c0_i32_0 = arith.constant 0 : i32
    %c0_i32_1 = arith.constant 0 : i32
    return %c0_i32, %c0_i32_0 : i32, i32
  }
  func.func @transform_4(%arg0: i32) -> (i32, i32) {
    %c0_i32 = arith.constant 0 : i32
    %c0_i32_0 = arith.constant 0 : i32
    %c0_i32_1 = arith.constant 0 : i32
    return %c0_i32, %c0_i32_0 : i32, i32
  }
  func.func @transform_5(%arg0: i32) -> (i32, i32) {
    %c0_i32 = arith.constant 0 : i32
    %c0_i32_0 = arith.constant 0 : i32
    return %arg0, %c0_i32 : i32, i32
  }
}

module attributes {stable_mosaic.version = 11 : i64} {
  func.func @_edge_conv_kernel(%arg0: i32, %arg1: memref<4x32x128xbf16, #tpu.memory_space<vmem>>, %arg2: memref<32x128xbf16, #tpu.memory_space<vmem>>, %arg3: memref<128x256xbf16, #tpu.memory_space<vmem>>, %arg4: memref<128x256xbf16, #tpu.memory_space<vmem>>, %arg5: memref<1x256xf32, #tpu.memory_space<vmem>>, %arg6: memref<32x256xbf16, #tpu.memory_space<vmem>>) attributes {dimension_semantics = [#tpu.dimension_semantics<parallel>], iteration_bounds = array<i64: 1>, scalar_prefetch = 0 : i64, scratch_operands = 0 : i64, tpu.core_type = #tpu.core_type<tc>, window_params = [{transform_indices = @transform_0, window_bounds = array<i64: 4, 32, 128>}, {transform_indices = @transform_1, window_bounds = array<i64: 32, 128>}, {pipeline_mode = #tpu.pipeline_mode<synchronous>, transform_indices = @transform_2, window_bounds = array<i64: 128, 256>}, {pipeline_mode = #tpu.pipeline_mode<synchronous>, transform_indices = @transform_3, window_bounds = array<i64: 128, 256>}, {pipeline_mode = #tpu.pipeline_mode<synchronous>, transform_indices = @transform_4, window_bounds = array<i64: 1, 256>}, {transform_indices = @transform_5, window_bounds = array<i64: 32, 256>}]} {
    %c0 = arith.constant 0 : index
    %c0_0 = arith.constant 0 : index
    %c0_1 = arith.constant 0 : index
    %0 = vector.load %arg1[%c0, %c0_0, %c0_1] : memref<4x32x128xbf16, #tpu.memory_space<vmem>>, vector<4x32x128xbf16>
    %1 = vector.shape_cast %0 : vector<4x32x128xbf16> to vector<128x128xbf16>
    %c0_2 = arith.constant 0 : index
    %c0_3 = arith.constant 0 : index
    %2 = vector.load %arg3[%c0_2, %c0_3] : memref<128x256xbf16, #tpu.memory_space<vmem>>, vector<128x256xbf16>
    %cst = arith.constant dense<0.000000e+00> : vector<128x256xf32>
    %3 = tpu.matmul %1, %2, %cst {dimension_numbers = #tpu.dot_dimension_numbers<[1], [0], [0], [1], [0, 0, 1, 1], [], []>} : vector<128x128xbf16>, vector<128x256xbf16>, vector<128x256xf32> -> vector<128x256xf32>
    %4 = vector.extract_strided_slice %3 {offsets = [0, 0], sizes = [32, 256], strides = [1, 1]} : vector<128x256xf32> to vector<32x256xf32>
    %5 = vector.extract_strided_slice %3 {offsets = [32, 0], sizes = [32, 256], strides = [1, 1]} : vector<128x256xf32> to vector<32x256xf32>
    %6 = arith.maximumf %4, %5 : vector<32x256xf32>
    %7 = vector.extract_strided_slice %3 {offsets = [64, 0], sizes = [32, 256], strides = [1, 1]} : vector<128x256xf32> to vector<32x256xf32>
    %8 = arith.maximumf %6, %7 : vector<32x256xf32>
    %9 = vector.extract_strided_slice %3 {offsets = [96, 0], sizes = [32, 256], strides = [1, 1]} : vector<128x256xf32> to vector<32x256xf32>
    %10 = arith.maximumf %8, %9 : vector<32x256xf32>
    %c0_4 = arith.constant 0 : index
    %c0_5 = arith.constant 0 : index
    %11 = vector.load %arg2[%c0_4, %c0_5] : memref<32x128xbf16, #tpu.memory_space<vmem>>, vector<32x128xbf16>
    %c0_6 = arith.constant 0 : index
    %c0_7 = arith.constant 0 : index
    %12 = vector.load %arg4[%c0_6, %c0_7] : memref<128x256xbf16, #tpu.memory_space<vmem>>, vector<128x256xbf16>
    %cst_8 = arith.constant dense<0.000000e+00> : vector<32x256xf32>
    %13 = tpu.matmul %11, %12, %cst_8 {dimension_numbers = #tpu.dot_dimension_numbers<[1], [0], [0], [1], [0, 0, 1, 1], [], []>} : vector<32x128xbf16>, vector<128x256xbf16>, vector<32x256xf32> -> vector<32x256xf32>
    %14 = arith.addf %10, %13 : vector<32x256xf32>
    %c0_9 = arith.constant 0 : index
    %c0_10 = arith.constant 0 : index
    %15 = vector.load %arg5[%c0_9, %c0_10] : memref<1x256xf32, #tpu.memory_space<vmem>>, vector<1x256xf32>
    %16 = vector.broadcast %15 : vector<1x256xf32> to vector<32x256xf32>
    %17 = arith.addf %14, %16 : vector<32x256xf32>
    %cst_11 = arith.constant 0.000000e+00 : f32
    %18 = vector.broadcast %cst_11 : f32 to vector<32x256xf32>
    %19 = arith.cmpf ogt, %17, %18 : vector<32x256xf32>
    %cst_12 = arith.constant 2.000000e-01 : f32
    %20 = vector.broadcast %cst_12 : f32 to vector<32x256xf32>
    %21 = arith.mulf %20, %17 : vector<32x256xf32>
    %22 = arith.select %19, %17, %21 : vector<32x256xi1>, vector<32x256xf32>
    %23 = arith.truncf %22 : vector<32x256xf32> to vector<32x256xbf16>
    %c0_13 = arith.constant 0 : index
    %c0_14 = arith.constant 0 : index
    %24 = vector.load %arg6[%c0_13, %c0_14] : memref<32x256xbf16, #tpu.memory_space<vmem>>, vector<32x256xbf16>
    tpu.vector_store %arg6[%c0_13, %c0_14], %23 {strides = array<i32>} : memref<32x256xbf16, #tpu.memory_space<vmem>>, vector<32x256xbf16>,
    return
  }
  func.func @transform_0(%arg0: i32) -> (i32, i32, i32) {
    %c0_i32 = arith.constant 0 : i32
    %c0_i32_0 = arith.constant 0 : i32
    %c0_i32_1 = arith.constant 0 : i32
    return %c0_i32, %arg0, %c0_i32_0 : i32, i32, i32
  }
  func.func @transform_1(%arg0: i32) -> (i32, i32) {
    %c0_i32 = arith.constant 0 : i32
    %c0_i32_0 = arith.constant 0 : i32
    return %arg0, %c0_i32 : i32, i32
  }
  func.func @transform_2(%arg0: i32) -> (i32, i32) {
    %c0_i32 = arith.constant 0 : i32
    %c0_i32_0 = arith.constant 0 : i32
    %c0_i32_1 = arith.constant 0 : i32
    return %c0_i32, %c0_i32_0 : i32, i32
  }
  func.func @transform_3(%arg0: i32) -> (i32, i32) {
    %c0_i32 = arith.constant 0 : i32
    %c0_i32_0 = arith.constant 0 : i32
    %c0_i32_1 = arith.constant 0 : i32
    return %c0_i32, %c0_i32_0 : i32, i32
  }
  func.func @transform_4(%arg0: i32) -> (i32, i32) {
    %c0_i32 = arith.constant 0 : i32
    %c0_i32_0 = arith.constant 0 : i32
    %c0_i32_1 = arith.constant 0 : i32
    return %c0_i32, %c0_i32_0 : i32, i32
  }
  func.func @transform_5(%arg0: i32) -> (i32, i32) {
    %c0_i32 = arith.constant 0 : i32
    %c0_i32_0 = arith.constant 0 : i32
    return %arg0, %c0_i32 : i32, i32
  }
}

module attributes {stable_mosaic.version = 11 : i64} {
  func.func @_head_kernel(%arg0: i32, %arg1: i32, %arg2: memref<1x16x512xbf16, #tpu.memory_space<vmem>>, %arg3: memref<512x64xbf16, #tpu.memory_space<vmem>>, %arg4: memref<1x64xf32, #tpu.memory_space<vmem>>, %arg5: memref<64x64xf32, #tpu.memory_space<vmem>>, %arg6: memref<64x64xf32, #tpu.memory_space<vmem>>, %arg7: memref<1x64xf32, #tpu.memory_space<vmem>>, %arg8: memref<1x64xf32, #tpu.memory_space<vmem>>, %arg9: memref<1x64xf32, #tpu.memory_space<vmem>>, %arg10: memref<64x512xf32, #tpu.memory_space<vmem>>, %arg11: memref<1x512xf32, #tpu.memory_space<vmem>>, %arg12: memref<1x1x128xf32, #tpu.memory_space<vmem>>, %arg13: memref<1x1x512xf32, #tpu.memory_space<vmem>>, %arg14: memref<1x64xf32, #tpu.memory_space<vmem>>, %arg15: memref<1x64xf32, #tpu.memory_space<vmem>>) attributes {dimension_semantics = [#tpu.dimension_semantics<parallel>, #tpu.dimension_semantics<arbitrary>], iteration_bounds = array<i64: 2, 1>, scalar_prefetch = 0 : i64, scratch_operands = 2 : i64, tpu.core_type = #tpu.core_type<tc>, window_params = [{transform_indices = @transform_0, window_bounds = array<i64: 1, 16, 512>}, {pipeline_mode = #tpu.pipeline_mode<synchronous>, transform_indices = @transform_1, window_bounds = array<i64: 512, 64>}, {pipeline_mode = #tpu.pipeline_mode<synchronous>, transform_indices = @transform_2, window_bounds = array<i64: 1, 64>}, {pipeline_mode = #tpu.pipeline_mode<synchronous>, transform_indices = @transform_3, window_bounds = array<i64: 64, 64>}, {pipeline_mode = #tpu.pipeline_mode<synchronous>, transform_indices = @transform_4, window_bounds = array<i64: 64, 64>}, {pipeline_mode = #tpu.pipeline_mode<synchronous>, transform_indices = @transform_5, window_bounds = array<i64: 1, 64>}, {pipeline_mode = #tpu.pipeline_mode<synchronous>, transform_indices = @transform_6, window_bounds = array<i64: 1, 64>}, {pipeline_mode = #tpu.pipeline_mode<synchronous>, transform_indices = @transform_7, window_bounds = array<i64: 1, 64>}, {pipeline_mode = #tpu.pipeline_mode<synchronous>, transform_indices = @transform_8, window_bounds = array<i64: 64, 512>}, {pipeline_mode = #tpu.pipeline_mode<synchronous>, transform_indices = @transform_9, window_bounds = array<i64: 1, 512>}, {transform_indices = @transform_10, window_bounds = array<i64: 1, 1, 128>}, {transform_indices = @transform_11, window_bounds = array<i64: 1, 1, 512>}]} {
    %c0_i32 = arith.constant 0 : i32
    %0 = arith.cmpi eq, %arg1, %c0_i32 : i32
    %1 = arith.extui %0 : i1 to i32
    %c0_i32_0 = arith.constant 0 : i32
    %2 = arith.cmpi ne, %1, %c0_i32_0 : i32
    scf.if %2 {
      %cst_21 = arith.constant 0xFF800000 : f32
      %28 = vector.broadcast %cst_21 : f32 to vector<1x64xf32>
      %c0_22 = arith.constant 0 : index
      %c0_23 = arith.constant 0 : index
      %29 = vector.load %arg14[%c0_22, %c0_23] : memref<1x64xf32, #tpu.memory_space<vmem>>, vector<1x64xf32>
      tpu.vector_store %arg14[%c0_22, %c0_23], %28 {strides = array<i32>} : memref<1x64xf32, #tpu.memory_space<vmem>>, vector<1x64xf32>,
      %cst_24 = arith.constant 0.000000e+00 : f32
      %30 = vector.broadcast %cst_24 : f32 to vector<1x64xf32>
      %c0_25 = arith.constant 0 : index
      %c0_26 = arith.constant 0 : index
      %31 = vector.load %arg15[%c0_25, %c0_26] : memref<1x64xf32, #tpu.memory_space<vmem>>, vector<1x64xf32>
      tpu.vector_store %arg15[%c0_25, %c0_26], %30 {strides = array<i32>} : memref<1x64xf32, #tpu.memory_space<vmem>>, vector<1x64xf32>,
    } else {
    }
    %c0 = arith.constant 0 : index
    %c0_1 = arith.constant 0 : index
    %c0_2 = arith.constant 0 : index
    %3 = vector.load %arg2[%c0, %c0_1, %c0_2] : memref<1x16x512xbf16, #tpu.memory_space<vmem>>, vector<1x16x512xbf16>
    %4 = vector.shape_cast %3 : vector<1x16x512xbf16> to vector<16x512xbf16>
    %c0_3 = arith.constant 0 : index
    %c0_4 = arith.constant 0 : index
    %5 = vector.load %arg3[%c0_3, %c0_4] : memref<512x64xbf16, #tpu.memory_space<vmem>>, vector<512x64xbf16>
    %cst = arith.constant dense<0.000000e+00> : vector<16x64xf32>
    %6 = tpu.matmul %4, %5, %cst {dimension_numbers = #tpu.dot_dimension_numbers<[1], [0], [0], [1], [0, 0, 1, 1], [], []>} : vector<16x512xbf16>, vector<512x64xbf16>, vector<16x64xf32> -> vector<16x64xf32>
    %c0_5 = arith.constant 0 : index
    %c0_6 = arith.constant 0 : index
    %7 = vector.load %arg4[%c0_5, %c0_6] : memref<1x64xf32, #tpu.memory_space<vmem>>, vector<1x64xf32>
    %8 = vector.broadcast %7 : vector<1x64xf32> to vector<16x64xf32>
    %9 = arith.addf %6, %8 : vector<16x64xf32>
    %cst_7 = arith.constant 0.000000e+00 : f32
    %10 = vector.broadcast %cst_7 : f32 to vector<16x64xf32>
    %11 = arith.cmpf ogt, %9, %10 : vector<16x64xf32>
    %cst_8 = arith.constant 2.000000e-01 : f32
    %12 = vector.broadcast %cst_8 : f32 to vector<16x64xf32>
    %13 = arith.mulf %12, %9 : vector<16x64xf32>
    %14 = arith.select %11, %9, %13 : vector<16x64xi1>, vector<16x64xf32>
    %c0_9 = arith.constant 0 : index
    %c0_10 = arith.constant 0 : index
    %15 = vector.load %arg14[%c0_9, %c0_10] : memref<1x64xf32, #tpu.memory_space<vmem>>, vector<1x64xf32>
    %cst_11 = arith.constant dense<0xFF800000> : vector<64xf32>
    %16 = vector.multi_reduction <maximumf>, %14, %cst_11 [0] : vector<16x64xf32> to vector<64xf32>
    %17 = vector.shape_cast %16 : vector<64xf32> to vector<1x64xf32>
    %18 = arith.maximumf %15, %17 : vector<1x64xf32>
    %c0_12 = arith.constant 0 : index
    %c0_13 = arith.constant 0 : index
    %19 = vector.load %arg14[%c0_12, %c0_13] : memref<1x64xf32, #tpu.memory_space<vmem>>, vector<1x64xf32>
    tpu.vector_store %arg14[%c0_12, %c0_13], %18 {strides = array<i32>} : memref<1x64xf32, #tpu.memory_space<vmem>>, vector<1x64xf32>,
    %c0_14 = arith.constant 0 : index
    %c0_15 = arith.constant 0 : index
    %20 = vector.load %arg15[%c0_14, %c0_15] : memref<1x64xf32, #tpu.memory_space<vmem>>, vector<1x64xf32>
    %cst_16 = arith.constant dense<0.000000e+00> : vector<64xf32>
    %21 = vector.multi_reduction <add>, %14, %cst_16 [0] : vector<16x64xf32> to vector<64xf32>
    %22 = vector.shape_cast %21 : vector<64xf32> to vector<1x64xf32>
    %23 = arith.addf %20, %22 : vector<1x64xf32>
    %c0_17 = arith.constant 0 : index
    %c0_18 = arith.constant 0 : index
    %24 = vector.load %arg15[%c0_17, %c0_18] : memref<1x64xf32, #tpu.memory_space<vmem>>, vector<1x64xf32>
    tpu.vector_store %arg15[%c0_17, %c0_18], %23 {strides = array<i32>} : memref<1x64xf32, #tpu.memory_space<vmem>>, vector<1x64xf32>,
    %c0_i32_19 = arith.constant 0 : i32
    %25 = arith.cmpi eq, %arg1, %c0_i32_19 : i32
    %26 = arith.extui %25 : i1 to i32
    %c0_i32_20 = arith.constant 0 : i32
    %27 = arith.cmpi ne, %26, %c0_i32_20 : i32
    scf.if %27 {
      %c0_21 = arith.constant 0 : index
      %c0_22 = arith.constant 0 : index
      %28 = vector.load %arg14[%c0_21, %c0_22] : memref<1x64xf32, #tpu.memory_space<vmem>>, vector<1x64xf32>
      %c0_23 = arith.constant 0 : index
      %c0_24 = arith.constant 0 : index
      %29 = vector.load %arg15[%c0_23, %c0_24] : memref<1x64xf32, #tpu.memory_space<vmem>>, vector<1x64xf32>
      %cst_25 = arith.constant 6.250000e-02 : f32
      %30 = vector.broadcast %cst_25 : f32 to vector<1x64xf32>
      %31 = arith.mulf %29, %30 : vector<1x64xf32>
      %c0_26 = arith.constant 0 : index
      %c0_27 = arith.constant 0 : index
      %c0_28 = arith.constant 0 : index
      %32 = vector.load %arg12[%c0_26, %c0_27, %c0_28] : memref<1x1x128xf32, #tpu.memory_space<vmem>>, vector<1x1x64xf32>
      %33 = vector.shape_cast %32 : vector<1x1x64xf32> to vector<1x64xf32>
      %34 = vector.shape_cast %28 : vector<1x64xf32> to vector<1x1x64xf32>
      tpu.vector_store %arg12[%c0_26, %c0_27, %c0_28], %34 {strides = array<i32>} : memref<1x1x128xf32, #tpu.memory_space<vmem>>, vector<1x1x64xf32>,
      %c0_29 = arith.constant 0 : index
      %c0_30 = arith.constant 0 : index
      %c64 = arith.constant 64 : index
      %35 = vector.load %arg12[%c0_29, %c0_30, %c64] : memref<1x1x128xf32, #tpu.memory_space<vmem>>, vector<1x1x64xf32>
      %36 = vector.shape_cast %35 : vector<1x1x64xf32> to vector<1x64xf32>
      %37 = vector.shape_cast %31 : vector<1x64xf32> to vector<1x1x64xf32>
      tpu.vector_store %arg12[%c0_29, %c0_30, %c64], %37 {strides = array<i32>} : memref<1x1x128xf32, #tpu.memory_space<vmem>>, vector<1x1x64xf32>,
      %c0_31 = arith.constant 0 : index
      %c0_32 = arith.constant 0 : index
      %38 = vector.load %arg5[%c0_31, %c0_32] : memref<64x64xf32, #tpu.memory_space<vmem>>, vector<64x64xf32>
      %cst_33 = arith.constant dense<0.000000e+00> : vector<1x64xf32>
      %39 = tpu.matmul %28, %38, %cst_33 {dimension_numbers = #tpu.dot_dimension_numbers<[1], [0], [0], [1], [0, 0, 1, 1], [], []>} : vector<1x64xf32>, vector<64x64xf32>, vector<1x64xf32> -> vector<1x64xf32>
      %c0_34 = arith.constant 0 : index
      %c0_35 = arith.constant 0 : index
      %40 = vector.load %arg6[%c0_34, %c0_35] : memref<64x64xf32, #tpu.memory_space<vmem>>, vector<64x64xf32>
      %cst_36 = arith.constant dense<0.000000e+00> : vector<1x64xf32>
      %41 = tpu.matmul %31, %40, %cst_36 {dimension_numbers = #tpu.dot_dimension_numbers<[1], [0], [0], [1], [0, 0, 1, 1], [], []>} : vector<1x64xf32>, vector<64x64xf32>, vector<1x64xf32> -> vector<1x64xf32>
      %42 = arith.addf %39, %41 : vector<1x64xf32>
      %c0_37 = arith.constant 0 : index
      %c0_38 = arith.constant 0 : index
      %43 = vector.load %arg7[%c0_37, %c0_38] : memref<1x64xf32, #tpu.memory_space<vmem>>, vector<1x64xf32>
      %44 = arith.addf %42, %43 : vector<1x64xf32>
      %c0_39 = arith.constant 0 : index
      %c0_40 = arith.constant 0 : index
      %45 = vector.load %arg8[%c0_39, %c0_40] : memref<1x64xf32, #tpu.memory_space<vmem>>, vector<1x64xf32>
      %46 = arith.mulf %44, %45 : vector<1x64xf32>
      %c0_41 = arith.constant 0 : index
      %c0_42 = arith.constant 0 : index
      %47 = vector.load %arg9[%c0_41, %c0_42] : memref<1x64xf32, #tpu.memory_space<vmem>>, vector<1x64xf32>
      %48 = arith.addf %46, %47 : vector<1x64xf32>
      %cst_43 = arith.constant 0.000000e+00 : f32
      %49 = vector.broadcast %cst_43 : f32 to vector<1x64xf32>
      %50 = arith.maximumf %48, %49 : vector<1x64xf32>
      %c0_44 = arith.constant 0 : index
      %c0_45 = arith.constant 0 : index
      %51 = vector.load %arg10[%c0_44, %c0_45] : memref<64x512xf32, #tpu.memory_space<vmem>>, vector<64x512xf32>
      %cst_46 = arith.constant dense<0.000000e+00> : vector<1x512xf32>
      %52 = tpu.matmul %50, %51, %cst_46 {dimension_numbers = #tpu.dot_dimension_numbers<[1], [0], [0], [1], [0, 0, 1, 1], [], []>} : vector<1x64xf32>, vector<64x512xf32>, vector<1x512xf32> -> vector<1x512xf32>
      %c0_47 = arith.constant 0 : index
      %c0_48 = arith.constant 0 : index
      %53 = vector.load %arg11[%c0_47, %c0_48] : memref<1x512xf32, #tpu.memory_space<vmem>>, vector<1x512xf32>
      %54 = arith.addf %52, %53 : vector<1x512xf32>
      %c0_49 = arith.constant 0 : index
      %c0_50 = arith.constant 0 : index
      %c0_51 = arith.constant 0 : index
      %55 = vector.load %arg13[%c0_49, %c0_50, %c0_51] : memref<1x1x512xf32, #tpu.memory_space<vmem>>, vector<1x1x512xf32>
      %56 = vector.shape_cast %55 : vector<1x1x512xf32> to vector<1x512xf32>
      %57 = vector.shape_cast %54 : vector<1x512xf32> to vector<1x1x512xf32>
      tpu.vector_store %arg13[%c0_49, %c0_50, %c0_51], %57 {strides = array<i32>} : memref<1x1x512xf32, #tpu.memory_space<vmem>>, vector<1x1x512xf32>,
    } else {
    }
    return
  }
  func.func @transform_0(%arg0: i32, %arg1: i32) -> (i32, i32, i32) {
    %c0_i32 = arith.constant 0 : i32
    %c0_i32_0 = arith.constant 0 : i32
    return %arg0, %arg1, %c0_i32 : i32, i32, i32
  }
  func.func @transform_1(%arg0: i32, %arg1: i32) -> (i32, i32) {
    %c0_i32 = arith.constant 0 : i32
    %c0_i32_0 = arith.constant 0 : i32
    %c0_i32_1 = arith.constant 0 : i32
    return %c0_i32, %c0_i32_0 : i32, i32
  }
  func.func @transform_2(%arg0: i32, %arg1: i32) -> (i32, i32) {
    %c0_i32 = arith.constant 0 : i32
    %c0_i32_0 = arith.constant 0 : i32
    %c0_i32_1 = arith.constant 0 : i32
    return %c0_i32, %c0_i32_0 : i32, i32
  }
  func.func @transform_3(%arg0: i32, %arg1: i32) -> (i32, i32) {
    %c0_i32 = arith.constant 0 : i32
    %c0_i32_0 = arith.constant 0 : i32
    %c0_i32_1 = arith.constant 0 : i32
    return %c0_i32, %c0_i32_0 : i32, i32
  }
  func.func @transform_4(%arg0: i32, %arg1: i32) -> (i32, i32) {
    %c0_i32 = arith.constant 0 : i32
    %c0_i32_0 = arith.constant 0 : i32
    %c0_i32_1 = arith.constant 0 : i32
    return %c0_i32, %c0_i32_0 : i32, i32
  }
  func.func @transform_5(%arg0: i32, %arg1: i32) -> (i32, i32) {
    %c0_i32 = arith.constant 0 : i32
    %c0_i32_0 = arith.constant 0 : i32
    %c0_i32_1 = arith.constant 0 : i32
    return %c0_i32, %c0_i32_0 : i32, i32
  }
  func.func @transform_6(%arg0: i32, %arg1: i32) -> (i32, i32) {
    %c0_i32 = arith.constant 0 : i32
    %c0_i32_0 = arith.constant 0 : i32
    %c0_i32_1 = arith.constant 0 : i32
    return %c0_i32, %c0_i32_0 : i32, i32
  }
  func.func @transform_7(%arg0: i32, %arg1: i32) -> (i32, i32) {
    %c0_i32 = arith.constant 0 : i32
    %c0_i32_0 = arith.constant 0 : i32
    %c0_i32_1 = arith.constant 0 : i32
    return %c0_i32, %c0_i32_0 : i32, i32
  }
  func.func @transform_8(%arg0: i32, %arg1: i32) -> (i32, i32) {
    %c0_i32 = arith.constant 0 : i32
    %c0_i32_0 = arith.constant 0 : i32
    %c0_i32_1 = arith.constant 0 : i32
    return %c0_i32, %c0_i32_0 : i32, i32
  }
  func.func @transform_9(%arg0: i32, %arg1: i32) -> (i32, i32) {
    %c0_i32 = arith.constant 0 : i32
    %c0_i32_0 = arith.constant 0 : i32
    %c0_i32_1 = arith.constant 0 : i32
    return %c0_i32, %c0_i32_0 : i32, i32
  }
  func.func @transform_10(%arg0: i32, %arg1: i32) -> (i32, i32, i32) {
    %c0_i32 = arith.constant 0 : i32
    %c0_i32_0 = arith.constant 0 : i32
    %c0_i32_1 = arith.constant 0 : i32
    return %arg0, %c0_i32, %c0_i32_0 : i32, i32, i32
  }
  func.func @transform_11(%arg0: i32, %arg1: i32) -> (i32, i32, i32) {
    %c0_i32 = arith.constant 0 : i32
    %c0_i32_0 = arith.constant 0 : i32
    %c0_i32_1 = arith.constant 0 : i32
    return %arg0, %c0_i32, %c0_i32_0 : i32, i32, i32
  }
}

</mosaic_0001>

<llo_original>
// kernel: _lambda_.11
$region0: #{_lambda_.11}
  #allocation0 [shape = 'u32[]', space=smem, size = 0x4, offset = 0x4, fixed_abs, tag = 'smem constant byte address 0x4 - core index']
  #allocation1 [shape = 'u32[144,128]{1,0:T(1,128)}', space=vmem, size = 0x12000, scoped, tag = 'internal scratch']
  %s0 = inlined_call_operand.vmem [shape: bf16[2,16,64], index: 0, kind: input, shape index: {}, may-alias: {0,1}]
  %s1 = inlined_call_operand.vmem [shape: bf16[2,16,64], index: 1, kind: input, shape index: {}, may-alias: {0,1}]
  %s2 = inlined_call_operand.vmem [shape: f32[2,1,16], index: 2, kind: input, shape index: {}]
  %s3 = inlined_call_operand.vmem [shape: f32[2,16,16], index: 3, kind: output, shape index: {}]
  %s4 = sld [smem:[#allocation0]]
  $region45: #{_lambda_.11} parent=0
    _
  %s6 = ssub.s32 1, %s4
  %s7 = scalar_select 0, %s6, %s4
  loop: start=0, step=1, limit=4
  $region2: #{_lambda_.11} parent=0 // loop_pre_header
    _
  $region3: #{_lambda_.11} parent=0 // loop_header
    %s9 = sphi 0, %s13
    %p10 = scmp.ge.s32.totalorder %s9, 4
    %s16 = sphi 0, %s28
    %s17 = sphi 0, %s24
    %s18 = sphi 0, %s16
    %s19 = sphi 0, %s17
    %s20 = sphi 0, %s18
    %s21 = sphi 0, %s19
    %s33 = sphi 0, %s35
    %s36 = sphi 0, %s33
    %s37 = sphi 0, %s36
    %s53 = sphi 0, %s37
    %s59 = sphi 0, %s61
    %s62 = sphi 0, %s59
    %s63 = sphi 0, %s62
    %s79 = sphi 0, %s63
    %s85 = sphi 0, %s87
    %s88 = sphi 0, %s85
    %s89 = sphi 0, %s88
    %s105 = sphi 0, %s89
    %s113 = sphi 0, %s115
    %s116 = sphi 0, %s113
    %s117 = sphi 0, %s116
    %s133 = sphi 0, %s117
  $region4: #{_lambda_.11} parent=0 // loop_header_branch
    %12 = sbr.rel (%p10) target = $region8
  $region5: #{_lambda_.11} parent=0 // loop_body
    %s14 = ssub.s32 %s9, 1
    %s15 = ssub.s32 %s9, 2
    %s22 = sadd.s32 1, %s17
    %p23 = scmp.ge.s32.totalorder %s22, 1
    %s24 = scalar_select %p23, 0, %s22
    %s25 = sadd.s32 1, %s16
    %s26 = scalar_select %p23, %s25, %s16
    %p27 = scmp.ge.s32.totalorder %s26, 2
    %s28 = scalar_select %p27, 0, %s26
    %s29 = ssub.s32 %s16, %s28
    %s30 = ssub.s32 %s17, %s24
    %s31 = sor.u32 %s29, %s30
    %p32 = scmp.eq.s32.totalorder %s31, 0
    %s34 = sadd.s32 %s33, 1
    %s35 = scalar_select %p32, %s33, %s34
    %p38 = pneg %p32
    %p39 = scmp.eq.s32.totalorder %s9, 1
    %p40 = por %p38, %p39
    %p41 = scmp.ne.s32.totalorder %s33, %s36
    %p42 = scmp.eq.s32.totalorder %s9, 0
    %p43 = por %p41, %p42
    %p44 = scmp.ne.s32.totalorder %s33, %s36
    %p45 = scmp.eq.s32.totalorder %s14, 1
    %p46 = por %p44, %p45
    %p47 = scmp.ne.s32.totalorder %s36, %s37
    %p48 = scmp.eq.s32.totalorder %s14, 0
    %p49 = por %p47, %p48
    %p50 = scmp.ne.s32.totalorder %s36, %s37
    %p51 = scmp.eq.s32.totalorder %s15, 1
    %p52 = por %p50, %p51
    %p54 = scmp.ne.s32.totalorder %s37, %s53
    %p55 = scmp.eq.s32.totalorder %s15, 0
    %p56 = por %p54, %p55
    %s57 = ssub.s32 %s16, %s28
    %p58 = scmp.eq.s32.totalorder %s57, 0
    %s60 = sadd.s32 %s59, 1
    %s61 = scalar_select %p58, %s59, %s60
    %p64 = pneg %p58
    %p65 = scmp.eq.s32.totalorder %s9, 1
    %p66 = por %p64, %p65
    %p67 = scmp.ne.s32.totalorder %s59, %s62
    %p68 = scmp.eq.s32.totalorder %s9, 0
    %p69 = por %p67, %p68
    %p70 = scmp.ne.s32.totalorder %s59, %s62
    %p71 = scmp.eq.s32.totalorder %s14, 1
    %p72 = por %p70, %p71
    %p73 = scmp.ne.s32.totalorder %s62, %s63
    %p74 = scmp.eq.s32.totalorder %s14, 0
    %p75 = por %p73, %p74
    %p76 = scmp.ne.s32.totalorder %s62, %s63
    %p77 = scmp.eq.s32.totalorder %s15, 1
    %p78 = por %p76, %p77
    %p80 = scmp.ne.s32.totalorder %s63, %s79
    %p81 = scmp.eq.s32.totalorder %s15, 0
    %p82 = por %p80, %p81
    %s83 = ssub.s32 %s16, %s28
    %p84 = scmp.eq.s32.totalorder %s83, 0
    %s86 = sadd.s32 %s85, 1
    %s87 = scalar_select %p84, %s85, %s86
    %p90 = pneg %p84
    %p91 = scmp.eq.s32.totalorder %s9, 1
    %p92 = por %p90, %p91
    %p93 = scmp.ne.s32.totalorder %s85, %s88
    %p94 = scmp.eq.s32.totalorder %s9, 0
    %p95 = por %p93, %p94
    %p96 = scmp.ne.s32.totalorder %s85, %s88
    %p97 = scmp.eq.s32.totalorder %s14, 1
    %p98 = por %p96, %p97
    %p99 = scmp.ne.s32.totalorder %s88, %s89
    %p100 = scmp.eq.s32.totalorder %s14, 0
    %p101 = por %p99, %p100
    %p102 = scmp.ne.s32.totalorder %s88, %s89
    %p103 = scmp.eq.s32.totalorder %s15, 1
    %p104 = por %p102, %p103
    %p106 = scmp.ne.s32.totalorder %s89, %s105
    %p107 = scmp.eq.s32.totalorder %s15, 0
    %p108 = por %p106, %p107
    %s109 = ssub.s32 %s16, %s28
    %s110 = ssub.s32 %s17, %s24
    %s111 = sor.u32 %s109, %s110
    %p112 = scmp.eq.s32.totalorder %s111, 0
    %s114 = sadd.s32 %s113, 1
    %s115 = scalar_select %p112, %s113, %s114
    %p118 = pneg %p112
    %p119 = scmp.eq.s32.totalorder %s9, 1
    %p120 = por %p118, %p119
    %p121 = scmp.ne.s32.totalorder %s113, %s116
    %p122 = scmp.eq.s32.totalorder %s9, 0
    %p123 = por %p121, %p122
    %p124 = scmp.ne.s32.totalorder %s113, %s116
    %p125 = scmp.eq.s32.totalorder %s14, 1
    %p126 = por %p124, %p125
    %p127 = scmp.ne.s32.totalorder %s116, %s117
    %p128 = scmp.eq.s32.totalorder %s14, 0
    %p129 = por %p127, %p128
    %p130 = scmp.ne.s32.totalorder %s116, %s117
    %p131 = scmp.eq.s32.totalorder %s15, 1
    %p132 = por %p130, %p131
    %p134 = scmp.ne.s32.totalorder %s117, %s133
    %p135 = scmp.eq.s32.totalorder %s15, 0
    %p136 = por %p134, %p135
    %p137 = scmp.le.s32.totalorder 1, %s9
    %p138 = scmp.lt.s32.totalorder %s9, 3
    %p139 = pnand %p137, %p138
    %p140 = pneg %p139
    // Predicated region
    $region9: #{_lambda_.11} parent=5 // pred_check
      _
    $region10: #{_lambda_.11} parent=5 // pred_check_branch
      %142 = sbr.rel (%p139) target = $region12
    $region11: #{_lambda_.11} parent=5 // pred_region
      %s143 = ssub.s32 %s9, 1
    $region12: #{_lambda_.11} parent=5 // pred_fallthru
      _
    %p144 = scmp.lt.s32.totalorder %s9, 2
    // Predicated region
    $region13: #{_lambda_.11} parent=5 // pred_check
      %p145 = pneg %p144
    $region14: #{_lambda_.11} parent=5 // pred_check_branch
      %147 = sbr.rel (%p145) target = $region16
    $region15: #{_lambda_.11} parent=5 // pred_region
      // Predicated region
      $region17: #{_lambda_.11} parent=15 // pred_check
        %p148 = pneg %p43
      $region18: #{_lambda_.11} parent=15 // pred_check_branch
        %150 = sbr.rel (%p148) target = $region20
      $region19: #{_lambda_.11} parent=15 // pred_region
        %s151 = smul.u32 2, %s17
        %p152 = scmp.lt.s32.totalorder %s16, 1
        %s153 = scalar_select %p152, %s16, 1
        %p154 = scmp.lt.s32.totalorder %s151, 1
        %s155 = scalar_select %p154, %s151, 1
        %s156 = smul.addr %s153, 2
        %s157 = sadd.s32 %s155, %s156
        %s158 = smul.addr %s157, 4
        %s159 = scalar_lea.vmem %s0, %s158
        %s160 = smul.u32 2, %s17
      $region20: #{_lambda_.11} parent=15 // pred_fallthru
        _
      // Predicated region
      $region21: #{_lambda_.11} parent=15 // pred_check
        %p161 = pneg %p69
      $region22: #{_lambda_.11} parent=15 // pred_check_branch
        %163 = sbr.rel (%p161) target = $region24
      $region23: #{_lambda_.11} parent=15 // pred_region
        %p164 = scmp.lt.s32.totalorder %s16, 1
        %s165 = scalar_select %p164, %s16, 1
        %s166 = smul.addr %s165, 2
        %s167 = smul.addr %s166, 4
        %s168 = scalar_lea.vmem %s1, %s167
      $region24: #{_lambda_.11} parent=15 // pred_fallthru
        _
      // Predicated region
      $region25: #{_lambda_.11} parent=15 // pred_check
        %p169 = pneg %p95
      $region26: #{_lambda_.11} parent=15 // pred_check_branch
        %171 = sbr.rel (%p169) target = $region28
      $region27: #{_lambda_.11} parent=15 // pred_region
        %p172 = scmp.lt.s32.totalorder %s16, 1
        %s173 = scalar_select %p172, %s16, 1
        %s174 = scalar_lea.vmem %s2, %s173
      $region28: #{_lambda_.11} parent=15 // pred_fallthru
        _
    $region16: #{_lambda_.11} parent=5 // pred_fallthru
      _
    %p175 = scmp.le.s32.totalorder 1, %s9
    %p176 = scmp.lt.s32.totalorder %s9, 3
    %p177 = pnand %p175, %p176
    %p178 = pneg %p177
    // Predicated region
    $region29: #{_lambda_.11} parent=5 // pred_check
      _
    $region30: #{_lambda_.11} parent=5 // pred_check_branch
      %180 = sbr.rel (%p177) target = $region32
    $region31: #{_lambda_.11} parent=5 // pred_region
      %s181 = ssub.s32 %s9, 1
      %s182 = smul.u32 2, %s19
      %p183 = scmp.lt.s32.totalorder %s18, 1
      %s184 = scalar_select %p183, %s18, 1
      %p185 = scmp.lt.s32.totalorder %s182, 1
      %s186 = scalar_select %p185, %s182, 1
      %s187 = smul.addr %s184, 2
      %s188 = sadd.s32 %s186, %s187
      %s189 = smul.addr %s188, 4
      %s190 = scalar_lea.vmem %s0, %s189
      %p191 = pneg %p49
      %p192 = pneg %p46
      %p193 = scmp.lt.s32.totalorder %s18, 1
      %s194 = scalar_select %p193, %s18, 1
      %s195 = smul.addr %s194, 2
      %s196 = smul.addr %s195, 4
      %s197 = scalar_lea.vmem %s1, %s196
      %p198 = pneg %p75
      %p199 = pneg %p72
      %p200 = scmp.lt.s32.totalorder %s18, 1
      %s201 = scalar_select %p200, %s18, 1
      %s202 = scalar_lea.vmem %s2, %s201
      %p203 = pneg %p101
      %p204 = pneg %p98
      %p205 = pneg %p129
      %p206 = pneg %p126
      %s207 = smul.u32 2, %s19
      %p208 = scmp.lt.s32.totalorder %s18, 1
      %s209 = scalar_select %p208, %s18, 1
      %p210 = scmp.lt.s32.totalorder %s207, 1
      %s211 = scalar_select %p210, %s207, 1
      %s212 = smul.addr %s209, 2
      %s213 = sadd.s32 %s211, %s212
      %s214 = smul.addr %s213, 8
      %s215 = scalar_lea.vmem %s3, %s214
      %s216 = smul.u32 2, %s19
      %p217 = scmp.lt.s32.totalorder %s18, 1
      %s218 = scalar_select %p217, %s18, 1
      %p219 = scmp.lt.s32.totalorder %s216, 1
      %s220 = scalar_select %p219, %s216, 1
      %s221 = smul.addr %s218, 2
      %s222 = sadd.s32 %s220, %s221
      %s223 = smul.addr %s222, 4
      %s224 = scalar_lea.vmem %s0, %s223
      %s225 = smul.u32 2, %s19
      %p226 = scmp.lt.s32.totalorder %s18, 1
      %s227 = scalar_select %p226, %s18, 1
      %s228 = smul.addr %s227, 2
      %s229 = smul.addr %s228, 4
      %s230 = scalar_lea.vmem %s1, %s229
      %p231 = scmp.lt.s32.totalorder %s18, 1
      %s232 = scalar_select %p231, %s18, 1
      %s233 = scalar_lea.vmem %s2, %s232
      %s234 = smul.u32 2, %s19
      %p235 = scmp.lt.s32.totalorder %s18, 1
      %s236 = scalar_select %p235, %s18, 1
      %p237 = scmp.lt.s32.totalorder %s234, 1
      %s238 = scalar_select %p237, %s234, 1
      %s239 = smul.addr %s236, 2
      %s240 = sadd.s32 %s238, %s239
      %s241 = smul.addr %s240, 8
      %s242 = scalar_lea.vmem %s3, %s241
      %s243 = smul.u32 2, %s19
      %v245 = vld [vmem:[%s224] sm:$0xf]
      %v246 = vld [vmem:[%s224 + $0x4] sm:$0xf]
      %v247 = vld [vmem:[%s230] sm:$0xf]
      %v248 = vld [vmem:[%s230 + $0x4] sm:$0xf]
      %v251 = vunpack.c.l.b16 %v245
      %v252 = vunpack.c.l.b16 %v246
      %v253 = vpack.c.b16 %v252, %v251
      %v256 = vunpack.c.l.b16 %v247
      %v257 = vunpack.c.l.b16 %v248
      %v258 = vpack.c.b16 %v257, %v256
      %vm259 = vcmask 523264
      %v261 = vsel %vm259, %v253, 0
      %v264 = vsel %vm259, %v258, 0
      %266 = vmatprep.subr.bf16.mxu0 0
      %267 = vmatpush1.bf16.xpose.msra.mxu0 %v264
      %268 = vmatprep.subr.bf16.mxu0 0
      %269 = vmatpush1.bf16.xpose.msra.mxu0 0
      %270 = vmatprep.subr.bf16.mxu0 0
      %271 = vmatpush1.bf16.xpose.msra.mxu0 0
      %272 = vmatprep.subr.bf16.mxu0 0
      %273 = vmatpush1.bf16.xpose.msra.mxu0 0
      %274 = vmatprep.subr.bf16.mxu0 0
      %275 = vmatpush1.bf16.xpose.msra.mxu0 0
      %276 = vmatprep.subr.bf16.mxu0 0
      %277 = vmatpush1.bf16.xpose.msra.mxu0 0
      %278 = vmatprep.subr.bf16.mxu0 0
      %279 = vmatpush1.bf16.xpose.msra.mxu0 0
      %280 = vmatprep.subr.bf16.mxu0 0
      %281 = vmatpush1.bf16.xpose.msra.mxu0 0
      %282 = vmatprep.subr.bf16.mxu0 0
      %283 = vmatpush1.bf16.xpose.msra.mxu0 0
      %284 = vmatprep.subr.bf16.mxu0 0
      %285 = vmatpush1.bf16.xpose.msra.mxu0 0
      %286 = vmatprep.subr.bf16.mxu0 0
      %287 = vmatpush1.bf16.xpose.msra.mxu0 0
      %288 = vmatprep.subr.bf16.mxu0 0
      %289 = vmatpush1.bf16.xpose.msra.mxu0 0
      %290 = vmatprep.subr.bf16.mxu0 0
      %291 = vmatpush1.bf16.xpose.msra.mxu0 0
      %292 = vmatprep.subr.bf16.mxu0 0
      %293 = vmatpush1.bf16.xpose.msra.mxu0 0
      %294 = vmatprep.subr.bf16.mxu0 0
      %295 = vmatpush1.bf16.xpose.msra.mxu0 0
      %296 = vmatprep.subr.bf16.mxu0 0
      %297 = vmatpush1.bf16.xpose.msra.mxu0 0
      %298 = vmatprep.mubr.bf16.mxu0 0
      %299 = vmatmul.mubr.bf16.gmra.mrb[0].mxu0 %v261
      %v300 = vpop.f32.mrb[0].mxu0
      %v301 = vadd.f32 0.0, %v300
      %v302 = vpop.f32.mrb[0].mxu0
      %v303 = vpop.f32.mrb[0].mxu0
      %v304 = vadd.f32 0.0, %v303
      %v305 = vpop.f32.mrb[0].mxu0
      %306 = vdwg.mxu0
      %v307 = vunpack.c.l.bf16 %v245
      %v308 = vunpack.c.l.bf16 %v246
      %v309 = vmul.f32 %v307, %v307
      %v310 = vmul.f32 %v308, %v308
      %v311 = vsel %vm259, %v309, 0.0
      %312 = vadd.xlane.f32.xlu0 %v311
      %v313 = vpop.xlane.xlu0 %312
      %v314 = vsel %vm259, %v310, 0.0
      %315 = vadd.xlane.f32.xlu0 %v314
      %v316 = vpop.xlane.xlu0 %315
      %v317 = vmul.f32 %v301, 2.0
      %v318 = vmul.f32 %v304, 2.0
      %v319 = vsub.f32 %v317, %v313
      %v320 = vsub.f32 %v318, %v316
      %v321 = vld [vmem:[%s233] sm:$0x1]
      %v323 = vlaneseq
      %v324 = vshrl.u32 %v323, 7
      %v325 = vsub.s32 0, %v324
      %v326 = vrot.slane %v321, %v325
      %v328 = vsub.f32 %v319, %v326
      %v329 = vsub.f32 %v320, %v326
      %vm330 = vcmask 130048
      %331 = vst.msk [vmem:[%s242] sm:$0xff] %vm330, %v328
      %332 = vst.msk [vmem:[%s242 + $0x8] sm:$0xff] %vm330, %v329
      %s333 = smul.u32 2, %s19
      %p334 = scmp.lt.s32.totalorder %s18, 1
      %s335 = scalar_select %p334, %s18, 1
      %p336 = scmp.lt.s32.totalorder %s333, 1
      %s337 = scalar_select %p336, %s333, 1
      %s338 = smul.addr %s335, 2
      %s339 = sadd.s32 %s337, %s338
      %s340 = smul.addr %s339, 8
      %s341 = scalar_lea.vmem %s3, %s340
      // Predicated region
      $region33: #{_lambda_.11} parent=31 // pred_check
        %p342 = pneg %p126
      $region34: #{_lambda_.11} parent=31 // pred_check_branch
        %344 = sbr.rel (%p342) target = $region36
      $region35: #{_lambda_.11} parent=31 // pred_region
        %s345 = smul.u32 2, %s19
      $region36: #{_lambda_.11} parent=31 // pred_fallthru
        _
    $region32: #{_lambda_.11} parent=5 // pred_fallthru
      _
    %p346 = scmp.le.s32.totalorder 2, %s9
    // Predicated region
    $region37: #{_lambda_.11} parent=5 // pred_check
      %p347 = pneg %p346
    $region38: #{_lambda_.11} parent=5 // pred_check_branch
      %349 = sbr.rel (%p347) target = $region40
    $region39: #{_lambda_.11} parent=5 // pred_region
      %s350 = ssub.s32 %s9, 2
      // Predicated region
      $region41: #{_lambda_.11} parent=39 // pred_check
        %p351 = pneg %p132
      $region42: #{_lambda_.11} parent=39 // pred_check_branch
        %353 = sbr.rel (%p351) target = $region44
      $region43: #{_lambda_.11} parent=39 // pred_region
        %s354 = smul.u32 2, %s21
        %p355 = scmp.lt.s32.totalorder %s20, 1
        %s356 = scalar_select %p355, %s20, 1
        %p357 = scmp.lt.s32.totalorder %s354, 1
        %s358 = scalar_select %p357, %s354, 1
        %s359 = smul.addr %s356, 2
        %s360 = sadd.s32 %s358, %s359
        %s361 = smul.addr %s360, 8
        %s362 = scalar_lea.vmem %s3, %s361
      $region44: #{_lambda_.11} parent=39 // pred_fallthru
        _
    $region40: #{_lambda_.11} parent=5 // pred_fallthru
      _
  $region6: #{_lambda_.11} parent=0 // loop_footer
    %s13 = sadd.s32 1, %s9
  $region7: #{_lambda_.11} parent=0 // loop_footer_branch
    %8 = sbr.rel target = $region3
  $region8: #{_lambda_.11} parent=0 // loop_exit
    _

// kernel: _lambda_.9
$region0: #{_lambda_.9}
  #allocation0 [shape = 'u32[]', space=smem, size = 0x4, offset = 0x4, fixed_abs, tag = 'smem constant byte address 0x4 - core index']
  #allocation1 [shape = 'u32[144,128]{1,0:T(1,128)}', space=vmem, size = 0x12000, scoped, tag = 'internal scratch']
  %s0 = inlined_call_operand.vmem [shape: f32[2,16,3], index: 0, kind: input, shape index: {}, may-alias: {0,1}]
  %s1 = inlined_call_operand.vmem [shape: f32[2,16,3], index: 1, kind: input, shape index: {}, may-alias: {0,1}]
  %s2 = inlined_call_operand.vmem [shape: f32[2,1,16], index: 2, kind: input, shape index: {}]
  %s3 = inlined_call_operand.vmem [shape: f32[2,16,16], index: 3, kind: output, shape index: {}]
  %s4 = sld [smem:[#allocation0]]
  $region45: #{_lambda_.9} parent=0
    _
  %s6 = ssub.s32 1, %s4
  %s7 = scalar_select 0, %s6, %s4
  loop: start=0, step=1, limit=4
  $region2: #{_lambda_.9} parent=0 // loop_pre_header
    _
  $region3: #{_lambda_.9} parent=0 // loop_header
    %s9 = sphi 0, %s13
    %p10 = scmp.ge.s32.totalorder %s9, 4
    %s16 = sphi 0, %s28
    %s17 = sphi 0, %s24
    %s18 = sphi 0, %s16
    %s19 = sphi 0, %s17
    %s20 = sphi 0, %s18
    %s21 = sphi 0, %s19
    %s33 = sphi 0, %s35
    %s36 = sphi 0, %s33
    %s37 = sphi 0, %s36
    %s53 = sphi 0, %s37
    %s59 = sphi 0, %s61
    %s62 = sphi 0, %s59
    %s63 = sphi 0, %s62
    %s79 = sphi 0, %s63
    %s85 = sphi 0, %s87
    %s88 = sphi 0, %s85
    %s89 = sphi 0, %s88
    %s105 = sphi 0, %s89
    %s113 = sphi 0, %s115
    %s116 = sphi 0, %s113
    %s117 = sphi 0, %s116
    %s133 = sphi 0, %s117
  $region4: #{_lambda_.9} parent=0 // loop_header_branch
    %12 = sbr.rel (%p10) target = $region8
  $region5: #{_lambda_.9} parent=0 // loop_body
    %s14 = ssub.s32 %s9, 1
    %s15 = ssub.s32 %s9, 2
    %s22 = sadd.s32 1, %s17
    %p23 = scmp.ge.s32.totalorder %s22, 1
    %s24 = scalar_select %p23, 0, %s22
    %s25 = sadd.s32 1, %s16
    %s26 = scalar_select %p23, %s25, %s16
    %p27 = scmp.ge.s32.totalorder %s26, 2
    %s28 = scalar_select %p27, 0, %s26
    %s29 = ssub.s32 %s16, %s28
    %s30 = ssub.s32 %s17, %s24
    %s31 = sor.u32 %s29, %s30
    %p32 = scmp.eq.s32.totalorder %s31, 0
    %s34 = sadd.s32 %s33, 1
    %s35 = scalar_select %p32, %s33, %s34
    %p38 = pneg %p32
    %p39 = scmp.eq.s32.totalorder %s9, 1
    %p40 = por %p38, %p39
    %p41 = scmp.ne.s32.totalorder %s33, %s36
    %p42 = scmp.eq.s32.totalorder %s9, 0
    %p43 = por %p41, %p42
    %p44 = scmp.ne.s32.totalorder %s33, %s36
    %p45 = scmp.eq.s32.totalorder %s14, 1
    %p46 = por %p44, %p45
    %p47 = scmp.ne.s32.totalorder %s36, %s37
    %p48 = scmp.eq.s32.totalorder %s14, 0
    %p49 = por %p47, %p48
    %p50 = scmp.ne.s32.totalorder %s36, %s37
    %p51 = scmp.eq.s32.totalorder %s15, 1
    %p52 = por %p50, %p51
    %p54 = scmp.ne.s32.totalorder %s37, %s53
    %p55 = scmp.eq.s32.totalorder %s15, 0
    %p56 = por %p54, %p55
    %s57 = ssub.s32 %s16, %s28
    %p58 = scmp.eq.s32.totalorder %s57, 0
    %s60 = sadd.s32 %s59, 1
    %s61 = scalar_select %p58, %s59, %s60
    %p64 = pneg %p58
    %p65 = scmp.eq.s32.totalorder %s9, 1
    %p66 = por %p64, %p65
    %p67 = scmp.ne.s32.totalorder %s59, %s62
    %p68 = scmp.eq.s32.totalorder %s9, 0
    %p69 = por %p67, %p68
    %p70 = scmp.ne.s32.totalorder %s59, %s62
    %p71 = scmp.eq.s32.totalorder %s14, 1
    %p72 = por %p70, %p71
    %p73 = scmp.ne.s32.totalorder %s62, %s63
    %p74 = scmp.eq.s32.totalorder %s14, 0
    %p75 = por %p73, %p74
    %p76 = scmp.ne.s32.totalorder %s62, %s63
    %p77 = scmp.eq.s32.totalorder %s15, 1
    %p78 = por %p76, %p77
    %p80 = scmp.ne.s32.totalorder %s63, %s79
    %p81 = scmp.eq.s32.totalorder %s15, 0
    %p82 = por %p80, %p81
    %s83 = ssub.s32 %s16, %s28
    %p84 = scmp.eq.s32.totalorder %s83, 0
    %s86 = sadd.s32 %s85, 1
    %s87 = scalar_select %p84, %s85, %s86
    %p90 = pneg %p84
    %p91 = scmp.eq.s32.totalorder %s9, 1
    %p92 = por %p90, %p91
    %p93 = scmp.ne.s32.totalorder %s85, %s88
    %p94 = scmp.eq.s32.totalorder %s9, 0
    %p95 = por %p93, %p94
    %p96 = scmp.ne.s32.totalorder %s85, %s88
    %p97 = scmp.eq.s32.totalorder %s14, 1
    %p98 = por %p96, %p97
    %p99 = scmp.ne.s32.totalorder %s88, %s89
    %p100 = scmp.eq.s32.totalorder %s14, 0
    %p101 = por %p99, %p100
    %p102 = scmp.ne.s32.totalorder %s88, %s89
    %p103 = scmp.eq.s32.totalorder %s15, 1
    %p104 = por %p102, %p103
    %p106 = scmp.ne.s32.totalorder %s89, %s105
    %p107 = scmp.eq.s32.totalorder %s15, 0
    %p108 = por %p106, %p107
    %s109 = ssub.s32 %s16, %s28
    %s110 = ssub.s32 %s17, %s24
    %s111 = sor.u32 %s109, %s110
    %p112 = scmp.eq.s32.totalorder %s111, 0
    %s114 = sadd.s32 %s113, 1
    %s115 = scalar_select %p112, %s113, %s114
    %p118 = pneg %p112
    %p119 = scmp.eq.s32.totalorder %s9, 1
    %p120 = por %p118, %p119
    %p121 = scmp.ne.s32.totalorder %s113, %s116
    %p122 = scmp.eq.s32.totalorder %s9, 0
    %p123 = por %p121, %p122
    %p124 = scmp.ne.s32.totalorder %s113, %s116
    %p125 = scmp.eq.s32.totalorder %s14, 1
    %p126 = por %p124, %p125
    %p127 = scmp.ne.s32.totalorder %s116, %s117
    %p128 = scmp.eq.s32.totalorder %s14, 0
    %p129 = por %p127, %p128
    %p130 = scmp.ne.s32.totalorder %s116, %s117
    %p131 = scmp.eq.s32.totalorder %s15, 1
    %p132 = por %p130, %p131
    %p134 = scmp.ne.s32.totalorder %s117, %s133
    %p135 = scmp.eq.s32.totalorder %s15, 0
    %p136 = por %p134, %p135
    %p137 = scmp.le.s32.totalorder 1, %s9
    %p138 = scmp.lt.s32.totalorder %s9, 3
    %p139 = pnand %p137, %p138
    %p140 = pneg %p139
    // Predicated region
    $region9: #{_lambda_.9} parent=5 // pred_check
      _
    $region10: #{_lambda_.9} parent=5 // pred_check_branch
      %142 = sbr.rel (%p139) target = $region12
    $region11: #{_lambda_.9} parent=5 // pred_region
      %s143 = ssub.s32 %s9, 1
    $region12: #{_lambda_.9} parent=5 // pred_fallthru
      _
    %p144 = scmp.lt.s32.totalorder %s9, 2
    // Predicated region
    $region13: #{_lambda_.9} parent=5 // pred_check
      %p145 = pneg %p144
    $region14: #{_lambda_.9} parent=5 // pred_check_branch
      %147 = sbr.rel (%p145) target = $region16
    $region15: #{_lambda_.9} parent=5 // pred_region
      // Predicated region
      $region17: #{_lambda_.9} parent=15 // pred_check
        %p148 = pneg %p43
      $region18: #{_lambda_.9} parent=15 // pred_check_branch
        %150 = sbr.rel (%p148) target = $region20
      $region19: #{_lambda_.9} parent=15 // pred_region
        %s151 = smul.u32 2, %s17
        %p152 = scmp.lt.s32.totalorder %s16, 1
        %s153 = scalar_select %p152, %s16, 1
        %p154 = scmp.lt.s32.totalorder %s151, 1
        %s155 = scalar_select %p154, %s151, 1
        %s156 = smul.addr %s153, 2
        %s157 = sadd.s32 %s155, %s156
        %s158 = smul.addr %s157, 8
        %s159 = scalar_lea.vmem %s0, %s158
        %s160 = smul.u32 2, %s17
      $region20: #{_lambda_.9} parent=15 // pred_fallthru
        _
      // Predicated region
      $region21: #{_lambda_.9} parent=15 // pred_check
        %p161 = pneg %p69
      $region22: #{_lambda_.9} parent=15 // pred_check_branch
        %163 = sbr.rel (%p161) target = $region24
      $region23: #{_lambda_.9} parent=15 // pred_region
        %p164 = scmp.lt.s32.totalorder %s16, 1
        %s165 = scalar_select %p164, %s16, 1
        %s166 = smul.addr %s165, 2
        %s167 = smul.addr %s166, 8
        %s168 = scalar_lea.vmem %s1, %s167
      $region24: #{_lambda_.9} parent=15 // pred_fallthru
        _
      // Predicated region
      $region25: #{_lambda_.9} parent=15 // pred_check
        %p169 = pneg %p95
      $region26: #{_lambda_.9} parent=15 // pred_check_branch
        %171 = sbr.rel (%p169) target = $region28
      $region27: #{_lambda_.9} parent=15 // pred_region
        %p172 = scmp.lt.s32.totalorder %s16, 1
        %s173 = scalar_select %p172, %s16, 1
        %s174 = scalar_lea.vmem %s2, %s173
      $region28: #{_lambda_.9} parent=15 // pred_fallthru
        _
    $region16: #{_lambda_.9} parent=5 // pred_fallthru
      _
    %p175 = scmp.le.s32.totalorder 1, %s9
    %p176 = scmp.lt.s32.totalorder %s9, 3
    %p177 = pnand %p175, %p176
    %p178 = pneg %p177
    // Predicated region
    $region29: #{_lambda_.9} parent=5 // pred_check
      _
    $region30: #{_lambda_.9} parent=5 // pred_check_branch
      %180 = sbr.rel (%p177) target = $region32
    $region31: #{_lambda_.9} parent=5 // pred_region
      %s181 = ssub.s32 %s9, 1
      %s182 = smul.u32 2, %s19
      %p183 = scmp.lt.s32.totalorder %s18, 1
      %s184 = scalar_select %p183, %s18, 1
      %p185 = scmp.lt.s32.totalorder %s182, 1
      %s186 = scalar_select %p185, %s182, 1
      %s187 = smul.addr %s184, 2
      %s188 = sadd.s32 %s186, %s187
      %s189 = smul.addr %s188, 8
      %s190 = scalar_lea.vmem %s0, %s189
      %p191 = pneg %p49
      %p192 = pneg %p46
      %p193 = scmp.lt.s32.totalorder %s18, 1
      %s194 = scalar_select %p193, %s18, 1
      %s195 = smul.addr %s194, 2
      %s196 = smul.addr %s195, 8
      %s197 = scalar_lea.vmem %s1, %s196
      %p198 = pneg %p75
      %p199 = pneg %p72
      %p200 = scmp.lt.s32.totalorder %s18, 1
      %s201 = scalar_select %p200, %s18, 1
      %s202 = scalar_lea.vmem %s2, %s201
      %p203 = pneg %p101
      %p204 = pneg %p98
      %p205 = pneg %p129
      %p206 = pneg %p126
      %s207 = smul.u32 2, %s19
      %p208 = scmp.lt.s32.totalorder %s18, 1
      %s209 = scalar_select %p208, %s18, 1
      %p210 = scmp.lt.s32.totalorder %s207, 1
      %s211 = scalar_select %p210, %s207, 1
      %s212 = smul.addr %s209, 2
      %s213 = sadd.s32 %s211, %s212
      %s214 = smul.addr %s213, 8
      %s215 = scalar_lea.vmem %s3, %s214
      %s216 = smul.u32 2, %s19
      %p217 = scmp.lt.s32.totalorder %s18, 1
      %s218 = scalar_select %p217, %s18, 1
      %p219 = scmp.lt.s32.totalorder %s216, 1
      %s220 = scalar_select %p219, %s216, 1
      %s221 = smul.addr %s218, 2
      %s222 = sadd.s32 %s220, %s221
      %s223 = smul.addr %s222, 8
      %s224 = scalar_lea.vmem %s0, %s223
      %s225 = smul.u32 2, %s19
      %p226 = scmp.lt.s32.totalorder %s18, 1
      %s227 = scalar_select %p226, %s18, 1
      %s228 = smul.addr %s227, 2
      %s229 = smul.addr %s228, 8
      %s230 = scalar_lea.vmem %s1, %s229
      %p231 = scmp.lt.s32.totalorder %s18, 1
      %s232 = scalar_select %p231, %s18, 1
      %s233 = scalar_lea.vmem %s2, %s232
      %s234 = smul.u32 2, %s19
      %p235 = scmp.lt.s32.totalorder %s18, 1
      %s236 = scalar_select %p235, %s18, 1
      %p237 = scmp.lt.s32.totalorder %s234, 1
      %s238 = scalar_select %p237, %s234, 1
      %s239 = smul.addr %s236, 2
      %s240 = sadd.s32 %s238, %s239
      %s241 = smul.addr %s240, 8
      %s242 = scalar_lea.vmem %s3, %s241
      %s243 = smul.u32 2, %s19
      %v244 = vld [vmem:[%s224] sm:$0xff]
      %v245 = vld [vmem:[%s224 + $0x8] sm:$0xff]
      %v246 = vld [vmem:[%s230] sm:$0xff]
      %v247 = vld [vmem:[%s230 + $0x8] sm:$0xff]
      %vm248 = vcmask 23552
      %v250 = vsel %vm248, %v244, 0
      %v253 = vsel %vm248, %v245, 0
      %v256 = vsel %vm248, %v246, 0
      %v259 = vsel %vm248, %v247, 0
      %261 = vmatprep.subr.mxu0 0.0
      %262 = vmatpush1.xpose.msra.mxu0 %v256
      %263 = vmatprep.subr.mxu0 0.0
      %264 = vmatpush1.xpose.msra.mxu0 %v259
      %265 = vmatprep.subr.mxu0 0.0
      %266 = vmatpush1.xpose.msra.mxu0 0.0
      %267 = vmatprep.subr.mxu0 0.0
      %268 = vmatpush1.xpose.msra.mxu0 0.0
      %269 = vmatprep.subr.mxu0 0.0
      %270 = vmatpush1.xpose.msra.mxu0 0.0
      %271 = vmatprep.subr.mxu0 0.0
      %272 = vmatpush1.xpose.msra.mxu0 0.0
      %273 = vmatprep.subr.mxu0 0.0
      %274 = vmatpush1.xpose.msra.mxu0 0.0
      %275 = vmatprep.subr.mxu0 0.0
      %276 = vmatpush1.xpose.msra.mxu0 0.0
      %277 = vmatprep.subr.mxu0 0.0
      %278 = vmatpush1.xpose.msra.mxu0 0.0
      %279 = vmatprep.subr.mxu0 0.0
      %280 = vmatpush1.xpose.msra.mxu0 0.0
      %281 = vmatprep.subr.mxu0 0.0
      %282 = vmatpush1.xpose.msra.mxu0 0.0
      %283 = vmatprep.subr.mxu0 0.0
      %284 = vmatpush1.xpose.msra.mxu0 0.0
      %285 = vmatprep.subr.mxu0 0.0
      %286 = vmatpush1.xpose.msra.mxu0 0.0
      %287 = vmatprep.subr.mxu0 0.0
      %288 = vmatpush1.xpose.msra.mxu0 0.0
      %289 = vmatprep.subr.mxu0 0.0
      %290 = vmatpush1.xpose.msra.mxu0 0.0
      %291 = vmatprep.subr.mxu0 0.0
      %292 = vmatpush1.xpose.msra.mxu0 0.0
      %293 = vmatprep.subr.mxu0 0.0
      %294 = vmatpush1.xpose.msra.mxu0 0.0
      %295 = vmatprep.subr.mxu0 0.0
      %296 = vmatpush1.xpose.msra.mxu0 0.0
      %297 = vmatprep.subr.mxu0 0.0
      %298 = vmatpush1.xpose.msra.mxu0 0.0
      %299 = vmatprep.subr.mxu0 0.0
      %300 = vmatpush1.xpose.msra.mxu0 0.0
      %301 = vmatprep.subr.mxu0 0.0
      %302 = vmatpush1.xpose.msra.mxu0 0.0
      %303 = vmatprep.subr.mxu0 0.0
      %304 = vmatpush1.xpose.msra.mxu0 0.0
      %305 = vmatprep.subr.mxu0 0.0
      %306 = vmatpush1.xpose.msra.mxu0 0.0
      %307 = vmatprep.subr.mxu0 0.0
      %308 = vmatpush1.xpose.msra.mxu0 0.0
      %309 = vmatprep.subr.mxu0 0.0
      %310 = vmatpush1.xpose.msra.mxu0 0.0
      %311 = vmatprep.subr.mxu0 0.0
      %312 = vmatpush1.xpose.msra.mxu0 0.0
      %313 = vmatprep.subr.mxu0 0.0
      %314 = vmatpush1.xpose.msra.mxu0 0.0
      %315 = vmatprep.subr.mxu0 0.0
      %316 = vmatpush1.xpose.msra.mxu0 0.0
      %317 = vmatprep.subr.mxu0 0.0
      %318 = vmatpush1.xpose.msra.mxu0 0.0
      %319 = vmatprep.subr.mxu0 0.0
      %320 = vmatpush1.xpose.msra.mxu0 0.0
      %321 = vmatprep.subr.mxu0 0.0
      %322 = vmatpush1.xpose.msra.mxu0 0.0
      %323 = vmatprep.subr.mxu0 0.0
      %324 = vmatpush1.xpose.msra.mxu0 0.0
      %325 = vmatprep.mubr.f32.mxu0 0.0
      %326 = vmatmul.mubr.f32.gmra.mrb[0].mxu0 %v250
      %v327 = vpop.f32.mrb[0].mxu0
      %v328 = vadd.f32 0.0, %v327
      %v329 = vpop.f32.mrb[0].mxu0
      %330 = vmatprep.mubr.f32.mxu0 0.0
      %331 = vmatmul.mubr.f32.gmra.mrb[0].mxu0 %v253
      %v332 = vpop.f32.mrb[0].mxu0
      %v333 = vadd.f32 0.0, %v332
      %v334 = vpop.f32.mrb[0].mxu0
      %335 = vdwg.mxu0
      %v336 = vmul.f32 %v244, %v244
      %v337 = vmul.f32 %v245, %v245
      %v338 = vsel %vm248, %v336, 0.0
      %339 = vadd.xlane.f32.xlu0 %v338
      %v340 = vpop.xlane.xlu0 %339
      %v341 = vsel %vm248, %v337, 0.0
      %342 = vadd.xlane.f32.xlu0 %v341
      %v343 = vpop.xlane.xlu0 %342
      %v344 = vmul.f32 %v328, 2.0
      %v345 = vmul.f32 %v333, 2.0
      %v346 = vsub.f32 %v344, %v340
      %v347 = vsub.f32 %v345, %v343
      %v348 = vld [vmem:[%s233] sm:$0x1]
      %v350 = vlaneseq
      %v351 = vshrl.u32 %v350, 7
      %v352 = vsub.s32 0, %v351
      %v353 = vrot.slane %v348, %v352
      %v355 = vsub.f32 %v346, %v353
      %v356 = vsub.f32 %v347, %v353
      %vm357 = vcmask 130048
      %358 = vst.msk [vmem:[%s242] sm:$0xff] %vm357, %v355
      %359 = vst.msk [vmem:[%s242 + $0x8] sm:$0xff] %vm357, %v356
      %s360 = smul.u32 2, %s19
      %p361 = scmp.lt.s32.totalorder %s18, 1
      %s362 = scalar_select %p361, %s18, 1
      %p363 = scmp.lt.s32.totalorder %s360, 1
      %s364 = scalar_select %p363, %s360, 1
      %s365 = smul.addr %s362, 2
      %s366 = sadd.s32 %s364, %s365
      %s367 = smul.addr %s366, 8
      %s368 = scalar_lea.vmem %s3, %s367
      // Predicated region
      $region33: #{_lambda_.9} parent=31 // pred_check
        %p369 = pneg %p126
      $region34: #{_lambda_.9} parent=31 // pred_check_branch
        %371 = sbr.rel (%p369) target = $region36
      $region35: #{_lambda_.9} parent=31 // pred_region
        %s372 = smul.u32 2, %s19
      $region36: #{_lambda_.9} parent=31 // pred_fallthru
        _
    $region32: #{_lambda_.9} parent=5 // pred_fallthru
      _
    %p373 = scmp.le.s32.totalorder 2, %s9
    // Predicated region
    $region37: #{_lambda_.9} parent=5 // pred_check
      %p374 = pneg %p373
    $region38: #{_lambda_.9} parent=5 // pred_check_branch
      %376 = sbr.rel (%p374) target = $region40
    $region39: #{_lambda_.9} parent=5 // pred_region
      %s377 = ssub.s32 %s9, 2
      // Predicated region
      $region41: #{_lambda_.9} parent=39 // pred_check
        %p378 = pneg %p132
      $region42: #{_lambda_.9} parent=39 // pred_check_branch
        %380 = sbr.rel (%p378) target = $region44
      $region43: #{_lambda_.9} parent=39 // pred_region
        %s381 = smul.u32 2, %s21
        %p382 = scmp.lt.s32.totalorder %s20, 1
        %s383 = scalar_select %p382, %s20, 1
        %p384 = scmp.lt.s32.totalorder %s381, 1
        %s385 = scalar_select %p384, %s381, 1
        %s386 = smul.addr %s383, 2
        %s387 = sadd.s32 %s385, %s386
        %s388 = smul.addr %s387, 8
        %s389 = scalar_lea.vmem %s3, %s388
      $region44: #{_lambda_.9} parent=39 // pred_fallthru
        _
    $region40: #{_lambda_.9} parent=5 // pred_fallthru
      _
  $region6: #{_lambda_.9} parent=0 // loop_footer
    %s13 = sadd.s32 1, %s9
  $region7: #{_lambda_.9} parent=0 // loop_footer_branch
    %8 = sbr.rel target = $region3
  $region8: #{_lambda_.9} parent=0 // loop_exit
    _

// kernel: _lambda_.10
$region0: #{_lambda_.10}
  #allocation0 [shape = 'u32[]', space=smem, size = 0x4, offset = 0x4, fixed_abs, tag = 'smem constant byte address 0x4 - core index']
  #allocation1 [shape = 'u32[144,128]{1,0:T(1,128)}', space=vmem, size = 0x12000, scoped, tag = 'internal scratch']
  %s0 = inlined_call_operand.vmem [shape: bf16[4,32,3], index: 0, kind: input, shape index: {}]
  %s1 = inlined_call_operand.vmem [shape: bf16[32,3], index: 1, kind: input, shape index: {}]
  %s2 = inlined_call_operand.vmem [shape: bf16[3,64], index: 2, kind: input, shape index: {}]
  %s3 = inlined_call_operand.vmem [shape: bf16[3,64], index: 3, kind: input, shape index: {}]
  %s4 = inlined_call_operand.vmem [shape: f32[1,64], index: 4, kind: input, shape index: {}]
  %s5 = inlined_call_operand.vmem [shape: bf16[32,64], index: 5, kind: output, shape index: {}]
  %s6 = sld [smem:[#allocation0]]
  $region30: #{_lambda_.10} parent=0
    _
  %s8 = ssub.s32 1, %s6
  %s9 = scalar_select 0, %s8, %s6
  // Predicated region
  $region2: #{_lambda_.10} parent=0 // pred_check
    _
  $region3: #{_lambda_.10} parent=0 // pred_check_branch
    %11 = sbr.rel (0) target = $region5
  $region4: #{_lambda_.10} parent=0 // pred_region
    _
  $region5: #{_lambda_.10} parent=0 // pred_fallthru
    _
  // Predicated region
  $region6: #{_lambda_.10} parent=0 // pred_check
    _
  $region7: #{_lambda_.10} parent=0 // pred_check_branch
    %13 = sbr.rel (0) target = $region9
  $region8: #{_lambda_.10} parent=0 // pred_region
    _
  $region9: #{_lambda_.10} parent=0 // pred_fallthru
    _
  // Predicated region
  $region10: #{_lambda_.10} parent=0 // pred_check
    _
  $region11: #{_lambda_.10} parent=0 // pred_check_branch
    %15 = sbr.rel (0) target = $region13
  $region12: #{_lambda_.10} parent=0 // pred_region
    _
  $region13: #{_lambda_.10} parent=0 // pred_fallthru
    _
  // Predicated region
  $region14: #{_lambda_.10} parent=0 // pred_check
    _
  $region15: #{_lambda_.10} parent=0 // pred_check_branch
    %17 = sbr.rel (0) target = $region17
  $region16: #{_lambda_.10} parent=0 // pred_region
    _
  $region17: #{_lambda_.10} parent=0 // pred_fallthru
    _
  // Predicated region
  $region18: #{_lambda_.10} parent=0 // pred_check
    _
  $region19: #{_lambda_.10} parent=0 // pred_check_branch
    %19 = sbr.rel (0) target = $region21
  $region20: #{_lambda_.10} parent=0 // pred_region
    _
  $region21: #{_lambda_.10} parent=0 // pred_fallthru
    _
  %v21 = vld [vmem:[%s0] sm:$0xf]
  %v22 = vld [vmem:[%s0 + $0x4] sm:$0xf]
  %v23 = vld [vmem:[%s0 + $0x8] sm:$0xf]
  %v24 = vld [vmem:[%s0 + $0xc] sm:$0xf]
  %v25 = vld [vmem:[%s0 + $0x10] sm:$0xf]
  %v26 = vld [vmem:[%s0 + $0x14] sm:$0xf]
  %v27 = vld [vmem:[%s0 + $0x18] sm:$0xf]
  %v28 = vld [vmem:[%s0 + $0x1c] sm:$0xf]
  %v29 = vld [vmem:[%s0 + $0x20] sm:$0xf]
  %v30 = vld [vmem:[%s0 + $0x24] sm:$0xf]
  %v31 = vld [vmem:[%s0 + $0x28] sm:$0xf]
  %v32 = vld [vmem:[%s0 + $0x2c] sm:$0xf]
  %v33 = vld [vmem:[%s0 + $0x30] sm:$0xf]
  %v34 = vld [vmem:[%s0 + $0x34] sm:$0xf]
  %v35 = vld [vmem:[%s0 + $0x38] sm:$0xf]
  %v36 = vld [vmem:[%s0 + $0x3c] sm:$0xf]
  %v37 = vld [vmem:[%s2] sm:$0x3]
  %v54 = vunpack.c.l.b16 %v21
  %v55 = vunpack.c.l.b16 %v22
  %v56 = vunpack.c.l.b16 %v23
  %v57 = vunpack.c.l.b16 %v24
  %v58 = vunpack.c.l.b16 %v25
  %v59 = vunpack.c.l.b16 %v26
  %v60 = vunpack.c.l.b16 %v27
  %v61 = vunpack.c.l.b16 %v28
  %v62 = vunpack.c.l.b16 %v29
  %v63 = vunpack.c.l.b16 %v30
  %v64 = vunpack.c.l.b16 %v31
  %v65 = vunpack.c.l.b16 %v32
  %v66 = vunpack.c.l.b16 %v33
  %v67 = vunpack.c.l.b16 %v34
  %v68 = vunpack.c.l.b16 %v35
  %v69 = vunpack.c.l.b16 %v36
  %v70 = vpack.c.b16 %v55, %v54
  %v71 = vpack.c.b16 %v57, %v56
  %v72 = vpack.c.b16 %v59, %v58
  %v73 = vpack.c.b16 %v61, %v60
  %v74 = vpack.c.b16 %v63, %v62
  %v75 = vpack.c.b16 %v65, %v64
  %v76 = vpack.c.b16 %v67, %v66
  %v77 = vpack.c.b16 %v69, %v68
  %vm78 = vcmask 23552
  %v80 = vsel %vm78, %v70, 0
  %v83 = vsel %vm78, %v71, 0
  %v86 = vsel %vm78, %v72, 0
  %v89 = vsel %vm78, %v73, 0
  %v92 = vsel %vm78, %v74, 0
  %v95 = vsel %vm78, %v75, 0
  %v98 = vsel %vm78, %v76, 0
  %v101 = vsel %vm78, %v77, 0
  %vm103 = vcmask 1040384
  %vm104 = vcmask 1041408
  %v105 = vsel %vm103, 4294967295, 65535
  %v106 = vsel %vm104, %v105, 0
  %v108 = vand.u32 %v37, %v106
  %110 = vmatprep.subr.bf16.mxu0 0
  %111 = vmatpush1.bf16.msra.mxu0 %v108
  %112 = vmatprep.subr.bf16.mxu0 0
  %113 = vmatpush1.bf16.msra.mxu0 0
  %114 = vmatprep.subr.bf16.mxu0 0
  %115 = vmatpush1.bf16.msra.mxu0 0
  %116 = vmatprep.subr.bf16.mxu0 0
  %117 = vmatpush1.bf16.msra.mxu0 0
  %118 = vmatprep.subr.bf16.mxu0 0
  %119 = vmatpush1.bf16.msra.mxu0 0
  %120 = vmatprep.subr.bf16.mxu0 0
  %121 = vmatpush1.bf16.msra.mxu0 0
  %122 = vmatprep.subr.bf16.mxu0 0
  %123 = vmatpush1.bf16.msra.mxu0 0
  %124 = vmatprep.subr.bf16.mxu0 0
  %125 = vmatpush1.bf16.msra.mxu0 0
  %126 = vmatprep.subr.bf16.mxu0 0
  %127 = vmatpush1.bf16.msra.mxu0 0
  %128 = vmatprep.subr.bf16.mxu0 0
  %129 = vmatpush1.bf16.msra.mxu0 0
  %130 = vmatprep.subr.bf16.mxu0 0
  %131 = vmatpush1.bf16.msra.mxu0 0
  %132 = vmatprep.subr.bf16.mxu0 0
  %133 = vmatpush1.bf16.msra.mxu0 0
  %134 = vmatprep.subr.bf16.mxu0 0
  %135 = vmatpush1.bf16.msra.mxu0 0
  %136 = vmatprep.subr.bf16.mxu0 0
  %137 = vmatpush1.bf16.msra.mxu0 0
  %138 = vmatprep.subr.bf16.mxu0 0
  %139 = vmatpush1.bf16.msra.mxu0 0
  %140 = vmatprep.subr.bf16.mxu0 0
  %141 = vmatpush1.bf16.msra.mxu0 0
  %142 = vmatprep.mubr.bf16.mxu0 0
  %143 = vmatmul.mubr.bf16.gmra.mrb[0].mxu0 %v80
  %v144 = vpop.f32.mrb[0].mxu0
  %v145 = vadd.f32 0.0, %v144
  %v146 = vpop.f32.mrb[0].mxu0
  %v147 = vpop.f32.mrb[0].mxu0
  %v148 = vadd.f32 0.0, %v147
  %v149 = vpop.f32.mrb[0].mxu0
  %150 = vmatprep.mubr.bf16.mxu0 0
  %151 = vmatmul.mubr.bf16.gmra.mrb[0].mxu0 %v83
  %v152 = vpop.f32.mrb[0].mxu0
  %v153 = vadd.f32 0.0, %v152
  %v154 = vpop.f32.mrb[0].mxu0
  %v155 = vpop.f32.mrb[0].mxu0
  %v156 = vadd.f32 0.0, %v155
  %v157 = vpop.f32.mrb[0].mxu0
  %158 = vmatprep.mubr.bf16.mxu0 0
  %159 = vmatmul.mubr.bf16.gmra.mrb[0].mxu0 %v86
  %v160 = vpop.f32.mrb[0].mxu0
  %v161 = vadd.f32 0.0, %v160
  %v162 = vpop.f32.mrb[0].mxu0
  %v163 = vpop.f32.mrb[0].mxu0
  %v164 = vadd.f32 0.0, %v163
  %v165 = vpop.f32.mrb[0].mxu0
  %166 = vmatprep.mubr.bf16.mxu0 0
  %167 = vmatmul.mubr.bf16.gmra.mrb[0].mxu0 %v89
  %v168 = vpop.f32.mrb[0].mxu0
  %v169 = vadd.f32 0.0, %v168
  %v170 = vpop.f32.mrb[0].mxu0
  %v171 = vpop.f32.mrb[0].mxu0
  %v172 = vadd.f32 0.0, %v171
  %v173 = vpop.f32.mrb[0].mxu0
  %174 = vmatprep.mubr.bf16.mxu0 0
  %175 = vmatmul.mubr.bf16.gmra.mrb[0].mxu0 %v92
  %v176 = vpop.f32.mrb[0].mxu0
  %v177 = vadd.f32 0.0, %v176
  %v178 = vpop.f32.mrb[0].mxu0
  %v179 = vpop.f32.mrb[0].mxu0
  %v180 = vadd.f32 0.0, %v179
  %v181 = vpop.f32.mrb[0].mxu0
  %182 = vmatprep.mubr.bf16.mxu0 0
  %183 = vmatmul.mubr.bf16.gmra.mrb[0].mxu0 %v95
  %v184 = vpop.f32.mrb[0].mxu0
  %v185 = vadd.f32 0.0, %v184
  %v186 = vpop.f32.mrb[0].mxu0
  %v187 = vpop.f32.mrb[0].mxu0
  %v188 = vadd.f32 0.0, %v187
  %v189 = vpop.f32.mrb[0].mxu0
  %190 = vmatprep.mubr.bf16.mxu0 0
  %191 = vmatmul.mubr.bf16.gmra.mrb[0].mxu0 %v98
  %v192 = vpop.f32.mrb[0].mxu0
  %v193 = vadd.f32 0.0, %v192
  %v194 = vpop.f32.mrb[0].mxu0
  %v195 = vpop.f32.mrb[0].mxu0
  %v196 = vadd.f32 0.0, %v195
  %v197 = vpop.f32.mrb[0].mxu0
  %198 = vmatprep.mubr.bf16.mxu0 0
  %199 = vmatmul.mubr.bf16.gmra.mrb[0].mxu0 %v101
  %v200 = vpop.f32.mrb[0].mxu0
  %v201 = vadd.f32 0.0, %v200
  %v202 = vpop.f32.mrb[0].mxu0
  %v203 = vpop.f32.mrb[0].mxu0
  %v204 = vadd.f32 0.0, %v203
  %v205 = vpop.f32.mrb[0].mxu0
  %206 = vdwg.mxu0
  %v207 = vmax.f32 %v145, %v161
  %v208 = vmax.f32 %v148, %v164
  %v209 = vmax.f32 %v153, %v169
  %v210 = vmax.f32 %v156, %v172
  %v211 = vmax.f32 %v207, %v177
  %v212 = vmax.f32 %v208, %v180
  %v213 = vmax.f32 %v209, %v185
  %v214 = vmax.f32 %v210, %v188
  %v215 = vmax.f32 %v211, %v193
  %v216 = vmax.f32 %v212, %v196
  %v217 = vmax.f32 %v213, %v201
  %v218 = vmax.f32 %v214, %v204
  %v219 = vld [vmem:[%s1] sm:$0xf]
  %v220 = vld [vmem:[%s1 + $0x4] sm:$0xf]
  %v221 = vld [vmem:[%s1 + $0x8] sm:$0xf]
  %v222 = vld [vmem:[%s1 + $0xc] sm:$0xf]
  %v223 = vld [vmem:[%s3] sm:$0x3]
  %v228 = vunpack.c.l.b16 %v219
  %v229 = vunpack.c.l.b16 %v220
  %v230 = vunpack.c.l.b16 %v221
  %v231 = vunpack.c.l.b16 %v222
  %v232 = vpack.c.b16 %v229, %v228
  %v233 = vpack.c.b16 %v231, %v230
  %v235 = vsel %vm78, %v232, 0
  %v238 = vsel %vm78, %v233, 0
  %v241 = vand.u32 %v223, %v106
  %243 = vmatprep.subr.bf16.mxu0 0
  %244 = vmatpush1.bf16.msra.mxu0 %v241
  %245 = vmatprep.subr.bf16.mxu0 0
  %246 = vmatpush1.bf16.msra.mxu0 0
  %247 = vmatprep.subr.bf16.mxu0 0
  %248 = vmatpush1.bf16.msra.mxu0 0
  %249 = vmatprep.subr.bf16.mxu0 0
  %250 = vmatpush1.bf16.msra.mxu0 0
  %251 = vmatprep.subr.bf16.mxu0 0
  %252 = vmatpush1.bf16.msra.mxu0 0
  %253 = vmatprep.subr.bf16.mxu0 0
  %254 = vmatpush1.bf16.msra.mxu0 0
  %255 = vmatprep.subr.bf16.mxu0 0
  %256 = vmatpush1.bf16.msra.mxu0 0
  %257 = vmatprep.subr.bf16.mxu0 0
  %258 = vmatpush1.bf16.msra.mxu0 0
  %259 = vmatprep.subr.bf16.mxu0 0
  %260 = vmatpush1.bf16.msra.mxu0 0
  %261 = vmatprep.subr.bf16.mxu0 0
  %262 = vmatpush1.bf16.msra.mxu0 0
  %263 = vmatprep.subr.bf16.mxu0 0
  %264 = vmatpush1.bf16.msra.mxu0 0
  %265 = vmatprep.subr.bf16.mxu0 0
  %266 = vmatpush1.bf16.msra.mxu0 0
  %267 = vmatprep.subr.bf16.mxu0 0
  %268 = vmatpush1.bf16.msra.mxu0 0
  %269 = vmatprep.subr.bf16.mxu0 0
  %270 = vmatpush1.bf16.msra.mxu0 0
  %271 = vmatprep.subr.bf16.mxu0 0
  %272 = vmatpush1.bf16.msra.mxu0 0
  %273 = vmatprep.subr.bf16.mxu0 0
  %274 = vmatpush1.bf16.msra.mxu0 0
  %275 = vmatprep.mubr.bf16.mxu0 0
  %276 = vmatmul.mubr.bf16.gmra.mrb[0].mxu0 %v235
  %v277 = vpop.f32.mrb[0].mxu0
  %v278 = vadd.f32 0.0, %v277
  %v279 = vpop.f32.mrb[0].mxu0
  %v280 = vpop.f32.mrb[0].mxu0
  %v281 = vadd.f32 0.0, %v280
  %v282 = vpop.f32.mrb[0].mxu0
  %283 = vmatprep.mubr.bf16.mxu0 0
  %284 = vmatmul.mubr.bf16.gmra.mrb[0].mxu0 %v238
  %v285 = vpop.f32.mrb[0].mxu0
  %v286 = vadd.f32 0.0, %v285
  %v287 = vpop.f32.mrb[0].mxu0
  %v288 = vpop.f32.mrb[0].mxu0
  %v289 = vadd.f32 0.0, %v288
  %v290 = vpop.f32.mrb[0].mxu0
  %291 = vdwg.mxu0
  %v292 = vadd.f32 %v215, %v278
  %v293 = vadd.f32 %v216, %v281
  %v294 = vadd.f32 %v217, %v286
  %v295 = vadd.f32 %v218, %v289
  %v296 = vld [vmem:[%s4] sm:$0x1]
  %v298 = vlaneseq
  %v299 = vshrl.u32 %v298, 7
  %v300 = vsub.s32 0, %v299
  %v301 = vrot.slane %v296, %v300
  %v303 = vadd.f32 %v292, %v301
  %v304 = vadd.f32 %v293, %v301
  %v305 = vadd.f32 %v294, %v301
  %v306 = vadd.f32 %v295, %v301
  %vm307 = vcmp.gt.f32.partialorder %v303, 0.0
  %vm308 = vcmp.gt.f32.partialorder %v304, 0.0
  %vm309 = vcmp.gt.f32.partialorder %v305, 0.0
  %vm310 = vcmp.gt.f32.partialorder %v306, 0.0
  %v311 = vmul.f32 %v303, 0.2
  %v312 = vmul.f32 %v304, 0.2
  %v313 = vmul.f32 %v305, 0.2
  %v314 = vmul.f32 %v306, 0.2
  %v315 = vsel %vm307, %v303, %v311
  %v316 = vsel %vm308, %v304, %v312
  %v317 = vsel %vm309, %v305, %v313
  %v318 = vsel %vm310, %v306, %v314
  %v319 = vpack.c.bf16 %v316, %v315
  %v320 = vpack.c.bf16 %v318, %v317
  %v323 = vunpack.c.l.b16 %v319
  %v324 = vunpack.c.h.b16 %v319
  %v325 = vunpack.c.l.b16 %v320
  %v326 = vunpack.c.h.b16 %v320
  %v327 = vpack.c.b16 %v323, %v323
  %v328 = vpack.c.b16 %v324, %v324
  %v329 = vpack.c.b16 %v325, %v325
  %v330 = vpack.c.b16 %v326, %v326
  %vm335 = vcmask 519168
  %336 = vst.msk [vmem:[%s5] sm:$0xf] %vm335, %v327
  %337 = vst.msk [vmem:[%s5 + $0x4] sm:$0xf] %vm335, %v328
  %338 = vst.msk [vmem:[%s5 + $0x8] sm:$0xf] %vm335, %v329
  %339 = vst.msk [vmem:[%s5 + $0xc] sm:$0xf] %vm335, %v330
  // Predicated region
  $region22: #{_lambda_.10} parent=0 // pred_check
    _
  $region23: #{_lambda_.10} parent=0 // pred_check_branch
    %341 = sbr.rel (0) target = $region25
  $region24: #{_lambda_.10} parent=0 // pred_region
    _
  $region25: #{_lambda_.10} parent=0 // pred_fallthru
    _
  // Predicated region
  $region26: #{_lambda_.10} parent=0 // pred_check
    _
  $region27: #{_lambda_.10} parent=0 // pred_check_branch
    %343 = sbr.rel (0) target = $region29
  $region28: #{_lambda_.10} parent=0 // pred_region
    _
  $region29: #{_lambda_.10} parent=0 // pred_fallthru
    _

// kernel: _lambda_.12
$region0: #{_lambda_.12}
  #allocation0 [shape = 'u32[]', space=smem, size = 0x4, offset = 0x4, fixed_abs, tag = 'smem constant byte address 0x4 - core index']
  #allocation1 [shape = 'u32[144,128]{1,0:T(1,128)}', space=vmem, size = 0x12000, scoped, tag = 'internal scratch']
  %s0 = inlined_call_operand.vmem [shape: bf16[4,32,64], index: 0, kind: input, shape index: {}]
  %s1 = inlined_call_operand.vmem [shape: bf16[32,64], index: 1, kind: input, shape index: {}]
  %s2 = inlined_call_operand.vmem [shape: bf16[64,64], index: 2, kind: input, shape index: {}]
  %s3 = inlined_call_operand.vmem [shape: bf16[64,64], index: 3, kind: input, shape index: {}]
  %s4 = inlined_call_operand.vmem [shape: f32[1,64], index: 4, kind: input, shape index: {}]
  %s5 = inlined_call_operand.vmem [shape: bf16[32,64], index: 5, kind: output, shape index: {}]
  %s6 = sld [smem:[#allocation0]]
  $region30: #{_lambda_.12} parent=0
    _
  %s8 = ssub.s32 1, %s6
  %s9 = scalar_select 0, %s8, %s6
  // Predicated region
  $region2: #{_lambda_.12} parent=0 // pred_check
    _
  $region3: #{_lambda_.12} parent=0 // pred_check_branch
    %11 = sbr.rel (0) target = $region5
  $region4: #{_lambda_.12} parent=0 // pred_region
    _
  $region5: #{_lambda_.12} parent=0 // pred_fallthru
    _
  // Predicated region
  $region6: #{_lambda_.12} parent=0 // pred_check
    _
  $region7: #{_lambda_.12} parent=0 // pred_check_branch
    %13 = sbr.rel (0) target = $region9
  $region8: #{_lambda_.12} parent=0 // pred_region
    _
  $region9: #{_lambda_.12} parent=0 // pred_fallthru
    _
  // Predicated region
  $region10: #{_lambda_.12} parent=0 // pred_check
    _
  $region11: #{_lambda_.12} parent=0 // pred_check_branch
    %15 = sbr.rel (0) target = $region13
  $region12: #{_lambda_.12} parent=0 // pred_region
    _
  $region13: #{_lambda_.12} parent=0 // pred_fallthru
    _
  // Predicated region
  $region14: #{_lambda_.12} parent=0 // pred_check
    _
  $region15: #{_lambda_.12} parent=0 // pred_check_branch
    %17 = sbr.rel (0) target = $region17
  $region16: #{_lambda_.12} parent=0 // pred_region
    _
  $region17: #{_lambda_.12} parent=0 // pred_fallthru
    _
  // Predicated region
  $region18: #{_lambda_.12} parent=0 // pred_check
    _
  $region19: #{_lambda_.12} parent=0 // pred_check_branch
    %19 = sbr.rel (0) target = $region21
  $region20: #{_lambda_.12} parent=0 // pred_region
    _
  $region21: #{_lambda_.12} parent=0 // pred_fallthru
    _
  %v21 = vld [vmem:[%s0] sm:$0xf]
  %v22 = vld [vmem:[%s0 + $0x4] sm:$0xf]
  %v23 = vld [vmem:[%s0 + $0x8] sm:$0xf]
  %v24 = vld [vmem:[%s0 + $0xc] sm:$0xf]
  %v25 = vld [vmem:[%s0 + $0x10] sm:$0xf]
  %v26 = vld [vmem:[%s0 + $0x14] sm:$0xf]
  %v27 = vld [vmem:[%s0 + $0x18] sm:$0xf]
  %v28 = vld [vmem:[%s0 + $0x1c] sm:$0xf]
  %v29 = vld [vmem:[%s0 + $0x20] sm:$0xf]
  %v30 = vld [vmem:[%s0 + $0x24] sm:$0xf]
  %v31 = vld [vmem:[%s0 + $0x28] sm:$0xf]
  %v32 = vld [vmem:[%s0 + $0x2c] sm:$0xf]
  %v33 = vld [vmem:[%s0 + $0x30] sm:$0xf]
  %v34 = vld [vmem:[%s0 + $0x34] sm:$0xf]
  %v35 = vld [vmem:[%s0 + $0x38] sm:$0xf]
  %v36 = vld [vmem:[%s0 + $0x3c] sm:$0xf]
  %v37 = vld [vmem:[%s2] sm:$0xf]
  %v38 = vld [vmem:[%s2 + $0x4] sm:$0xf]
  %v39 = vld [vmem:[%s2 + $0x8] sm:$0xf]
  %v40 = vld [vmem:[%s2 + $0xc] sm:$0xf]
  %v41 = vld [vmem:[%s2 + $0x10] sm:$0xf]
  %v42 = vld [vmem:[%s2 + $0x14] sm:$0xf]
  %v43 = vld [vmem:[%s2 + $0x18] sm:$0xf]
  %v44 = vld [vmem:[%s2 + $0x1c] sm:$0xf]
  %v61 = vunpack.c.l.b16 %v21
  %v62 = vunpack.c.l.b16 %v22
  %v63 = vunpack.c.l.b16 %v23
  %v64 = vunpack.c.l.b16 %v24
  %v65 = vunpack.c.l.b16 %v25
  %v66 = vunpack.c.l.b16 %v26
  %v67 = vunpack.c.l.b16 %v27
  %v68 = vunpack.c.l.b16 %v28
  %v69 = vunpack.c.l.b16 %v29
  %v70 = vunpack.c.l.b16 %v30
  %v71 = vunpack.c.l.b16 %v31
  %v72 = vunpack.c.l.b16 %v32
  %v73 = vunpack.c.l.b16 %v33
  %v74 = vunpack.c.l.b16 %v34
  %v75 = vunpack.c.l.b16 %v35
  %v76 = vunpack.c.l.b16 %v36
  %v77 = vpack.c.b16 %v62, %v61
  %v78 = vpack.c.b16 %v64, %v63
  %v79 = vpack.c.b16 %v66, %v65
  %v80 = vpack.c.b16 %v68, %v67
  %v81 = vpack.c.b16 %v70, %v69
  %v82 = vpack.c.b16 %v72, %v71
  %v83 = vpack.c.b16 %v74, %v73
  %v84 = vpack.c.b16 %v76, %v75
  %v93 = vunpack.c.l.b16 %v37
  %v94 = vunpack.c.l.b16 %v38
  %v95 = vunpack.c.l.b16 %v39
  %v96 = vunpack.c.l.b16 %v40
  %v97 = vunpack.c.l.b16 %v41
  %v98 = vunpack.c.l.b16 %v42
  %v99 = vunpack.c.l.b16 %v43
  %v100 = vunpack.c.l.b16 %v44
  %v101 = vpack.c.b16 %v94, %v93
  %v102 = vpack.c.b16 %v96, %v95
  %v103 = vpack.c.b16 %v98, %v97
  %v104 = vpack.c.b16 %v100, %v99
  %vm109 = vcmask 523264
  %v111 = vsel %vm109, %v77, 0
  %v114 = vsel %vm109, %v78, 0
  %v117 = vsel %vm109, %v79, 0
  %v120 = vsel %vm109, %v80, 0
  %v123 = vsel %vm109, %v81, 0
  %v126 = vsel %vm109, %v82, 0
  %v129 = vsel %vm109, %v83, 0
  %v132 = vsel %vm109, %v84, 0
  %134 = vmatprep.subr.bf16.mxu0 0
  %135 = vmatpush1.bf16.msra.mxu0 %v101
  %136 = vmatprep.subr.bf16.mxu0 0
  %137 = vmatpush1.bf16.msra.mxu0 %v102
  %138 = vmatprep.subr.bf16.mxu0 0
  %139 = vmatpush1.bf16.msra.mxu0 %v103
  %140 = vmatprep.subr.bf16.mxu0 0
  %141 = vmatpush1.bf16.msra.mxu0 %v104
  %142 = vmatprep.subr.bf16.mxu0 0
  %143 = vmatpush1.bf16.msra.mxu0 0
  %144 = vmatprep.subr.bf16.mxu0 0
  %145 = vmatpush1.bf16.msra.mxu0 0
  %146 = vmatprep.subr.bf16.mxu0 0
  %147 = vmatpush1.bf16.msra.mxu0 0
  %148 = vmatprep.subr.bf16.mxu0 0
  %149 = vmatpush1.bf16.msra.mxu0 0
  %150 = vmatprep.subr.bf16.mxu0 0
  %151 = vmatpush1.bf16.msra.mxu0 0
  %152 = vmatprep.subr.bf16.mxu0 0
  %153 = vmatpush1.bf16.msra.mxu0 0
  %154 = vmatprep.subr.bf16.mxu0 0
  %155 = vmatpush1.bf16.msra.mxu0 0
  %156 = vmatprep.subr.bf16.mxu0 0
  %157 = vmatpush1.bf16.msra.mxu0 0
  %158 = vmatprep.subr.bf16.mxu0 0
  %159 = vmatpush1.bf16.msra.mxu0 0
  %160 = vmatprep.subr.bf16.mxu0 0
  %161 = vmatpush1.bf16.msra.mxu0 0
  %162 = vmatprep.subr.bf16.mxu0 0
  %163 = vmatpush1.bf16.msra.mxu0 0
  %164 = vmatprep.subr.bf16.mxu0 0
  %165 = vmatpush1.bf16.msra.mxu0 0
  %166 = vmatprep.mubr.bf16.mxu0 0
  %167 = vmatmul.mubr.bf16.gmra.mrb[0].mxu0 %v111
  %v168 = vpop.f32.mrb[0].mxu0
  %v169 = vadd.f32 0.0, %v168
  %v170 = vpop.f32.mrb[0].mxu0
  %v171 = vpop.f32.mrb[0].mxu0
  %v172 = vadd.f32 0.0, %v171
  %v173 = vpop.f32.mrb[0].mxu0
  %174 = vmatprep.mubr.bf16.mxu0 0
  %175 = vmatmul.mubr.bf16.gmra.mrb[0].mxu0 %v114
  %v176 = vpop.f32.mrb[0].mxu0
  %v177 = vadd.f32 0.0, %v176
  %v178 = vpop.f32.mrb[0].mxu0
  %v179 = vpop.f32.mrb[0].mxu0
  %v180 = vadd.f32 0.0, %v179
  %v181 = vpop.f32.mrb[0].mxu0
  %182 = vmatprep.mubr.bf16.mxu0 0
  %183 = vmatmul.mubr.bf16.gmra.mrb[0].mxu0 %v117
  %v184 = vpop.f32.mrb[0].mxu0
  %v185 = vadd.f32 0.0, %v184
  %v186 = vpop.f32.mrb[0].mxu0
  %v187 = vpop.f32.mrb[0].mxu0
  %v188 = vadd.f32 0.0, %v187
  %v189 = vpop.f32.mrb[0].mxu0
  %190 = vmatprep.mubr.bf16.mxu0 0
  %191 = vmatmul.mubr.bf16.gmra.mrb[0].mxu0 %v120
  %v192 = vpop.f32.mrb[0].mxu0
  %v193 = vadd.f32 0.0, %v192
  %v194 = vpop.f32.mrb[0].mxu0
  %v195 = vpop.f32.mrb[0].mxu0
  %v196 = vadd.f32 0.0, %v195
  %v197 = vpop.f32.mrb[0].mxu0
  %198 = vmatprep.mubr.bf16.mxu0 0
  %199 = vmatmul.mubr.bf16.gmra.mrb[0].mxu0 %v123
  %v200 = vpop.f32.mrb[0].mxu0
  %v201 = vadd.f32 0.0, %v200
  %v202 = vpop.f32.mrb[0].mxu0
  %v203 = vpop.f32.mrb[0].mxu0
  %v204 = vadd.f32 0.0, %v203
  %v205 = vpop.f32.mrb[0].mxu0
  %206 = vmatprep.mubr.bf16.mxu0 0
  %207 = vmatmul.mubr.bf16.gmra.mrb[0].mxu0 %v126
  %v208 = vpop.f32.mrb[0].mxu0
  %v209 = vadd.f32 0.0, %v208
  %v210 = vpop.f32.mrb[0].mxu0
  %v211 = vpop.f32.mrb[0].mxu0
  %v212 = vadd.f32 0.0, %v211
  %v213 = vpop.f32.mrb[0].mxu0
  %214 = vmatprep.mubr.bf16.mxu0 0
  %215 = vmatmul.mubr.bf16.gmra.mrb[0].mxu0 %v129
  %v216 = vpop.f32.mrb[0].mxu0
  %v217 = vadd.f32 0.0, %v216
  %v218 = vpop.f32.mrb[0].mxu0
  %v219 = vpop.f32.mrb[0].mxu0
  %v220 = vadd.f32 0.0, %v219
  %v221 = vpop.f32.mrb[0].mxu0
  %222 = vmatprep.mubr.bf16.mxu0 0
  %223 = vmatmul.mubr.bf16.gmra.mrb[0].mxu0 %v132
  %v224 = vpop.f32.mrb[0].mxu0
  %v225 = vadd.f32 0.0, %v224
  %v226 = vpop.f32.mrb[0].mxu0
  %v227 = vpop.f32.mrb[0].mxu0
  %v228 = vadd.f32 0.0, %v227
  %v229 = vpop.f32.mrb[0].mxu0
  %230 = vdwg.mxu0
  %v231 = vmax.f32 %v169, %v185
  %v232 = vmax.f32 %v172, %v188
  %v233 = vmax.f32 %v177, %v193
  %v234 = vmax.f32 %v180, %v196
  %v235 = vmax.f32 %v231, %v201
  %v236 = vmax.f32 %v232, %v204
  %v237 = vmax.f32 %v233, %v209
  %v238 = vmax.f32 %v234, %v212
  %v239 = vmax.f32 %v235, %v217
  %v240 = vmax.f32 %v236, %v220
  %v241 = vmax.f32 %v237, %v225
  %v242 = vmax.f32 %v238, %v228
  %v243 = vld [vmem:[%s1] sm:$0xf]
  %v244 = vld [vmem:[%s1 + $0x4] sm:$0xf]
  %v245 = vld [vmem:[%s1 + $0x8] sm:$0xf]
  %v246 = vld [vmem:[%s1 + $0xc] sm:$0xf]
  %v247 = vld [vmem:[%s3] sm:$0xf]
  %v248 = vld [vmem:[%s3 + $0x4] sm:$0xf]
  %v249 = vld [vmem:[%s3 + $0x8] sm:$0xf]
  %v250 = vld [vmem:[%s3 + $0xc] sm:$0xf]
  %v251 = vld [vmem:[%s3 + $0x10] sm:$0xf]
  %v252 = vld [vmem:[%s3 + $0x14] sm:$0xf]
  %v253 = vld [vmem:[%s3 + $0x18] sm:$0xf]
  %v254 = vld [vmem:[%s3 + $0x1c] sm:$0xf]
  %v259 = vunpack.c.l.b16 %v243
  %v260 = vunpack.c.l.b16 %v244
  %v261 = vunpack.c.l.b16 %v245
  %v262 = vunpack.c.l.b16 %v246
  %v263 = vpack.c.b16 %v260, %v259
  %v264 = vpack.c.b16 %v262, %v261
  %v273 = vunpack.c.l.b16 %v247
  %v274 = vunpack.c.l.b16 %v248
  %v275 = vunpack.c.l.b16 %v249
  %v276 = vunpack.c.l.b16 %v250
  %v277 = vunpack.c.l.b16 %v251
  %v278 = vunpack.c.l.b16 %v252
  %v279 = vunpack.c.l.b16 %v253
  %v280 = vunpack.c.l.b16 %v254
  %v281 = vpack.c.b16 %v274, %v273
  %v282 = vpack.c.b16 %v276, %v275
  %v283 = vpack.c.b16 %v278, %v277
  %v284 = vpack.c.b16 %v280, %v279
  %v290 = vsel %vm109, %v263, 0
  %v293 = vsel %vm109, %v264, 0
  %295 = vmatprep.subr.bf16.mxu0 0
  %296 = vmatpush1.bf16.msra.mxu0 %v281
  %297 = vmatprep.subr.bf16.mxu0 0
  %298 = vmatpush1.bf16.msra.mxu0 %v282
  %299 = vmatprep.subr.bf16.mxu0 0
  %300 = vmatpush1.bf16.msra.mxu0 %v283
  %301 = vmatprep.subr.bf16.mxu0 0
  %302 = vmatpush1.bf16.msra.mxu0 %v284
  %303 = vmatprep.subr.bf16.mxu0 0
  %304 = vmatpush1.bf16.msra.mxu0 0
  %305 = vmatprep.subr.bf16.mxu0 0
  %306 = vmatpush1.bf16.msra.mxu0 0
  %307 = vmatprep.subr.bf16.mxu0 0
  %308 = vmatpush1.bf16.msra.mxu0 0
  %309 = vmatprep.subr.bf16.mxu0 0
  %310 = vmatpush1.bf16.msra.mxu0 0
  %311 = vmatprep.subr.bf16.mxu0 0
  %312 = vmatpush1.bf16.msra.mxu0 0
  %313 = vmatprep.subr.bf16.mxu0 0
  %314 = vmatpush1.bf16.msra.mxu0 0
  %315 = vmatprep.subr.bf16.mxu0 0
  %316 = vmatpush1.bf16.msra.mxu0 0
  %317 = vmatprep.subr.bf16.mxu0 0
  %318 = vmatpush1.bf16.msra.mxu0 0
  %319 = vmatprep.subr.bf16.mxu0 0
  %320 = vmatpush1.bf16.msra.mxu0 0
  %321 = vmatprep.subr.bf16.mxu0 0
  %322 = vmatpush1.bf16.msra.mxu0 0
  %323 = vmatprep.subr.bf16.mxu0 0
  %324 = vmatpush1.bf16.msra.mxu0 0
  %325 = vmatprep.subr.bf16.mxu0 0
  %326 = vmatpush1.bf16.msra.mxu0 0
  %327 = vmatprep.mubr.bf16.mxu0 0
  %328 = vmatmul.mubr.bf16.gmra.mrb[0].mxu0 %v290
  %v329 = vpop.f32.mrb[0].mxu0
  %v330 = vadd.f32 0.0, %v329
  %v331 = vpop.f32.mrb[0].mxu0
  %v332 = vpop.f32.mrb[0].mxu0
  %v333 = vadd.f32 0.0, %v332
  %v334 = vpop.f32.mrb[0].mxu0
  %335 = vmatprep.mubr.bf16.mxu0 0
  %336 = vmatmul.mubr.bf16.gmra.mrb[0].mxu0 %v293
  %v337 = vpop.f32.mrb[0].mxu0
  %v338 = vadd.f32 0.0, %v337
  %v339 = vpop.f32.mrb[0].mxu0
  %v340 = vpop.f32.mrb[0].mxu0
  %v341 = vadd.f32 0.0, %v340
  %v342 = vpop.f32.mrb[0].mxu0
  %343 = vdwg.mxu0
  %v344 = vadd.f32 %v239, %v330
  %v345 = vadd.f32 %v240, %v333
  %v346 = vadd.f32 %v241, %v338
  %v347 = vadd.f32 %v242, %v341
  %v348 = vld [vmem:[%s4] sm:$0x1]
  %v350 = vlaneseq
  %v351 = vshrl.u32 %v350, 7
  %v352 = vsub.s32 0, %v351
  %v353 = vrot.slane %v348, %v352
  %v355 = vadd.f32 %v344, %v353
  %v356 = vadd.f32 %v345, %v353
  %v357 = vadd.f32 %v346, %v353
  %v358 = vadd.f32 %v347, %v353
  %vm359 = vcmp.gt.f32.partialorder %v355, 0.0
  %vm360 = vcmp.gt.f32.partialorder %v356, 0.0
  %vm361 = vcmp.gt.f32.partialorder %v357, 0.0
  %vm362 = vcmp.gt.f32.partialorder %v358, 0.0
  %v363 = vmul.f32 %v355, 0.2
  %v364 = vmul.f32 %v356, 0.2
  %v365 = vmul.f32 %v357, 0.2
  %v366 = vmul.f32 %v358, 0.2
  %v367 = vsel %vm359, %v355, %v363
  %v368 = vsel %vm360, %v356, %v364
  %v369 = vsel %vm361, %v357, %v365
  %v370 = vsel %vm362, %v358, %v366
  %v371 = vpack.c.bf16 %v368, %v367
  %v372 = vpack.c.bf16 %v370, %v369
  %v375 = vunpack.c.l.b16 %v371
  %v376 = vunpack.c.h.b16 %v371
  %v377 = vunpack.c.l.b16 %v372
  %v378 = vunpack.c.h.b16 %v372
  %v379 = vpack.c.b16 %v375, %v375
  %v380 = vpack.c.b16 %v376, %v376
  %v381 = vpack.c.b16 %v377, %v377
  %v382 = vpack.c.b16 %v378, %v378
  %vm387 = vcmask 519168
  %388 = vst.msk [vmem:[%s5] sm:$0xf] %vm387, %v379
  %389 = vst.msk [vmem:[%s5 + $0x4] sm:$0xf] %vm387, %v380
  %390 = vst.msk [vmem:[%s5 + $0x8] sm:$0xf] %vm387, %v381
  %391 = vst.msk [vmem:[%s5 + $0xc] sm:$0xf] %vm387, %v382
  // Predicated region
  $region22: #{_lambda_.12} parent=0 // pred_check
    _
  $region23: #{_lambda_.12} parent=0 // pred_check_branch
    %393 = sbr.rel (0) target = $region25
  $region24: #{_lambda_.12} parent=0 // pred_region
    _
  $region25: #{_lambda_.12} parent=0 // pred_fallthru
    _
  // Predicated region
  $region26: #{_lambda_.12} parent=0 // pred_check
    _
  $region27: #{_lambda_.12} parent=0 // pred_check_branch
    %395 = sbr.rel (0) target = $region29
  $region28: #{_lambda_.12} parent=0 // pred_region
    _
  $region29: #{_lambda_.12} parent=0 // pred_fallthru
    _

// kernel: _lambda_.15
$region0: #{_lambda_.15}
  #allocation0 [shape = 'u32[]', space=smem, size = 0x4, offset = 0x4, fixed_abs, tag = 'smem constant byte address 0x4 - core index']
  #allocation1 [shape = 'u32[144,128]{1,0:T(1,128)}', space=vmem, size = 0x12000, scoped, tag = 'internal scratch']
  %s0 = inlined_call_operand.vmem [shape: bf16[2,16,128], index: 0, kind: input, shape index: {}, may-alias: {0,1}]
  %s1 = inlined_call_operand.vmem [shape: bf16[2,16,128], index: 1, kind: input, shape index: {}, may-alias: {0,1}]
  %s2 = inlined_call_operand.vmem [shape: f32[2,1,16], index: 2, kind: input, shape index: {}]
  %s3 = inlined_call_operand.vmem [shape: f32[2,16,16], index: 3, kind: output, shape index: {}]
  %s4 = sld [smem:[#allocation0]]
  $region45: #{_lambda_.15} parent=0
    _
  %s6 = ssub.s32 1, %s4
  %s7 = scalar_select 0, %s6, %s4
  loop: start=0, step=1, limit=4
  $region2: #{_lambda_.15} parent=0 // loop_pre_header
    _
  $region3: #{_lambda_.15} parent=0 // loop_header
    %s9 = sphi 0, %s13
    %p10 = scmp.ge.s32.totalorder %s9, 4
    %s16 = sphi 0, %s28
    %s17 = sphi 0, %s24
    %s18 = sphi 0, %s16
    %s19 = sphi 0, %s17
    %s20 = sphi 0, %s18
    %s21 = sphi 0, %s19
    %s33 = sphi 0, %s35
    %s36 = sphi 0, %s33
    %s37 = sphi 0, %s36
    %s53 = sphi 0, %s37
    %s59 = sphi 0, %s61
    %s62 = sphi 0, %s59
    %s63 = sphi 0, %s62
    %s79 = sphi 0, %s63
    %s85 = sphi 0, %s87
    %s88 = sphi 0, %s85
    %s89 = sphi 0, %s88
    %s105 = sphi 0, %s89
    %s113 = sphi 0, %s115
    %s116 = sphi 0, %s113
    %s117 = sphi 0, %s116
    %s133 = sphi 0, %s117
  $region4: #{_lambda_.15} parent=0 // loop_header_branch
    %12 = sbr.rel (%p10) target = $region8
  $region5: #{_lambda_.15} parent=0 // loop_body
    %s14 = ssub.s32 %s9, 1
    %s15 = ssub.s32 %s9, 2
    %s22 = sadd.s32 1, %s17
    %p23 = scmp.ge.s32.totalorder %s22, 1
    %s24 = scalar_select %p23, 0, %s22
    %s25 = sadd.s32 1, %s16
    %s26 = scalar_select %p23, %s25, %s16
    %p27 = scmp.ge.s32.totalorder %s26, 2
    %s28 = scalar_select %p27, 0, %s26
    %s29 = ssub.s32 %s16, %s28
    %s30 = ssub.s32 %s17, %s24
    %s31 = sor.u32 %s29, %s30
    %p32 = scmp.eq.s32.totalorder %s31, 0
    %s34 = sadd.s32 %s33, 1
    %s35 = scalar_select %p32, %s33, %s34
    %p38 = pneg %p32
    %p39 = scmp.eq.s32.totalorder %s9, 1
    %p40 = por %p38, %p39
    %p41 = scmp.ne.s32.totalorder %s33, %s36
    %p42 = scmp.eq.s32.totalorder %s9, 0
    %p43 = por %p41, %p42
    %p44 = scmp.ne.s32.totalorder %s33, %s36
    %p45 = scmp.eq.s32.totalorder %s14, 1
    %p46 = por %p44, %p45
    %p47 = scmp.ne.s32.totalorder %s36, %s37
    %p48 = scmp.eq.s32.totalorder %s14, 0
    %p49 = por %p47, %p48
    %p50 = scmp.ne.s32.totalorder %s36, %s37
    %p51 = scmp.eq.s32.totalorder %s15, 1
    %p52 = por %p50, %p51
    %p54 = scmp.ne.s32.totalorder %s37, %s53
    %p55 = scmp.eq.s32.totalorder %s15, 0
    %p56 = por %p54, %p55
    %s57 = ssub.s32 %s16, %s28
    %p58 = scmp.eq.s32.totalorder %s57, 0
    %s60 = sadd.s32 %s59, 1
    %s61 = scalar_select %p58, %s59, %s60
    %p64 = pneg %p58
    %p65 = scmp.eq.s32.totalorder %s9, 1
    %p66 = por %p64, %p65
    %p67 = scmp.ne.s32.totalorder %s59, %s62
    %p68 = scmp.eq.s32.totalorder %s9, 0
    %p69 = por %p67, %p68
    %p70 = scmp.ne.s32.totalorder %s59, %s62
    %p71 = scmp.eq.s32.totalorder %s14, 1
    %p72 = por %p70, %p71
    %p73 = scmp.ne.s32.totalorder %s62, %s63
    %p74 = scmp.eq.s32.totalorder %s14, 0
    %p75 = por %p73, %p74
    %p76 = scmp.ne.s32.totalorder %s62, %s63
    %p77 = scmp.eq.s32.totalorder %s15, 1
    %p78 = por %p76, %p77
    %p80 = scmp.ne.s32.totalorder %s63, %s79
    %p81 = scmp.eq.s32.totalorder %s15, 0
    %p82 = por %p80, %p81
    %s83 = ssub.s32 %s16, %s28
    %p84 = scmp.eq.s32.totalorder %s83, 0
    %s86 = sadd.s32 %s85, 1
    %s87 = scalar_select %p84, %s85, %s86
    %p90 = pneg %p84
    %p91 = scmp.eq.s32.totalorder %s9, 1
    %p92 = por %p90, %p91
    %p93 = scmp.ne.s32.totalorder %s85, %s88
    %p94 = scmp.eq.s32.totalorder %s9, 0
    %p95 = por %p93, %p94
    %p96 = scmp.ne.s32.totalorder %s85, %s88
    %p97 = scmp.eq.s32.totalorder %s14, 1
    %p98 = por %p96, %p97
    %p99 = scmp.ne.s32.totalorder %s88, %s89
    %p100 = scmp.eq.s32.totalorder %s14, 0
    %p101 = por %p99, %p100
    %p102 = scmp.ne.s32.totalorder %s88, %s89
    %p103 = scmp.eq.s32.totalorder %s15, 1
    %p104 = por %p102, %p103
    %p106 = scmp.ne.s32.totalorder %s89, %s105
    %p107 = scmp.eq.s32.totalorder %s15, 0
    %p108 = por %p106, %p107
    %s109 = ssub.s32 %s16, %s28
    %s110 = ssub.s32 %s17, %s24
    %s111 = sor.u32 %s109, %s110
    %p112 = scmp.eq.s32.totalorder %s111, 0
    %s114 = sadd.s32 %s113, 1
    %s115 = scalar_select %p112, %s113, %s114
    %p118 = pneg %p112
    %p119 = scmp.eq.s32.totalorder %s9, 1
    %p120 = por %p118, %p119
    %p121 = scmp.ne.s32.totalorder %s113, %s116
    %p122 = scmp.eq.s32.totalorder %s9, 0
    %p123 = por %p121, %p122
    %p124 = scmp.ne.s32.totalorder %s113, %s116
    %p125 = scmp.eq.s32.totalorder %s14, 1
    %p126 = por %p124, %p125
    %p127 = scmp.ne.s32.totalorder %s116, %s117
    %p128 = scmp.eq.s32.totalorder %s14, 0
    %p129 = por %p127, %p128
    %p130 = scmp.ne.s32.totalorder %s116, %s117
    %p131 = scmp.eq.s32.totalorder %s15, 1
    %p132 = por %p130, %p131
    %p134 = scmp.ne.s32.totalorder %s117, %s133
    %p135 = scmp.eq.s32.totalorder %s15, 0
    %p136 = por %p134, %p135
    %p137 = scmp.le.s32.totalorder 1, %s9
    %p138 = scmp.lt.s32.totalorder %s9, 3
    %p139 = pnand %p137, %p138
    %p140 = pneg %p139
    // Predicated region
    $region9: #{_lambda_.15} parent=5 // pred_check
      _
    $region10: #{_lambda_.15} parent=5 // pred_check_branch
      %142 = sbr.rel (%p139) target = $region12
    $region11: #{_lambda_.15} parent=5 // pred_region
      %s143 = ssub.s32 %s9, 1
    $region12: #{_lambda_.15} parent=5 // pred_fallthru
      _
    %p144 = scmp.lt.s32.totalorder %s9, 2
    // Predicated region
    $region13: #{_lambda_.15} parent=5 // pred_check
      %p145 = pneg %p144
    $region14: #{_lambda_.15} parent=5 // pred_check_branch
      %147 = sbr.rel (%p145) target = $region16
    $region15: #{_lambda_.15} parent=5 // pred_region
      // Predicated region
      $region17: #{_lambda_.15} parent=15 // pred_check
        %p148 = pneg %p43
      $region18: #{_lambda_.15} parent=15 // pred_check_branch
        %150 = sbr.rel (%p148) target = $region20
      $region19: #{_lambda_.15} parent=15 // pred_region
        %s151 = smul.u32 2, %s17
        %p152 = scmp.lt.s32.totalorder %s16, 1
        %s153 = scalar_select %p152, %s16, 1
        %p154 = scmp.lt.s32.totalorder %s151, 1
        %s155 = scalar_select %p154, %s151, 1
        %s156 = smul.addr %s153, 2
        %s157 = sadd.s32 %s155, %s156
        %s158 = smul.addr %s157, 4
        %s159 = scalar_lea.vmem %s0, %s158
        %s160 = smul.u32 2, %s17
      $region20: #{_lambda_.15} parent=15 // pred_fallthru
        _
      // Predicated region
      $region21: #{_lambda_.15} parent=15 // pred_check
        %p161 = pneg %p69
      $region22: #{_lambda_.15} parent=15 // pred_check_branch
        %163 = sbr.rel (%p161) target = $region24
      $region23: #{_lambda_.15} parent=15 // pred_region
        %p164 = scmp.lt.s32.totalorder %s16, 1
        %s165 = scalar_select %p164, %s16, 1
        %s166 = smul.addr %s165, 2
        %s167 = smul.addr %s166, 4
        %s168 = scalar_lea.vmem %s1, %s167
      $region24: #{_lambda_.15} parent=15 // pred_fallthru
        _
      // Predicated region
      $region25: #{_lambda_.15} parent=15 // pred_check
        %p169 = pneg %p95
      $region26: #{_lambda_.15} parent=15 // pred_check_branch
        %171 = sbr.rel (%p169) target = $region28
      $region27: #{_lambda_.15} parent=15 // pred_region
        %p172 = scmp.lt.s32.totalorder %s16, 1
        %s173 = scalar_select %p172, %s16, 1
        %s174 = scalar_lea.vmem %s2, %s173
      $region28: #{_lambda_.15} parent=15 // pred_fallthru
        _
    $region16: #{_lambda_.15} parent=5 // pred_fallthru
      _
    %p175 = scmp.le.s32.totalorder 1, %s9
    %p176 = scmp.lt.s32.totalorder %s9, 3
    %p177 = pnand %p175, %p176
    %p178 = pneg %p177
    // Predicated region
    $region29: #{_lambda_.15} parent=5 // pred_check
      _
    $region30: #{_lambda_.15} parent=5 // pred_check_branch
      %180 = sbr.rel (%p177) target = $region32
    $region31: #{_lambda_.15} parent=5 // pred_region
      %s181 = ssub.s32 %s9, 1
      %s182 = smul.u32 2, %s19
      %p183 = scmp.lt.s32.totalorder %s18, 1
      %s184 = scalar_select %p183, %s18, 1
      %p185 = scmp.lt.s32.totalorder %s182, 1
      %s186 = scalar_select %p185, %s182, 1
      %s187 = smul.addr %s184, 2
      %s188 = sadd.s32 %s186, %s187
      %s189 = smul.addr %s188, 4
      %s190 = scalar_lea.vmem %s0, %s189
      %p191 = pneg %p49
      %p192 = pneg %p46
      %p193 = scmp.lt.s32.totalorder %s18, 1
      %s194 = scalar_select %p193, %s18, 1
      %s195 = smul.addr %s194, 2
      %s196 = smul.addr %s195, 4
      %s197 = scalar_lea.vmem %s1, %s196
      %p198 = pneg %p75
      %p199 = pneg %p72
      %p200 = scmp.lt.s32.totalorder %s18, 1
      %s201 = scalar_select %p200, %s18, 1
      %s202 = scalar_lea.vmem %s2, %s201
      %p203 = pneg %p101
      %p204 = pneg %p98
      %p205 = pneg %p129
      %p206 = pneg %p126
      %s207 = smul.u32 2, %s19
      %p208 = scmp.lt.s32.totalorder %s18, 1
      %s209 = scalar_select %p208, %s18, 1
      %p210 = scmp.lt.s32.totalorder %s207, 1
      %s211 = scalar_select %p210, %s207, 1
      %s212 = smul.addr %s209, 2
      %s213 = sadd.s32 %s211, %s212
      %s214 = smul.addr %s213, 8
      %s215 = scalar_lea.vmem %s3, %s214
      %s216 = smul.u32 2, %s19
      %p217 = scmp.lt.s32.totalorder %s18, 1
      %s218 = scalar_select %p217, %s18, 1
      %p219 = scmp.lt.s32.totalorder %s216, 1
      %s220 = scalar_select %p219, %s216, 1
      %s221 = smul.addr %s218, 2
      %s222 = sadd.s32 %s220, %s221
      %s223 = smul.addr %s222, 4
      %s224 = scalar_lea.vmem %s0, %s223
      %s225 = smul.u32 2, %s19
      %p226 = scmp.lt.s32.totalorder %s18, 1
      %s227 = scalar_select %p226, %s18, 1
      %s228 = smul.addr %s227, 2
      %s229 = smul.addr %s228, 4
      %s230 = scalar_lea.vmem %s1, %s229
      %p231 = scmp.lt.s32.totalorder %s18, 1
      %s232 = scalar_select %p231, %s18, 1
      %s233 = scalar_lea.vmem %s2, %s232
      %s234 = smul.u32 2, %s19
      %p235 = scmp.lt.s32.totalorder %s18, 1
      %s236 = scalar_select %p235, %s18, 1
      %p237 = scmp.lt.s32.totalorder %s234, 1
      %s238 = scalar_select %p237, %s234, 1
      %s239 = smul.addr %s236, 2
      %s240 = sadd.s32 %s238, %s239
      %s241 = smul.addr %s240, 8
      %s242 = scalar_lea.vmem %s3, %s241
      %s243 = smul.u32 2, %s19
      %v245 = vld [vmem:[%s224] sm:$0xf]
      %v246 = vld [vmem:[%s224 + $0x4] sm:$0xf]
      %v247 = vld [vmem:[%s230] sm:$0xf]
      %v248 = vld [vmem:[%s230 + $0x4] sm:$0xf]
      %v251 = vunpack.c.l.b16 %v245
      %v252 = vunpack.c.l.b16 %v246
      %v253 = vpack.c.b16 %v252, %v251
      %v257 = vunpack.c.l.b16 %v247
      %v258 = vunpack.c.l.b16 %v248
      %v259 = vpack.c.b16 %v258, %v257
      %261 = vmatprep.subr.bf16.mxu0 0
      %262 = vmatpush1.bf16.xpose.msra.mxu0 %v259
      %263 = vmatprep.subr.bf16.mxu0 0
      %264 = vmatpush1.bf16.xpose.msra.mxu0 0
      %265 = vmatprep.subr.bf16.mxu0 0
      %266 = vmatpush1.bf16.xpose.msra.mxu0 0
      %267 = vmatprep.subr.bf16.mxu0 0
      %268 = vmatpush1.bf16.xpose.msra.mxu0 0
      %269 = vmatprep.subr.bf16.mxu0 0
      %270 = vmatpush1.bf16.xpose.msra.mxu0 0
      %271 = vmatprep.subr.bf16.mxu0 0
      %272 = vmatpush1.bf16.xpose.msra.mxu0 0
      %273 = vmatprep.subr.bf16.mxu0 0
      %274 = vmatpush1.bf16.xpose.msra.mxu0 0
      %275 = vmatprep.subr.bf16.mxu0 0
      %276 = vmatpush1.bf16.xpose.msra.mxu0 0
      %277 = vmatprep.subr.bf16.mxu0 0
      %278 = vmatpush1.bf16.xpose.msra.mxu0 0
      %279 = vmatprep.subr.bf16.mxu0 0
      %280 = vmatpush1.bf16.xpose.msra.mxu0 0
      %281 = vmatprep.subr.bf16.mxu0 0
      %282 = vmatpush1.bf16.xpose.msra.mxu0 0
      %283 = vmatprep.subr.bf16.mxu0 0
      %284 = vmatpush1.bf16.xpose.msra.mxu0 0
      %285 = vmatprep.subr.bf16.mxu0 0
      %286 = vmatpush1.bf16.xpose.msra.mxu0 0
      %287 = vmatprep.subr.bf16.mxu0 0
      %288 = vmatpush1.bf16.xpose.msra.mxu0 0
      %289 = vmatprep.subr.bf16.mxu0 0
      %290 = vmatpush1.bf16.xpose.msra.mxu0 0
      %291 = vmatprep.subr.bf16.mxu0 0
      %292 = vmatpush1.bf16.xpose.msra.mxu0 0
      %293 = vmatprep.mubr.bf16.mxu0 0
      %294 = vmatmul.mubr.bf16.gmra.mrb[0].mxu0 %v253
      %v295 = vpop.f32.mrb[0].mxu0
      %v296 = vadd.f32 0.0, %v295
      %v297 = vpop.f32.mrb[0].mxu0
      %v298 = vpop.f32.mrb[0].mxu0
      %v299 = vadd.f32 0.0, %v298
      %v300 = vpop.f32.mrb[0].mxu0
      %301 = vdwg.mxu0
      %v302 = vunpack.c.l.bf16 %v245
      %v303 = vunpack.c.l.bf16 %v246
      %v304 = vmul.f32 %v302, %v302
      %v305 = vmul.f32 %v303, %v303
      %306 = vadd.xlane.f32.xlu0 %v304
      %v307 = vpop.xlane.xlu0 %306
      %308 = vadd.xlane.f32.xlu0 %v305
      %v309 = vpop.xlane.xlu0 %308
      %v310 = vmul.f32 %v296, 2.0
      %v311 = vmul.f32 %v299, 2.0
      %v312 = vsub.f32 %v310, %v307
      %v313 = vsub.f32 %v311, %v309
      %v314 = vld [vmem:[%s233] sm:$0x1]
      %v316 = vlaneseq
      %v317 = vshrl.u32 %v316, 7
      %v318 = vsub.s32 0, %v317
      %v319 = vrot.slane %v314, %v318
      %v321 = vsub.f32 %v312, %v319
      %v322 = vsub.f32 %v313, %v319
      %vm323 = vcmask 130048
      %324 = vst.msk [vmem:[%s242] sm:$0xff] %vm323, %v321
      %325 = vst.msk [vmem:[%s242 + $0x8] sm:$0xff] %vm323, %v322
      %s326 = smul.u32 2, %s19
      %p327 = scmp.lt.s32.totalorder %s18, 1
      %s328 = scalar_select %p327, %s18, 1
      %p329 = scmp.lt.s32.totalorder %s326, 1
      %s330 = scalar_select %p329, %s326, 1
      %s331 = smul.addr %s328, 2
      %s332 = sadd.s32 %s330, %s331
      %s333 = smul.addr %s332, 8
      %s334 = scalar_lea.vmem %s3, %s333
      // Predicated region
      $region33: #{_lambda_.15} parent=31 // pred_check
        %p335 = pneg %p126
      $region34: #{_lambda_.15} parent=31 // pred_check_branch
        %337 = sbr.rel (%p335) target = $region36
      $region35: #{_lambda_.15} parent=31 // pred_region
        %s338 = smul.u32 2, %s19
      $region36: #{_lambda_.15} parent=31 // pred_fallthru
        _
    $region32: #{_lambda_.15} parent=5 // pred_fallthru
      _
    %p339 = scmp.le.s32.totalorder 2, %s9
    // Predicated region
    $region37: #{_lambda_.15} parent=5 // pred_check
      %p340 = pneg %p339
    $region38: #{_lambda_.15} parent=5 // pred_check_branch
      %342 = sbr.rel (%p340) target = $region40
    $region39: #{_lambda_.15} parent=5 // pred_region
      %s343 = ssub.s32 %s9, 2
      // Predicated region
      $region41: #{_lambda_.15} parent=39 // pred_check
        %p344 = pneg %p132
      $region42: #{_lambda_.15} parent=39 // pred_check_branch
        %346 = sbr.rel (%p344) target = $region44
      $region43: #{_lambda_.15} parent=39 // pred_region
        %s347 = smul.u32 2, %s21
        %p348 = scmp.lt.s32.totalorder %s20, 1
        %s349 = scalar_select %p348, %s20, 1
        %p350 = scmp.lt.s32.totalorder %s347, 1
        %s351 = scalar_select %p350, %s347, 1
        %s352 = smul.addr %s349, 2
        %s353 = sadd.s32 %s351, %s352
        %s354 = smul.addr %s353, 8
        %s355 = scalar_lea.vmem %s3, %s354
      $region44: #{_lambda_.15} parent=39 // pred_fallthru
        _
    $region40: #{_lambda_.15} parent=5 // pred_fallthru
      _
  $region6: #{_lambda_.15} parent=0 // loop_footer
    %s13 = sadd.s32 1, %s9
  $region7: #{_lambda_.15} parent=0 // loop_footer_branch
    %8 = sbr.rel target = $region3
  $region8: #{_lambda_.15} parent=0 // loop_exit
    _

// kernel: _lambda_.14
$region0: #{_lambda_.14}
  #allocation0 [shape = 'u32[]', space=smem, size = 0x4, offset = 0x4, fixed_abs, tag = 'smem constant byte address 0x4 - core index']
  #allocation1 [shape = 'u32[144,128]{1,0:T(1,128)}', space=vmem, size = 0x12000, scoped, tag = 'internal scratch']
  %s0 = inlined_call_operand.vmem [shape: bf16[4,32,64], index: 0, kind: input, shape index: {}]
  %s1 = inlined_call_operand.vmem [shape: bf16[32,64], index: 1, kind: input, shape index: {}]
  %s2 = inlined_call_operand.vmem [shape: bf16[64,128], index: 2, kind: input, shape index: {}]
  %s3 = inlined_call_operand.vmem [shape: bf16[64,128], index: 3, kind: input, shape index: {}]
  %s4 = inlined_call_operand.vmem [shape: f32[1,128], index: 4, kind: input, shape index: {}]
  %s5 = inlined_call_operand.vmem [shape: bf16[32,128], index: 5, kind: output, shape index: {}]
  %s6 = sld [smem:[#allocation0]]
  $region30: #{_lambda_.14} parent=0
    _
  %s8 = ssub.s32 1, %s6
  %s9 = scalar_select 0, %s8, %s6
  // Predicated region
  $region2: #{_lambda_.14} parent=0 // pred_check
    _
  $region3: #{_lambda_.14} parent=0 // pred_check_branch
    %11 = sbr.rel (0) target = $region5
  $region4: #{_lambda_.14} parent=0 // pred_region
    _
  $region5: #{_lambda_.14} parent=0 // pred_fallthru
    _
  // Predicated region
  $region6: #{_lambda_.14} parent=0 // pred_check
    _
  $region7: #{_lambda_.14} parent=0 // pred_check_branch
    %13 = sbr.rel (0) target = $region9
  $region8: #{_lambda_.14} parent=0 // pred_region
    _
  $region9: #{_lambda_.14} parent=0 // pred_fallthru
    _
  // Predicated region
  $region10: #{_lambda_.14} parent=0 // pred_check
    _
  $region11: #{_lambda_.14} parent=0 // pred_check_branch
    %15 = sbr.rel (0) target = $region13
  $region12: #{_lambda_.14} parent=0 // pred_region
    _
  $region13: #{_lambda_.14} parent=0 // pred_fallthru
    _
  // Predicated region
  $region14: #{_lambda_.14} parent=0 // pred_check
    _
  $region15: #{_lambda_.14} parent=0 // pred_check_branch
    %17 = sbr.rel (0) target = $region17
  $region16: #{_lambda_.14} parent=0 // pred_region
    _
  $region17: #{_lambda_.14} parent=0 // pred_fallthru
    _
  // Predicated region
  $region18: #{_lambda_.14} parent=0 // pred_check
    _
  $region19: #{_lambda_.14} parent=0 // pred_check_branch
    %19 = sbr.rel (0) target = $region21
  $region20: #{_lambda_.14} parent=0 // pred_region
    _
  $region21: #{_lambda_.14} parent=0 // pred_fallthru
    _
  %v21 = vld [vmem:[%s0] sm:$0xf]
  %v22 = vld [vmem:[%s0 + $0x4] sm:$0xf]
  %v23 = vld [vmem:[%s0 + $0x8] sm:$0xf]
  %v24 = vld [vmem:[%s0 + $0xc] sm:$0xf]
  %v25 = vld [vmem:[%s0 + $0x10] sm:$0xf]
  %v26 = vld [vmem:[%s0 + $0x14] sm:$0xf]
  %v27 = vld [vmem:[%s0 + $0x18] sm:$0xf]
  %v28 = vld [vmem:[%s0 + $0x1c] sm:$0xf]
  %v29 = vld [vmem:[%s0 + $0x20] sm:$0xf]
  %v30 = vld [vmem:[%s0 + $0x24] sm:$0xf]
  %v31 = vld [vmem:[%s0 + $0x28] sm:$0xf]
  %v32 = vld [vmem:[%s0 + $0x2c] sm:$0xf]
  %v33 = vld [vmem:[%s0 + $0x30] sm:$0xf]
  %v34 = vld [vmem:[%s0 + $0x34] sm:$0xf]
  %v35 = vld [vmem:[%s0 + $0x38] sm:$0xf]
  %v36 = vld [vmem:[%s0 + $0x3c] sm:$0xf]
  %v37 = vld [vmem:[%s2] sm:$0xf]
  %v38 = vld [vmem:[%s2 + $0x4] sm:$0xf]
  %v39 = vld [vmem:[%s2 + $0x8] sm:$0xf]
  %v40 = vld [vmem:[%s2 + $0xc] sm:$0xf]
  %v41 = vld [vmem:[%s2 + $0x10] sm:$0xf]
  %v42 = vld [vmem:[%s2 + $0x14] sm:$0xf]
  %v43 = vld [vmem:[%s2 + $0x18] sm:$0xf]
  %v44 = vld [vmem:[%s2 + $0x1c] sm:$0xf]
  %v61 = vunpack.c.l.b16 %v21
  %v62 = vunpack.c.l.b16 %v22
  %v63 = vunpack.c.l.b16 %v23
  %v64 = vunpack.c.l.b16 %v24
  %v65 = vunpack.c.l.b16 %v25
  %v66 = vunpack.c.l.b16 %v26
  %v67 = vunpack.c.l.b16 %v27
  %v68 = vunpack.c.l.b16 %v28
  %v69 = vunpack.c.l.b16 %v29
  %v70 = vunpack.c.l.b16 %v30
  %v71 = vunpack.c.l.b16 %v31
  %v72 = vunpack.c.l.b16 %v32
  %v73 = vunpack.c.l.b16 %v33
  %v74 = vunpack.c.l.b16 %v34
  %v75 = vunpack.c.l.b16 %v35
  %v76 = vunpack.c.l.b16 %v36
  %v77 = vpack.c.b16 %v62, %v61
  %v78 = vpack.c.b16 %v64, %v63
  %v79 = vpack.c.b16 %v66, %v65
  %v80 = vpack.c.b16 %v68, %v67
  %v81 = vpack.c.b16 %v70, %v69
  %v82 = vpack.c.b16 %v72, %v71
  %v83 = vpack.c.b16 %v74, %v73
  %v84 = vpack.c.b16 %v76, %v75
  %v93 = vunpack.c.l.b16 %v37
  %v94 = vunpack.c.l.b16 %v38
  %v95 = vunpack.c.l.b16 %v39
  %v96 = vunpack.c.l.b16 %v40
  %v97 = vunpack.c.l.b16 %v41
  %v98 = vunpack.c.l.b16 %v42
  %v99 = vunpack.c.l.b16 %v43
  %v100 = vunpack.c.l.b16 %v44
  %v101 = vpack.c.b16 %v94, %v93
  %v102 = vpack.c.b16 %v96, %v95
  %v103 = vpack.c.b16 %v98, %v97
  %v104 = vpack.c.b16 %v100, %v99
  %vm109 = vcmask 523264
  %v111 = vsel %vm109, %v77, 0
  %v114 = vsel %vm109, %v78, 0
  %v117 = vsel %vm109, %v79, 0
  %v120 = vsel %vm109, %v80, 0
  %v123 = vsel %vm109, %v81, 0
  %v126 = vsel %vm109, %v82, 0
  %v129 = vsel %vm109, %v83, 0
  %v132 = vsel %vm109, %v84, 0
  %134 = vmatprep.subr.bf16.mxu0 0
  %135 = vmatpush1.bf16.msra.mxu0 %v101
  %136 = vmatprep.subr.bf16.mxu0 0
  %137 = vmatpush1.bf16.msra.mxu0 %v102
  %138 = vmatprep.subr.bf16.mxu0 0
  %139 = vmatpush1.bf16.msra.mxu0 %v103
  %140 = vmatprep.subr.bf16.mxu0 0
  %141 = vmatpush1.bf16.msra.mxu0 %v104
  %142 = vmatprep.subr.bf16.mxu0 0
  %143 = vmatpush1.bf16.msra.mxu0 0
  %144 = vmatprep.subr.bf16.mxu0 0
  %145 = vmatpush1.bf16.msra.mxu0 0
  %146 = vmatprep.subr.bf16.mxu0 0
  %147 = vmatpush1.bf16.msra.mxu0 0
  %148 = vmatprep.subr.bf16.mxu0 0
  %149 = vmatpush1.bf16.msra.mxu0 0
  %150 = vmatprep.subr.bf16.mxu0 0
  %151 = vmatpush1.bf16.msra.mxu0 0
  %152 = vmatprep.subr.bf16.mxu0 0
  %153 = vmatpush1.bf16.msra.mxu0 0
  %154 = vmatprep.subr.bf16.mxu0 0
  %155 = vmatpush1.bf16.msra.mxu0 0
  %156 = vmatprep.subr.bf16.mxu0 0
  %157 = vmatpush1.bf16.msra.mxu0 0
  %158 = vmatprep.subr.bf16.mxu0 0
  %159 = vmatpush1.bf16.msra.mxu0 0
  %160 = vmatprep.subr.bf16.mxu0 0
  %161 = vmatpush1.bf16.msra.mxu0 0
  %162 = vmatprep.subr.bf16.mxu0 0
  %163 = vmatpush1.bf16.msra.mxu0 0
  %164 = vmatprep.subr.bf16.mxu0 0
  %165 = vmatpush1.bf16.msra.mxu0 0
  %166 = vmatprep.mubr.bf16.mxu0 0
  %167 = vmatmul.mubr.bf16.gmra.mrb[0].mxu0 %v111
  %v168 = vpop.f32.mrb[0].mxu0
  %v169 = vadd.f32 0.0, %v168
  %v170 = vpop.f32.mrb[0].mxu0
  %v171 = vpop.f32.mrb[0].mxu0
  %v172 = vadd.f32 0.0, %v171
  %v173 = vpop.f32.mrb[0].mxu0
  %174 = vmatprep.mubr.bf16.mxu0 0
  %175 = vmatmul.mubr.bf16.gmra.mrb[0].mxu0 %v114
  %v176 = vpop.f32.mrb[0].mxu0
  %v177 = vadd.f32 0.0, %v176
  %v178 = vpop.f32.mrb[0].mxu0
  %v179 = vpop.f32.mrb[0].mxu0
  %v180 = vadd.f32 0.0, %v179
  %v181 = vpop.f32.mrb[0].mxu0
  %182 = vmatprep.mubr.bf16.mxu0 0
  %183 = vmatmul.mubr.bf16.gmra.mrb[0].mxu0 %v117
  %v184 = vpop.f32.mrb[0].mxu0
  %v185 = vadd.f32 0.0, %v184
  %v186 = vpop.f32.mrb[0].mxu0
  %v187 = vpop.f32.mrb[0].mxu0
  %v188 = vadd.f32 0.0, %v187
  %v189 = vpop.f32.mrb[0].mxu0
  %190 = vmatprep.mubr.bf16.mxu0 0
  %191 = vmatmul.mubr.bf16.gmra.mrb[0].mxu0 %v120
  %v192 = vpop.f32.mrb[0].mxu0
  %v193 = vadd.f32 0.0, %v192
  %v194 = vpop.f32.mrb[0].mxu0
  %v195 = vpop.f32.mrb[0].mxu0
  %v196 = vadd.f32 0.0, %v195
  %v197 = vpop.f32.mrb[0].mxu0
  %198 = vmatprep.mubr.bf16.mxu0 0
  %199 = vmatmul.mubr.bf16.gmra.mrb[0].mxu0 %v123
  %v200 = vpop.f32.mrb[0].mxu0
  %v201 = vadd.f32 0.0, %v200
  %v202 = vpop.f32.mrb[0].mxu0
  %v203 = vpop.f32.mrb[0].mxu0
  %v204 = vadd.f32 0.0, %v203
  %v205 = vpop.f32.mrb[0].mxu0
  %206 = vmatprep.mubr.bf16.mxu0 0
  %207 = vmatmul.mubr.bf16.gmra.mrb[0].mxu0 %v126
  %v208 = vpop.f32.mrb[0].mxu0
  %v209 = vadd.f32 0.0, %v208
  %v210 = vpop.f32.mrb[0].mxu0
  %v211 = vpop.f32.mrb[0].mxu0
  %v212 = vadd.f32 0.0, %v211
  %v213 = vpop.f32.mrb[0].mxu0
  %214 = vmatprep.mubr.bf16.mxu0 0
  %215 = vmatmul.mubr.bf16.gmra.mrb[0].mxu0 %v129
  %v216 = vpop.f32.mrb[0].mxu0
  %v217 = vadd.f32 0.0, %v216
  %v218 = vpop.f32.mrb[0].mxu0
  %v219 = vpop.f32.mrb[0].mxu0
  %v220 = vadd.f32 0.0, %v219
  %v221 = vpop.f32.mrb[0].mxu0
  %222 = vmatprep.mubr.bf16.mxu0 0
  %223 = vmatmul.mubr.bf16.gmra.mrb[0].mxu0 %v132
  %v224 = vpop.f32.mrb[0].mxu0
  %v225 = vadd.f32 0.0, %v224
  %v226 = vpop.f32.mrb[0].mxu0
  %v227 = vpop.f32.mrb[0].mxu0
  %v228 = vadd.f32 0.0, %v227
  %v229 = vpop.f32.mrb[0].mxu0
  %230 = vdwg.mxu0
  %v231 = vmax.f32 %v169, %v185
  %v232 = vmax.f32 %v172, %v188
  %v233 = vmax.f32 %v177, %v193
  %v234 = vmax.f32 %v180, %v196
  %v235 = vmax.f32 %v231, %v201
  %v236 = vmax.f32 %v232, %v204
  %v237 = vmax.f32 %v233, %v209
  %v238 = vmax.f32 %v234, %v212
  %v239 = vmax.f32 %v235, %v217
  %v240 = vmax.f32 %v236, %v220
  %v241 = vmax.f32 %v237, %v225
  %v242 = vmax.f32 %v238, %v228
  %v243 = vld [vmem:[%s1] sm:$0xf]
  %v244 = vld [vmem:[%s1 + $0x4] sm:$0xf]
  %v245 = vld [vmem:[%s1 + $0x8] sm:$0xf]
  %v246 = vld [vmem:[%s1 + $0xc] sm:$0xf]
  %v247 = vld [vmem:[%s3] sm:$0xf]
  %v248 = vld [vmem:[%s3 + $0x4] sm:$0xf]
  %v249 = vld [vmem:[%s3 + $0x8] sm:$0xf]
  %v250 = vld [vmem:[%s3 + $0xc] sm:$0xf]
  %v251 = vld [vmem:[%s3 + $0x10] sm:$0xf]
  %v252 = vld [vmem:[%s3 + $0x14] sm:$0xf]
  %v253 = vld [vmem:[%s3 + $0x18] sm:$0xf]
  %v254 = vld [vmem:[%s3 + $0x1c] sm:$0xf]
  %v259 = vunpack.c.l.b16 %v243
  %v260 = vunpack.c.l.b16 %v244
  %v261 = vunpack.c.l.b16 %v245
  %v262 = vunpack.c.l.b16 %v246
  %v263 = vpack.c.b16 %v260, %v259
  %v264 = vpack.c.b16 %v262, %v261
  %v273 = vunpack.c.l.b16 %v247
  %v274 = vunpack.c.l.b16 %v248
  %v275 = vunpack.c.l.b16 %v249
  %v276 = vunpack.c.l.b16 %v250
  %v277 = vunpack.c.l.b16 %v251
  %v278 = vunpack.c.l.b16 %v252
  %v279 = vunpack.c.l.b16 %v253
  %v280 = vunpack.c.l.b16 %v254
  %v281 = vpack.c.b16 %v274, %v273
  %v282 = vpack.c.b16 %v276, %v275
  %v283 = vpack.c.b16 %v278, %v277
  %v284 = vpack.c.b16 %v280, %v279
  %v290 = vsel %vm109, %v263, 0
  %v293 = vsel %vm109, %v264, 0
  %295 = vmatprep.subr.bf16.mxu0 0
  %296 = vmatpush1.bf16.msra.mxu0 %v281
  %297 = vmatprep.subr.bf16.mxu0 0
  %298 = vmatpush1.bf16.msra.mxu0 %v282
  %299 = vmatprep.subr.bf16.mxu0 0
  %300 = vmatpush1.bf16.msra.mxu0 %v283
  %301 = vmatprep.subr.bf16.mxu0 0
  %302 = vmatpush1.bf16.msra.mxu0 %v284
  %303 = vmatprep.subr.bf16.mxu0 0
  %304 = vmatpush1.bf16.msra.mxu0 0
  %305 = vmatprep.subr.bf16.mxu0 0
  %306 = vmatpush1.bf16.msra.mxu0 0
  %307 = vmatprep.subr.bf16.mxu0 0
  %308 = vmatpush1.bf16.msra.mxu0 0
  %309 = vmatprep.subr.bf16.mxu0 0
  %310 = vmatpush1.bf16.msra.mxu0 0
  %311 = vmatprep.subr.bf16.mxu0 0
  %312 = vmatpush1.bf16.msra.mxu0 0
  %313 = vmatprep.subr.bf16.mxu0 0
  %314 = vmatpush1.bf16.msra.mxu0 0
  %315 = vmatprep.subr.bf16.mxu0 0
  %316 = vmatpush1.bf16.msra.mxu0 0
  %317 = vmatprep.subr.bf16.mxu0 0
  %318 = vmatpush1.bf16.msra.mxu0 0
  %319 = vmatprep.subr.bf16.mxu0 0
  %320 = vmatpush1.bf16.msra.mxu0 0
  %321 = vmatprep.subr.bf16.mxu0 0
  %322 = vmatpush1.bf16.msra.mxu0 0
  %323 = vmatprep.subr.bf16.mxu0 0
  %324 = vmatpush1.bf16.msra.mxu0 0
  %325 = vmatprep.subr.bf16.mxu0 0
  %326 = vmatpush1.bf16.msra.mxu0 0
  %327 = vmatprep.mubr.bf16.mxu0 0
  %328 = vmatmul.mubr.bf16.gmra.mrb[0].mxu0 %v290
  %v329 = vpop.f32.mrb[0].mxu0
  %v330 = vadd.f32 0.0, %v329
  %v331 = vpop.f32.mrb[0].mxu0
  %v332 = vpop.f32.mrb[0].mxu0
  %v333 = vadd.f32 0.0, %v332
  %v334 = vpop.f32.mrb[0].mxu0
  %335 = vmatprep.mubr.bf16.mxu0 0
  %336 = vmatmul.mubr.bf16.gmra.mrb[0].mxu0 %v293
  %v337 = vpop.f32.mrb[0].mxu0
  %v338 = vadd.f32 0.0, %v337
  %v339 = vpop.f32.mrb[0].mxu0
  %v340 = vpop.f32.mrb[0].mxu0
  %v341 = vadd.f32 0.0, %v340
  %v342 = vpop.f32.mrb[0].mxu0
  %343 = vdwg.mxu0
  %v344 = vadd.f32 %v239, %v330
  %v345 = vadd.f32 %v240, %v333
  %v346 = vadd.f32 %v241, %v338
  %v347 = vadd.f32 %v242, %v341
  %v348 = vld [vmem:[%s4] sm:$0x1]
  %v350 = vlaneseq
  %v351 = vshrl.u32 %v350, 7
  %v352 = vsub.s32 0, %v351
  %v353 = vrot.slane %v348, %v352
  %v355 = vadd.f32 %v344, %v353
  %v356 = vadd.f32 %v345, %v353
  %v357 = vadd.f32 %v346, %v353
  %v358 = vadd.f32 %v347, %v353
  %vm359 = vcmp.gt.f32.partialorder %v355, 0.0
  %vm360 = vcmp.gt.f32.partialorder %v356, 0.0
  %vm361 = vcmp.gt.f32.partialorder %v357, 0.0
  %vm362 = vcmp.gt.f32.partialorder %v358, 0.0
  %v363 = vmul.f32 %v355, 0.2
  %v364 = vmul.f32 %v356, 0.2
  %v365 = vmul.f32 %v357, 0.2
  %v366 = vmul.f32 %v358, 0.2
  %v367 = vsel %vm359, %v355, %v363
  %v368 = vsel %vm360, %v356, %v364
  %v369 = vsel %vm361, %v357, %v365
  %v370 = vsel %vm362, %v358, %v366
  %v371 = vpack.c.bf16 %v368, %v367
  %v372 = vpack.c.bf16 %v370, %v369
  %v375 = vunpack.c.l.b16 %v371
  %v376 = vunpack.c.h.b16 %v371
  %v377 = vunpack.c.l.b16 %v372
  %v378 = vunpack.c.h.b16 %v372
  %v379 = vpack.c.b16 %v375, %v375
  %v380 = vpack.c.b16 %v376, %v376
  %v381 = vpack.c.b16 %v377, %v377
  %v382 = vpack.c.b16 %v378, %v378
  %387 = vst [vmem:[%s5] sm:$0xf] %v379
  %388 = vst [vmem:[%s5 + $0x4] sm:$0xf] %v380
  %389 = vst [vmem:[%s5 + $0x8] sm:$0xf] %v381
  %390 = vst [vmem:[%s5 + $0xc] sm:$0xf] %v382
  // Predicated region
  $region22: #{_lambda_.14} parent=0 // pred_check
    _
  $region23: #{_lambda_.14} parent=0 // pred_check_branch
    %392 = sbr.rel (0) target = $region25
  $region24: #{_lambda_.14} parent=0 // pred_region
    _
  $region25: #{_lambda_.14} parent=0 // pred_fallthru
    _
  // Predicated region
  $region26: #{_lambda_.14} parent=0 // pred_check
    _
  $region27: #{_lambda_.14} parent=0 // pred_check_branch
    %394 = sbr.rel (0) target = $region29
  $region28: #{_lambda_.14} parent=0 // pred_region
    _
  $region29: #{_lambda_.14} parent=0 // pred_fallthru
    _

// kernel: _lambda_.16
$region0: #{_lambda_.16}
  #allocation0 [shape = 'u32[]', space=smem, size = 0x4, offset = 0x4, fixed_abs, tag = 'smem constant byte address 0x4 - core index']
  #allocation1 [shape = 'u32[144,128]{1,0:T(1,128)}', space=vmem, size = 0x12000, scoped, tag = 'internal scratch']
  %s0 = inlined_call_operand.vmem [shape: bf16[4,32,128], index: 0, kind: input, shape index: {}]
  %s1 = inlined_call_operand.vmem [shape: bf16[32,128], index: 1, kind: input, shape index: {}]
  %s2 = inlined_call_operand.vmem [shape: bf16[128,256], index: 2, kind: input, shape index: {}]
  %s3 = inlined_call_operand.vmem [shape: bf16[128,256], index: 3, kind: input, shape index: {}]
  %s4 = inlined_call_operand.vmem [shape: f32[1,256], index: 4, kind: input, shape index: {}]
  %s5 = inlined_call_operand.vmem [shape: bf16[32,256], index: 5, kind: output, shape index: {}]
  %s6 = sld [smem:[#allocation0]]
  $region30: #{_lambda_.16} parent=0
    _
  %s8 = ssub.s32 1, %s6
  %s9 = scalar_select 0, %s8, %s6
  // Predicated region
  $region2: #{_lambda_.16} parent=0 // pred_check
    _
  $region3: #{_lambda_.16} parent=0 // pred_check_branch
    %11 = sbr.rel (0) target = $region5
  $region4: #{_lambda_.16} parent=0 // pred_region
    _
  $region5: #{_lambda_.16} parent=0 // pred_fallthru
    _
  // Predicated region
  $region6: #{_lambda_.16} parent=0 // pred_check
    _
  $region7: #{_lambda_.16} parent=0 // pred_check_branch
    %13 = sbr.rel (0) target = $region9
  $region8: #{_lambda_.16} parent=0 // pred_region
    _
  $region9: #{_lambda_.16} parent=0 // pred_fallthru
    _
  // Predicated region
  $region10: #{_lambda_.16} parent=0 // pred_check
    _
  $region11: #{_lambda_.16} parent=0 // pred_check_branch
    %15 = sbr.rel (0) target = $region13
  $region12: #{_lambda_.16} parent=0 // pred_region
    _
  $region13: #{_lambda_.16} parent=0 // pred_fallthru
    _
  // Predicated region
  $region14: #{_lambda_.16} parent=0 // pred_check
    _
  $region15: #{_lambda_.16} parent=0 // pred_check_branch
    %17 = sbr.rel (0) target = $region17
  $region16: #{_lambda_.16} parent=0 // pred_region
    _
  $region17: #{_lambda_.16} parent=0 // pred_fallthru
    _
  // Predicated region
  $region18: #{_lambda_.16} parent=0 // pred_check
    _
  $region19: #{_lambda_.16} parent=0 // pred_check_branch
    %19 = sbr.rel (0) target = $region21
  $region20: #{_lambda_.16} parent=0 // pred_region
    _
  $region21: #{_lambda_.16} parent=0 // pred_fallthru
    _
  %v21 = vld [vmem:[%s0] sm:$0xf]
  %v22 = vld [vmem:[%s0 + $0x4] sm:$0xf]
  %v23 = vld [vmem:[%s0 + $0x8] sm:$0xf]
  %v24 = vld [vmem:[%s0 + $0xc] sm:$0xf]
  %v25 = vld [vmem:[%s0 + $0x10] sm:$0xf]
  %v26 = vld [vmem:[%s0 + $0x14] sm:$0xf]
  %v27 = vld [vmem:[%s0 + $0x18] sm:$0xf]
  %v28 = vld [vmem:[%s0 + $0x1c] sm:$0xf]
  %v29 = vld [vmem:[%s0 + $0x20] sm:$0xf]
  %v30 = vld [vmem:[%s0 + $0x24] sm:$0xf]
  %v31 = vld [vmem:[%s0 + $0x28] sm:$0xf]
  %v32 = vld [vmem:[%s0 + $0x2c] sm:$0xf]
  %v33 = vld [vmem:[%s0 + $0x30] sm:$0xf]
  %v34 = vld [vmem:[%s0 + $0x34] sm:$0xf]
  %v35 = vld [vmem:[%s0 + $0x38] sm:$0xf]
  %v36 = vld [vmem:[%s0 + $0x3c] sm:$0xf]
  %v37 = vld [vmem:[%s2] sm:$0xff]
  %v38 = vld [vmem:[%s2 + $0x8] sm:$0xff]
  %v39 = vld [vmem:[%s2 + $0x10] sm:$0xff]
  %v40 = vld [vmem:[%s2 + $0x18] sm:$0xff]
  %v41 = vld [vmem:[%s2 + $0x20] sm:$0xff]
  %v42 = vld [vmem:[%s2 + $0x28] sm:$0xff]
  %v43 = vld [vmem:[%s2 + $0x30] sm:$0xff]
  %v44 = vld [vmem:[%s2 + $0x38] sm:$0xff]
  %v45 = vld [vmem:[%s2 + $0x40] sm:$0xff]
  %v46 = vld [vmem:[%s2 + $0x48] sm:$0xff]
  %v47 = vld [vmem:[%s2 + $0x50] sm:$0xff]
  %v48 = vld [vmem:[%s2 + $0x58] sm:$0xff]
  %v49 = vld [vmem:[%s2 + $0x60] sm:$0xff]
  %v50 = vld [vmem:[%s2 + $0x68] sm:$0xff]
  %v51 = vld [vmem:[%s2 + $0x70] sm:$0xff]
  %v52 = vld [vmem:[%s2 + $0x78] sm:$0xff]
  %v69 = vunpack.c.l.b16 %v21
  %v70 = vunpack.c.l.b16 %v22
  %v71 = vunpack.c.l.b16 %v23
  %v72 = vunpack.c.l.b16 %v24
  %v73 = vunpack.c.l.b16 %v25
  %v74 = vunpack.c.l.b16 %v26
  %v75 = vunpack.c.l.b16 %v27
  %v76 = vunpack.c.l.b16 %v28
  %v77 = vunpack.c.l.b16 %v29
  %v78 = vunpack.c.l.b16 %v30
  %v79 = vunpack.c.l.b16 %v31
  %v80 = vunpack.c.l.b16 %v32
  %v81 = vunpack.c.l.b16 %v33
  %v82 = vunpack.c.l.b16 %v34
  %v83 = vunpack.c.l.b16 %v35
  %v84 = vunpack.c.l.b16 %v36
  %v85 = vpack.c.b16 %v70, %v69
  %v86 = vpack.c.b16 %v72, %v71
  %v87 = vpack.c.b16 %v74, %v73
  %v88 = vpack.c.b16 %v76, %v75
  %v89 = vpack.c.b16 %v78, %v77
  %v90 = vpack.c.b16 %v80, %v79
  %v91 = vpack.c.b16 %v82, %v81
  %v92 = vpack.c.b16 %v84, %v83
  %v117 = vunpack.c.l.b16 %v37
  %v118 = vunpack.c.h.b16 %v37
  %v119 = vunpack.c.l.b16 %v38
  %v120 = vunpack.c.h.b16 %v38
  %v121 = vunpack.c.l.b16 %v39
  %v122 = vunpack.c.h.b16 %v39
  %v123 = vunpack.c.l.b16 %v40
  %v124 = vunpack.c.h.b16 %v40
  %v125 = vunpack.c.l.b16 %v41
  %v126 = vunpack.c.h.b16 %v41
  %v127 = vunpack.c.l.b16 %v42
  %v128 = vunpack.c.h.b16 %v42
  %v129 = vunpack.c.l.b16 %v43
  %v130 = vunpack.c.h.b16 %v43
  %v131 = vunpack.c.l.b16 %v44
  %v132 = vunpack.c.h.b16 %v44
  %v133 = vunpack.c.l.b16 %v45
  %v134 = vunpack.c.h.b16 %v45
  %v135 = vunpack.c.l.b16 %v46
  %v136 = vunpack.c.h.b16 %v46
  %v137 = vunpack.c.l.b16 %v47
  %v138 = vunpack.c.h.b16 %v47
  %v139 = vunpack.c.l.b16 %v48
  %v140 = vunpack.c.h.b16 %v48
  %v141 = vunpack.c.l.b16 %v49
  %v142 = vunpack.c.h.b16 %v49
  %v143 = vunpack.c.l.b16 %v50
  %v144 = vunpack.c.h.b16 %v50
  %v145 = vunpack.c.l.b16 %v51
  %v146 = vunpack.c.h.b16 %v51
  %v147 = vunpack.c.l.b16 %v52
  %v148 = vunpack.c.h.b16 %v52
  %v149 = vpack.c.b16 %v119, %v117
  %v150 = vpack.c.b16 %v120, %v118
  %v151 = vpack.c.b16 %v123, %v121
  %v152 = vpack.c.b16 %v124, %v122
  %v153 = vpack.c.b16 %v127, %v125
  %v154 = vpack.c.b16 %v128, %v126
  %v155 = vpack.c.b16 %v131, %v129
  %v156 = vpack.c.b16 %v132, %v130
  %v157 = vpack.c.b16 %v135, %v133
  %v158 = vpack.c.b16 %v136, %v134
  %v159 = vpack.c.b16 %v139, %v137
  %v160 = vpack.c.b16 %v140, %v138
  %v161 = vpack.c.b16 %v143, %v141
  %v162 = vpack.c.b16 %v144, %v142
  %v163 = vpack.c.b16 %v147, %v145
  %v164 = vpack.c.b16 %v148, %v146
  %181 = vmatprep.subr.bf16.mxu0 %v150
  %182 = vmatpush1.bf16.msra.mxu0 %v149
  %183 = vmatprep.subr.bf16.mxu0 %v152
  %184 = vmatpush1.bf16.msra.mxu0 %v151
  %185 = vmatprep.subr.bf16.mxu0 %v154
  %186 = vmatpush1.bf16.msra.mxu0 %v153
  %187 = vmatprep.subr.bf16.mxu0 %v156
  %188 = vmatpush1.bf16.msra.mxu0 %v155
  %189 = vmatprep.subr.bf16.mxu0 %v158
  %190 = vmatpush1.bf16.msra.mxu0 %v157
  %191 = vmatprep.subr.bf16.mxu0 %v160
  %192 = vmatpush1.bf16.msra.mxu0 %v159
  %193 = vmatprep.subr.bf16.mxu0 %v162
  %194 = vmatpush1.bf16.msra.mxu0 %v161
  %195 = vmatprep.subr.bf16.mxu0 %v164
  %196 = vmatpush1.bf16.msra.mxu0 %v163
  %197 = vmatprep.subr.bf16.mxu0 0
  %198 = vmatpush1.bf16.msra.mxu0 0
  %199 = vmatprep.subr.bf16.mxu0 0
  %200 = vmatpush1.bf16.msra.mxu0 0
  %201 = vmatprep.subr.bf16.mxu0 0
  %202 = vmatpush1.bf16.msra.mxu0 0
  %203 = vmatprep.subr.bf16.mxu0 0
  %204 = vmatpush1.bf16.msra.mxu0 0
  %205 = vmatprep.subr.bf16.mxu0 0
  %206 = vmatpush1.bf16.msra.mxu0 0
  %207 = vmatprep.subr.bf16.mxu0 0
  %208 = vmatpush1.bf16.msra.mxu0 0
  %209 = vmatprep.subr.bf16.mxu0 0
  %210 = vmatpush1.bf16.msra.mxu0 0
  %211 = vmatprep.subr.bf16.mxu0 0
  %212 = vmatpush1.bf16.msra.mxu0 0
  %213 = vmatprep.mubr.bf16.mxu0 0
  %214 = vmatmul.mubr.bf16.gmra.mrb[0].mxu0 %v85
  %v215 = vpop.f32.mrb[0].mxu0
  %v216 = vadd.f32 0.0, %v215
  %v217 = vpop.f32.mrb[0].mxu0
  %v218 = vadd.f32 0.0, %v217
  %v219 = vpop.f32.mrb[0].mxu0
  %v220 = vadd.f32 0.0, %v219
  %v221 = vpop.f32.mrb[0].mxu0
  %v222 = vadd.f32 0.0, %v221
  %223 = vmatprep.mubr.bf16.mxu0 0
  %224 = vmatmul.mubr.bf16.gmra.mrb[0].mxu0 %v86
  %v225 = vpop.f32.mrb[0].mxu0
  %v226 = vadd.f32 0.0, %v225
  %v227 = vpop.f32.mrb[0].mxu0
  %v228 = vadd.f32 0.0, %v227
  %v229 = vpop.f32.mrb[0].mxu0
  %v230 = vadd.f32 0.0, %v229
  %v231 = vpop.f32.mrb[0].mxu0
  %v232 = vadd.f32 0.0, %v231
  %233 = vmatprep.mubr.bf16.mxu0 0
  %234 = vmatmul.mubr.bf16.gmra.mrb[0].mxu0 %v87
  %v235 = vpop.f32.mrb[0].mxu0
  %v236 = vadd.f32 0.0, %v235
  %v237 = vpop.f32.mrb[0].mxu0
  %v238 = vadd.f32 0.0, %v237
  %v239 = vpop.f32.mrb[0].mxu0
  %v240 = vadd.f32 0.0, %v239
  %v241 = vpop.f32.mrb[0].mxu0
  %v242 = vadd.f32 0.0, %v241
  %243 = vmatprep.mubr.bf16.mxu0 0
  %244 = vmatmul.mubr.bf16.gmra.mrb[0].mxu0 %v88
  %v245 = vpop.f32.mrb[0].mxu0
  %v246 = vadd.f32 0.0, %v245
  %v247 = vpop.f32.mrb[0].mxu0
  %v248 = vadd.f32 0.0, %v247
  %v249 = vpop.f32.mrb[0].mxu0
  %v250 = vadd.f32 0.0, %v249
  %v251 = vpop.f32.mrb[0].mxu0
  %v252 = vadd.f32 0.0, %v251
  %253 = vmatprep.mubr.bf16.mxu0 0
  %254 = vmatmul.mubr.bf16.gmra.mrb[0].mxu0 %v89
  %v255 = vpop.f32.mrb[0].mxu0
  %v256 = vadd.f32 0.0, %v255
  %v257 = vpop.f32.mrb[0].mxu0
  %v258 = vadd.f32 0.0, %v257
  %v259 = vpop.f32.mrb[0].mxu0
  %v260 = vadd.f32 0.0, %v259
  %v261 = vpop.f32.mrb[0].mxu0
  %v262 = vadd.f32 0.0, %v261
  %263 = vmatprep.mubr.bf16.mxu0 0
  %264 = vmatmul.mubr.bf16.gmra.mrb[0].mxu0 %v90
  %v265 = vpop.f32.mrb[0].mxu0
  %v266 = vadd.f32 0.0, %v265
  %v267 = vpop.f32.mrb[0].mxu0
  %v268 = vadd.f32 0.0, %v267
  %v269 = vpop.f32.mrb[0].mxu0
  %v270 = vadd.f32 0.0, %v269
  %v271 = vpop.f32.mrb[0].mxu0
  %v272 = vadd.f32 0.0, %v271
  %273 = vmatprep.mubr.bf16.mxu0 0
  %274 = vmatmul.mubr.bf16.gmra.mrb[0].mxu0 %v91
  %v275 = vpop.f32.mrb[0].mxu0
  %v276 = vadd.f32 0.0, %v275
  %v277 = vpop.f32.mrb[0].mxu0
  %v278 = vadd.f32 0.0, %v277
  %v279 = vpop.f32.mrb[0].mxu0
  %v280 = vadd.f32 0.0, %v279
  %v281 = vpop.f32.mrb[0].mxu0
  %v282 = vadd.f32 0.0, %v281
  %283 = vmatprep.mubr.bf16.mxu0 0
  %284 = vmatmul.mubr.bf16.gmra.mrb[0].mxu0 %v92
  %v285 = vpop.f32.mrb[0].mxu0
  %v286 = vadd.f32 0.0, %v285
  %v287 = vpop.f32.mrb[0].mxu0
  %v288 = vadd.f32 0.0, %v287
  %v289 = vpop.f32.mrb[0].mxu0
  %v290 = vadd.f32 0.0, %v289
  %v291 = vpop.f32.mrb[0].mxu0
  %v292 = vadd.f32 0.0, %v291
  %293 = vdwg.mxu0
  %v294 = vmax.f32 %v216, %v236
  %v295 = vmax.f32 %v218, %v238
  %v296 = vmax.f32 %v220, %v240
  %v297 = vmax.f32 %v222, %v242
  %v298 = vmax.f32 %v226, %v246
  %v299 = vmax.f32 %v228, %v248
  %v300 = vmax.f32 %v230, %v250
  %v301 = vmax.f32 %v232, %v252
  %v302 = vmax.f32 %v294, %v256
  %v303 = vmax.f32 %v295, %v258
  %v304 = vmax.f32 %v296, %v260
  %v305 = vmax.f32 %v297, %v262
  %v306 = vmax.f32 %v298, %v266
  %v307 = vmax.f32 %v299, %v268
  %v308 = vmax.f32 %v300, %v270
  %v309 = vmax.f32 %v301, %v272
  %v310 = vmax.f32 %v302, %v276
  %v311 = vmax.f32 %v303, %v278
  %v312 = vmax.f32 %v304, %v280
  %v313 = vmax.f32 %v305, %v282
  %v314 = vmax.f32 %v306, %v286
  %v315 = vmax.f32 %v307, %v288
  %v316 = vmax.f32 %v308, %v290
  %v317 = vmax.f32 %v309, %v292
  %v318 = vld [vmem:[%s1] sm:$0xf]
  %v319 = vld [vmem:[%s1 + $0x4] sm:$0xf]
  %v320 = vld [vmem:[%s1 + $0x8] sm:$0xf]
  %v321 = vld [vmem:[%s1 + $0xc] sm:$0xf]
  %v322 = vld [vmem:[%s3] sm:$0xff]
  %v323 = vld [vmem:[%s3 + $0x8] sm:$0xff]
  %v324 = vld [vmem:[%s3 + $0x10] sm:$0xff]
  %v325 = vld [vmem:[%s3 + $0x18] sm:$0xff]
  %v326 = vld [vmem:[%s3 + $0x20] sm:$0xff]
  %v327 = vld [vmem:[%s3 + $0x28] sm:$0xff]
  %v328 = vld [vmem:[%s3 + $0x30] sm:$0xff]
  %v329 = vld [vmem:[%s3 + $0x38] sm:$0xff]
  %v330 = vld [vmem:[%s3 + $0x40] sm:$0xff]
  %v331 = vld [vmem:[%s3 + $0x48] sm:$0xff]
  %v332 = vld [vmem:[%s3 + $0x50] sm:$0xff]
  %v333 = vld [vmem:[%s3 + $0x58] sm:$0xff]
  %v334 = vld [vmem:[%s3 + $0x60] sm:$0xff]
  %v335 = vld [vmem:[%s3 + $0x68] sm:$0xff]
  %v336 = vld [vmem:[%s3 + $0x70] sm:$0xff]
  %v337 = vld [vmem:[%s3 + $0x78] sm:$0xff]
  %v342 = vunpack.c.l.b16 %v318
  %v343 = vunpack.c.l.b16 %v319
  %v344 = vunpack.c.l.b16 %v320
  %v345 = vunpack.c.l.b16 %v321
  %v346 = vpack.c.b16 %v343, %v342
  %v347 = vpack.c.b16 %v345, %v344
  %v366 = vunpack.c.l.b16 %v322
  %v367 = vunpack.c.h.b16 %v322
  %v368 = vunpack.c.l.b16 %v323
  %v369 = vunpack.c.h.b16 %v323
  %v370 = vunpack.c.l.b16 %v324
  %v371 = vunpack.c.h.b16 %v324
  %v372 = vunpack.c.l.b16 %v325
  %v373 = vunpack.c.h.b16 %v325
  %v374 = vunpack.c.l.b16 %v326
  %v375 = vunpack.c.h.b16 %v326
  %v376 = vunpack.c.l.b16 %v327
  %v377 = vunpack.c.h.b16 %v327
  %v378 = vunpack.c.l.b16 %v328
  %v379 = vunpack.c.h.b16 %v328
  %v380 = vunpack.c.l.b16 %v329
  %v381 = vunpack.c.h.b16 %v329
  %v382 = vunpack.c.l.b16 %v330
  %v383 = vunpack.c.h.b16 %v330
  %v384 = vunpack.c.l.b16 %v331
  %v385 = vunpack.c.h.b16 %v331
  %v386 = vunpack.c.l.b16 %v332
  %v387 = vunpack.c.h.b16 %v332
  %v388 = vunpack.c.l.b16 %v333
  %v389 = vunpack.c.h.b16 %v333
  %v390 = vunpack.c.l.b16 %v334
  %v391 = vunpack.c.h.b16 %v334
  %v392 = vunpack.c.l.b16 %v335
  %v393 = vunpack.c.h.b16 %v335
  %v394 = vunpack.c.l.b16 %v336
  %v395 = vunpack.c.h.b16 %v336
  %v396 = vunpack.c.l.b16 %v337
  %v397 = vunpack.c.h.b16 %v337
  %v398 = vpack.c.b16 %v368, %v366
  %v399 = vpack.c.b16 %v369, %v367
  %v400 = vpack.c.b16 %v372, %v370
  %v401 = vpack.c.b16 %v373, %v371
  %v402 = vpack.c.b16 %v376, %v374
  %v403 = vpack.c.b16 %v377, %v375
  %v404 = vpack.c.b16 %v380, %v378
  %v405 = vpack.c.b16 %v381, %v379
  %v406 = vpack.c.b16 %v384, %v382
  %v407 = vpack.c.b16 %v385, %v383
  %v408 = vpack.c.b16 %v388, %v386
  %v409 = vpack.c.b16 %v389, %v387
  %v410 = vpack.c.b16 %v392, %v390
  %v411 = vpack.c.b16 %v393, %v391
  %v412 = vpack.c.b16 %v396, %v394
  %v413 = vpack.c.b16 %v397, %v395
  %430 = vmatprep.subr.bf16.mxu0 %v399
  %431 = vmatpush1.bf16.msra.mxu0 %v398
  %432 = vmatprep.subr.bf16.mxu0 %v401
  %433 = vmatpush1.bf16.msra.mxu0 %v400
  %434 = vmatprep.subr.bf16.mxu0 %v403
  %435 = vmatpush1.bf16.msra.mxu0 %v402
  %436 = vmatprep.subr.bf16.mxu0 %v405
  %437 = vmatpush1.bf16.msra.mxu0 %v404
  %438 = vmatprep.subr.bf16.mxu0 %v407
  %439 = vmatpush1.bf16.msra.mxu0 %v406
  %440 = vmatprep.subr.bf16.mxu0 %v409
  %441 = vmatpush1.bf16.msra.mxu0 %v408
  %442 = vmatprep.subr.bf16.mxu0 %v411
  %443 = vmatpush1.bf16.msra.mxu0 %v410
  %444 = vmatprep.subr.bf16.mxu0 %v413
  %445 = vmatpush1.bf16.msra.mxu0 %v412
  %446 = vmatprep.subr.bf16.mxu0 0
  %447 = vmatpush1.bf16.msra.mxu0 0
  %448 = vmatprep.subr.bf16.mxu0 0
  %449 = vmatpush1.bf16.msra.mxu0 0
  %450 = vmatprep.subr.bf16.mxu0 0
  %451 = vmatpush1.bf16.msra.mxu0 0
  %452 = vmatprep.subr.bf16.mxu0 0
  %453 = vmatpush1.bf16.msra.mxu0 0
  %454 = vmatprep.subr.bf16.mxu0 0
  %455 = vmatpush1.bf16.msra.mxu0 0
  %456 = vmatprep.subr.bf16.mxu0 0
  %457 = vmatpush1.bf16.msra.mxu0 0
  %458 = vmatprep.subr.bf16.mxu0 0
  %459 = vmatpush1.bf16.msra.mxu0 0
  %460 = vmatprep.subr.bf16.mxu0 0
  %461 = vmatpush1.bf16.msra.mxu0 0
  %462 = vmatprep.mubr.bf16.mxu0 0
  %463 = vmatmul.mubr.bf16.gmra.mrb[0].mxu0 %v346
  %v464 = vpop.f32.mrb[0].mxu0
  %v465 = vadd.f32 0.0, %v464
  %v466 = vpop.f32.mrb[0].mxu0
  %v467 = vadd.f32 0.0, %v466
  %v468 = vpop.f32.mrb[0].mxu0
  %v469 = vadd.f32 0.0, %v468
  %v470 = vpop.f32.mrb[0].mxu0
  %v471 = vadd.f32 0.0, %v470
  %472 = vmatprep.mubr.bf16.mxu0 0
  %473 = vmatmul.mubr.bf16.gmra.mrb[0].mxu0 %v347
  %v474 = vpop.f32.mrb[0].mxu0
  %v475 = vadd.f32 0.0, %v474
  %v476 = vpop.f32.mrb[0].mxu0
  %v477 = vadd.f32 0.0, %v476
  %v478 = vpop.f32.mrb[0].mxu0
  %v479 = vadd.f32 0.0, %v478
  %v480 = vpop.f32.mrb[0].mxu0
  %v481 = vadd.f32 0.0, %v480
  %482 = vdwg.mxu0
  %v483 = vadd.f32 %v310, %v465
  %v484 = vadd.f32 %v311, %v467
  %v485 = vadd.f32 %v312, %v469
  %v486 = vadd.f32 %v313, %v471
  %v487 = vadd.f32 %v314, %v475
  %v488 = vadd.f32 %v315, %v477
  %v489 = vadd.f32 %v316, %v479
  %v490 = vadd.f32 %v317, %v481
  %v491 = vld [vmem:[%s4] sm:$0x3]
  %v493 = vlaneseq
  %v494 = vshrl.u32 %v493, 7
  %v495 = vsub.s32 0, %v494
  %v496 = vrot.slane %v491, %v495
  %v497 = vlaneseq
  %v498 = vshrl.u32 %v497, 7
  %v499 = vsub.s32 1, %v498
  %v500 = vrot.slane %v491, %v499
  %v503 = vadd.f32 %v483, %v496
  %v504 = vadd.f32 %v484, %v500
  %v505 = vadd.f32 %v485, %v496
  %v506 = vadd.f32 %v486, %v500
  %v507 = vadd.f32 %v487, %v496
  %v508 = vadd.f32 %v488, %v500
  %v509 = vadd.f32 %v489, %v496
  %v510 = vadd.f32 %v490, %v500
  %vm511 = vcmp.gt.f32.partialorder %v503, 0.0
  %vm512 = vcmp.gt.f32.partialorder %v504, 0.0
  %vm513 = vcmp.gt.f32.partialorder %v505, 0.0
  %vm514 = vcmp.gt.f32.partialorder %v506, 0.0
  %vm515 = vcmp.gt.f32.partialorder %v507, 0.0
  %vm516 = vcmp.gt.f32.partialorder %v508, 0.0
  %vm517 = vcmp.gt.f32.partialorder %v509, 0.0
  %vm518 = vcmp.gt.f32.partialorder %v510, 0.0
  %v519 = vmul.f32 %v503, 0.2
  %v520 = vmul.f32 %v504, 0.2
  %v521 = vmul.f32 %v505, 0.2
  %v522 = vmul.f32 %v506, 0.2
  %v523 = vmul.f32 %v507, 0.2
  %v524 = vmul.f32 %v508, 0.2
  %v525 = vmul.f32 %v509, 0.2
  %v526 = vmul.f32 %v510, 0.2
  %v527 = vsel %vm511, %v503, %v519
  %v528 = vsel %vm512, %v504, %v520
  %v529 = vsel %vm513, %v505, %v521
  %v530 = vsel %vm514, %v506, %v522
  %v531 = vsel %vm515, %v507, %v523
  %v532 = vsel %vm516, %v508, %v524
  %v533 = vsel %vm517, %v509, %v525
  %v534 = vsel %vm518, %v510, %v526
  %v535 = vpack.c.bf16 %v529, %v527
  %v536 = vpack.c.bf16 %v530, %v528
  %v537 = vpack.c.bf16 %v533, %v531
  %v538 = vpack.c.bf16 %v534, %v532
  %v543 = vunpack.c.l.b16 %v535
  %v544 = vunpack.c.l.b16 %v536
  %v545 = vunpack.c.h.b16 %v535
  %v546 = vunpack.c.h.b16 %v536
  %v547 = vunpack.c.l.b16 %v537
  %v548 = vunpack.c.l.b16 %v538
  %v549 = vunpack.c.h.b16 %v537
  %v550 = vunpack.c.h.b16 %v538
  %v551 = vpack.c.b16 %v544, %v543
  %v552 = vpack.c.b16 %v546, %v545
  %v553 = vpack.c.b16 %v548, %v547
  %v554 = vpack.c.b16 %v550, %v549
  %559 = vst [vmem:[%s5] sm:$0xff] %v551
  %560 = vst [vmem:[%s5 + $0x8] sm:$0xff] %v552
  %561 = vst [vmem:[%s5 + $0x10] sm:$0xff] %v553
  %562 = vst [vmem:[%s5 + $0x18] sm:$0xff] %v554
  // Predicated region
  $region22: #{_lambda_.16} parent=0 // pred_check
    _
  $region23: #{_lambda_.16} parent=0 // pred_check_branch
    %564 = sbr.rel (0) target = $region25
  $region24: #{_lambda_.16} parent=0 // pred_region
    _
  $region25: #{_lambda_.16} parent=0 // pred_fallthru
    _
  // Predicated region
  $region26: #{_lambda_.16} parent=0 // pred_check
    _
  $region27: #{_lambda_.16} parent=0 // pred_check_branch
    %566 = sbr.rel (0) target = $region29
  $region28: #{_lambda_.16} parent=0 // pred_region
    _
  $region29: #{_lambda_.16} parent=0 // pred_fallthru
    _

// kernel: _lambda_.17
$region0: #{_lambda_.17}
  #allocation0 [shape = 'u32[]', space=smem, size = 0x4, offset = 0x4, fixed_abs, tag = 'smem constant byte address 0x4 - core index']
  #allocation1 [shape = 'u32[144,128]{1,0:T(1,128)}', space=vmem, size = 0x12000, scoped, tag = 'internal scratch']
  #allocation2 [shape = 'f32[1,64]{1,0:T(1,128)}', space=vmem, size = 0x200, scoped, tag = 'scratch operand']
  #allocation3 [shape = 'f32[1,64]{1,0:T(1,128)}', space=vmem, size = 0x200, scoped, tag = 'scratch operand']
  %s0 = inlined_call_operand.vmem [shape: bf16[2,16,512], index: 0, kind: input, shape index: {}]
  %s1 = inlined_call_operand.vmem [shape: bf16[512,64], index: 1, kind: input, shape index: {}]
  %s2 = inlined_call_operand.vmem [shape: f32[1,64], index: 2, kind: input, shape index: {}]
  %s3 = inlined_call_operand.vmem [shape: f32[64,64], index: 3, kind: input, shape index: {}]
  %s4 = inlined_call_operand.vmem [shape: f32[64,64], index: 4, kind: input, shape index: {}]
  %s5 = inlined_call_operand.vmem [shape: f32[1,64], index: 5, kind: input, shape index: {}]
  %s6 = inlined_call_operand.vmem [shape: f32[1,64], index: 6, kind: input, shape index: {}]
  %s7 = inlined_call_operand.vmem [shape: f32[1,64], index: 7, kind: input, shape index: {}]
  %s8 = inlined_call_operand.vmem [shape: f32[64,512], index: 8, kind: input, shape index: {}]
  %s9 = inlined_call_operand.vmem [shape: f32[1,512], index: 9, kind: input, shape index: {}]
  %s10 = inlined_call_operand.vmem [shape: f32[2,1,128], index: 10, kind: output, shape index: {0}]
  %s11 = inlined_call_operand.vmem [shape: f32[2,1,512], index: 11, kind: output, shape index: {1}]
  %12 = xla_tuple %s10, %s11
  %s13 = sld [smem:[#allocation0]]
  $region89: #{_lambda_.17} parent=0
    _
  %s15 = ssub.s32 1, %s13
  %s16 = scalar_select 0, %s15, %s13
  loop: start=0, step=1, limit=4
  $region2: #{_lambda_.17} parent=0 // loop_pre_header
    _
  $region3: #{_lambda_.17} parent=0 // loop_header
    %s18 = sphi 0, %s22
    %p19 = scmp.ge.s32.totalorder %s18, 4
    %s25 = sphi 0, %s37
    %s26 = sphi 0, %s33
    %s27 = sphi 0, %s25
    %s28 = sphi 0, %s26
    %s29 = sphi 0, %s27
    %s30 = sphi 0, %s28
    %s42 = sphi 0, %s44
    %s45 = sphi 0, %s42
    %s46 = sphi 0, %s45
    %s62 = sphi 0, %s46
    %s66 = sphi 0, %s66
    %s68 = sphi 0, %s66
    %s69 = sphi 0, %s68
    %s83 = sphi 0, %s69
    %s87 = sphi 0, %s87
    %s89 = sphi 0, %s87
    %s90 = sphi 0, %s89
    %s104 = sphi 0, %s90
    %s108 = sphi 0, %s108
    %s110 = sphi 0, %s108
    %s111 = sphi 0, %s110
    %s125 = sphi 0, %s111
    %s129 = sphi 0, %s129
    %s131 = sphi 0, %s129
    %s132 = sphi 0, %s131
    %s146 = sphi 0, %s132
    %s150 = sphi 0, %s150
    %s152 = sphi 0, %s150
    %s153 = sphi 0, %s152
    %s167 = sphi 0, %s153
    %s171 = sphi 0, %s171
    %s173 = sphi 0, %s171
    %s174 = sphi 0, %s173
    %s188 = sphi 0, %s174
    %s192 = sphi 0, %s192
    %s194 = sphi 0, %s192
    %s195 = sphi 0, %s194
    %s209 = sphi 0, %s195
    %s213 = sphi 0, %s213
    %s215 = sphi 0, %s213
    %s216 = sphi 0, %s215
    %s230 = sphi 0, %s216
    %s234 = sphi 0, %s234
    %s236 = sphi 0, %s234
    %s237 = sphi 0, %s236
    %s251 = sphi 0, %s237
    %s257 = sphi 0, %s259
    %s260 = sphi 0, %s257
    %s261 = sphi 0, %s260
    %s277 = sphi 0, %s261
    %s283 = sphi 0, %s285
    %s286 = sphi 0, %s283
    %s287 = sphi 0, %s286
    %s303 = sphi 0, %s287
  $region4: #{_lambda_.17} parent=0 // loop_header_branch
    %21 = sbr.rel (%p19) target = $region8
  $region5: #{_lambda_.17} parent=0 // loop_body
    %s23 = ssub.s32 %s18, 1
    %s24 = ssub.s32 %s18, 2
    %s31 = sadd.s32 1, %s26
    %p32 = scmp.ge.s32.totalorder %s31, 1
    %s33 = scalar_select %p32, 0, %s31
    %s34 = sadd.s32 1, %s25
    %s35 = scalar_select %p32, %s34, %s25
    %p36 = scmp.ge.s32.totalorder %s35, 2
    %s37 = scalar_select %p36, 0, %s35
    %s38 = ssub.s32 %s25, %s37
    %s39 = ssub.s32 %s26, %s33
    %s40 = sor.u32 %s38, %s39
    %p41 = scmp.eq.s32.totalorder %s40, 0
    %s43 = sadd.s32 %s42, 1
    %s44 = scalar_select %p41, %s42, %s43
    %p47 = pneg %p41
    %p48 = scmp.eq.s32.totalorder %s18, 1
    %p49 = por %p47, %p48
    %p50 = scmp.ne.s32.totalorder %s42, %s45
    %p51 = scmp.eq.s32.totalorder %s18, 0
    %p52 = por %p50, %p51
    %p53 = scmp.ne.s32.totalorder %s42, %s45
    %p54 = scmp.eq.s32.totalorder %s23, 1
    %p55 = por %p53, %p54
    %p56 = scmp.ne.s32.totalorder %s45, %s46
    %p57 = scmp.eq.s32.totalorder %s23, 0
    %p58 = por %p56, %p57
    %p59 = scmp.ne.s32.totalorder %s45, %s46
    %p60 = scmp.eq.s32.totalorder %s24, 1
    %p61 = por %p59, %p60
    %p63 = scmp.ne.s32.totalorder %s46, %s62
    %p64 = scmp.eq.s32.totalorder %s24, 0
    %p65 = por %p63, %p64
    %s67 = sadd.s32 %s66, 1
    %p70 = scmp.eq.s32.totalorder %s18, 1
    %p71 = scmp.ne.s32.totalorder %s66, %s68
    %p72 = scmp.eq.s32.totalorder %s18, 0
    %p73 = por %p71, %p72
    %p74 = scmp.ne.s32.totalorder %s66, %s68
    %p75 = scmp.eq.s32.totalorder %s23, 1
    %p76 = por %p74, %p75
    %p77 = scmp.ne.s32.totalorder %s68, %s69
    %p78 = scmp.eq.s32.totalorder %s23, 0
    %p79 = por %p77, %p78
    %p80 = scmp.ne.s32.totalorder %s68, %s69
    %p81 = scmp.eq.s32.totalorder %s24, 1
    %p82 = por %p80, %p81
    %p84 = scmp.ne.s32.totalorder %s69, %s83
    %p85 = scmp.eq.s32.totalorder %s24, 0
    %p86 = por %p84, %p85
    %s88 = sadd.s32 %s87, 1
    %p91 = scmp.eq.s32.totalorder %s18, 1
    %p92 = scmp.ne.s32.totalorder %s87, %s89
    %p93 = scmp.eq.s32.totalorder %s18, 0
    %p94 = por %p92, %p93
    %p95 = scmp.ne.s32.totalorder %s87, %s89
    %p96 = scmp.eq.s32.totalorder %s23, 1
    %p97 = por %p95, %p96
    %p98 = scmp.ne.s32.totalorder %s89, %s90
    %p99 = scmp.eq.s32.totalorder %s23, 0
    %p100 = por %p98, %p99
    %p101 = scmp.ne.s32.totalorder %s89, %s90
    %p102 = scmp.eq.s32.totalorder %s24, 1
    %p103 = por %p101, %p102
    %p105 = scmp.ne.s32.totalorder %s90, %s104
    %p106 = scmp.eq.s32.totalorder %s24, 0
    %p107 = por %p105, %p106
    %s109 = sadd.s32 %s108, 1
    %p112 = scmp.eq.s32.totalorder %s18, 1
    %p113 = scmp.ne.s32.totalorder %s108, %s110
    %p114 = scmp.eq.s32.totalorder %s18, 0
    %p115 = por %p113, %p114
    %p116 = scmp.ne.s32.totalorder %s108, %s110
    %p117 = scmp.eq.s32.totalorder %s23, 1
    %p118 = por %p116, %p117
    %p119 = scmp.ne.s32.totalorder %s110, %s111
    %p120 = scmp.eq.s32.totalorder %s23, 0
    %p121 = por %p119, %p120
    %p122 = scmp.ne.s32.totalorder %s110, %s111
    %p123 = scmp.eq.s32.totalorder %s24, 1
    %p124 = por %p122, %p123
    %p126 = scmp.ne.s32.totalorder %s111, %s125
    %p127 = scmp.eq.s32.totalorder %s24, 0
    %p128 = por %p126, %p127
    %s130 = sadd.s32 %s129, 1
    %p133 = scmp.eq.s32.totalorder %s18, 1
    %p134 = scmp.ne.s32.totalorder %s129, %s131
    %p135 = scmp.eq.s32.totalorder %s18, 0
    %p136 = por %p134, %p135
    %p137 = scmp.ne.s32.totalorder %s129, %s131
    %p138 = scmp.eq.s32.totalorder %s23, 1
    %p139 = por %p137, %p138
    %p140 = scmp.ne.s32.totalorder %s131, %s132
    %p141 = scmp.eq.s32.totalorder %s23, 0
    %p142 = por %p140, %p141
    %p143 = scmp.ne.s32.totalorder %s131, %s132
    %p144 = scmp.eq.s32.totalorder %s24, 1
    %p145 = por %p143, %p144
    %p147 = scmp.ne.s32.totalorder %s132, %s146
    %p148 = scmp.eq.s32.totalorder %s24, 0
    %p149 = por %p147, %p148
    %s151 = sadd.s32 %s150, 1
    %p154 = scmp.eq.s32.totalorder %s18, 1
    %p155 = scmp.ne.s32.totalorder %s150, %s152
    %p156 = scmp.eq.s32.totalorder %s18, 0
    %p157 = por %p155, %p156
    %p158 = scmp.ne.s32.totalorder %s150, %s152
    %p159 = scmp.eq.s32.totalorder %s23, 1
    %p160 = por %p158, %p159
    %p161 = scmp.ne.s32.totalorder %s152, %s153
    %p162 = scmp.eq.s32.totalorder %s23, 0
    %p163 = por %p161, %p162
    %p164 = scmp.ne.s32.totalorder %s152, %s153
    %p165 = scmp.eq.s32.totalorder %s24, 1
    %p166 = por %p164, %p165
    %p168 = scmp.ne.s32.totalorder %s153, %s167
    %p169 = scmp.eq.s32.totalorder %s24, 0
    %p170 = por %p168, %p169
    %s172 = sadd.s32 %s171, 1
    %p175 = scmp.eq.s32.totalorder %s18, 1
    %p176 = scmp.ne.s32.totalorder %s171, %s173
    %p177 = scmp.eq.s32.totalorder %s18, 0
    %p178 = por %p176, %p177
    %p179 = scmp.ne.s32.totalorder %s171, %s173
    %p180 = scmp.eq.s32.totalorder %s23, 1
    %p181 = por %p179, %p180
    %p182 = scmp.ne.s32.totalorder %s173, %s174
    %p183 = scmp.eq.s32.totalorder %s23, 0
    %p184 = por %p182, %p183
    %p185 = scmp.ne.s32.totalorder %s173, %s174
    %p186 = scmp.eq.s32.totalorder %s24, 1
    %p187 = por %p185, %p186
    %p189 = scmp.ne.s32.totalorder %s174, %s188
    %p190 = scmp.eq.s32.totalorder %s24, 0
    %p191 = por %p189, %p190
    %s193 = sadd.s32 %s192, 1
    %p196 = scmp.eq.s32.totalorder %s18, 1
    %p197 = scmp.ne.s32.totalorder %s192, %s194
    %p198 = scmp.eq.s32.totalorder %s18, 0
    %p199 = por %p197, %p198
    %p200 = scmp.ne.s32.totalorder %s192, %s194
    %p201 = scmp.eq.s32.totalorder %s23, 1
    %p202 = por %p200, %p201
    %p203 = scmp.ne.s32.totalorder %s194, %s195
    %p204 = scmp.eq.s32.totalorder %s23, 0
    %p205 = por %p203, %p204
    %p206 = scmp.ne.s32.totalorder %s194, %s195
    %p207 = scmp.eq.s32.totalorder %s24, 1
    %p208 = por %p206, %p207
    %p210 = scmp.ne.s32.totalorder %s195, %s209
    %p211 = scmp.eq.s32.totalorder %s24, 0
    %p212 = por %p210, %p211
    %s214 = sadd.s32 %s213, 1
    %p217 = scmp.eq.s32.totalorder %s18, 1
    %p218 = scmp.ne.s32.totalorder %s213, %s215
    %p219 = scmp.eq.s32.totalorder %s18, 0
    %p220 = por %p218, %p219
    %p221 = scmp.ne.s32.totalorder %s213, %s215
    %p222 = scmp.eq.s32.totalorder %s23, 1
    %p223 = por %p221, %p222
    %p224 = scmp.ne.s32.totalorder %s215, %s216
    %p225 = scmp.eq.s32.totalorder %s23, 0
    %p226 = por %p224, %p225
    %p227 = scmp.ne.s32.totalorder %s215, %s216
    %p228 = scmp.eq.s32.totalorder %s24, 1
    %p229 = por %p227, %p228
    %p231 = scmp.ne.s32.totalorder %s216, %s230
    %p232 = scmp.eq.s32.totalorder %s24, 0
    %p233 = por %p231, %p232
    %s235 = sadd.s32 %s234, 1
    %p238 = scmp.eq.s32.totalorder %s18, 1
    %p239 = scmp.ne.s32.totalorder %s234, %s236
    %p240 = scmp.eq.s32.totalorder %s18, 0
    %p241 = por %p239, %p240
    %p242 = scmp.ne.s32.totalorder %s234, %s236
    %p243 = scmp.eq.s32.totalorder %s23, 1
    %p244 = por %p242, %p243
    %p245 = scmp.ne.s32.totalorder %s236, %s237
    %p246 = scmp.eq.s32.totalorder %s23, 0
    %p247 = por %p245, %p246
    %p248 = scmp.ne.s32.totalorder %s236, %s237
    %p249 = scmp.eq.s32.totalorder %s24, 1
    %p250 = por %p248, %p249
    %p252 = scmp.ne.s32.totalorder %s237, %s251
    %p253 = scmp.eq.s32.totalorder %s24, 0
    %p254 = por %p252, %p253
    %s255 = ssub.s32 %s25, %s37
    %p256 = scmp.eq.s32.totalorder %s255, 0
    %s258 = sadd.s32 %s257, 1
    %s259 = scalar_select %p256, %s257, %s258
    %p262 = pneg %p256
    %p263 = scmp.eq.s32.totalorder %s18, 1
    %p264 = por %p262, %p263
    %p265 = scmp.ne.s32.totalorder %s257, %s260
    %p266 = scmp.eq.s32.totalorder %s18, 0
    %p267 = por %p265, %p266
    %p268 = scmp.ne.s32.totalorder %s257, %s260
    %p269 = scmp.eq.s32.totalorder %s23, 1
    %p270 = por %p268, %p269
    %p271 = scmp.ne.s32.totalorder %s260, %s261
    %p272 = scmp.eq.s32.totalorder %s23, 0
    %p273 = por %p271, %p272
    %p274 = scmp.ne.s32.totalorder %s260, %s261
    %p275 = scmp.eq.s32.totalorder %s24, 1
    %p276 = por %p274, %p275
    %p278 = scmp.ne.s32.totalorder %s261, %s277
    %p279 = scmp.eq.s32.totalorder %s24, 0
    %p280 = por %p278, %p279
    %s281 = ssub.s32 %s25, %s37
    %p282 = scmp.eq.s32.totalorder %s281, 0
    %s284 = sadd.s32 %s283, 1
    %s285 = scalar_select %p282, %s283, %s284
    %p288 = pneg %p282
    %p289 = scmp.eq.s32.totalorder %s18, 1
    %p290 = por %p288, %p289
    %p291 = scmp.ne.s32.totalorder %s283, %s286
    %p292 = scmp.eq.s32.totalorder %s18, 0
    %p293 = por %p291, %p292
    %p294 = scmp.ne.s32.totalorder %s283, %s286
    %p295 = scmp.eq.s32.totalorder %s23, 1
    %p296 = por %p294, %p295
    %p297 = scmp.ne.s32.totalorder %s286, %s287
    %p298 = scmp.eq.s32.totalorder %s23, 0
    %p299 = por %p297, %p298
    %p300 = scmp.ne.s32.totalorder %s286, %s287
    %p301 = scmp.eq.s32.totalorder %s24, 1
    %p302 = por %p300, %p301
    %p304 = scmp.ne.s32.totalorder %s287, %s303
    %p305 = scmp.eq.s32.totalorder %s24, 0
    %p306 = por %p304, %p305
    %p307 = scmp.le.s32.totalorder 1, %s18
    %p308 = scmp.lt.s32.totalorder %s18, 3
    %p309 = pnand %p307, %p308
    %p310 = pneg %p309
    // Predicated region
    $region9: #{_lambda_.17} parent=5 // pred_check
      _
    $region10: #{_lambda_.17} parent=5 // pred_check_branch
      %312 = sbr.rel (%p309) target = $region12
    $region11: #{_lambda_.17} parent=5 // pred_region
      %s313 = ssub.s32 %s18, 1
      // Predicated region
      $region13: #{_lambda_.17} parent=11 // pred_check
        %p314 = pneg %p79
      $region14: #{_lambda_.17} parent=11 // pred_check_branch
        %316 = sbr.rel (%p314) target = $region16
      $region15: #{_lambda_.17} parent=11 // pred_region
        _
      $region16: #{_lambda_.17} parent=11 // pred_fallthru
        _
      // Predicated region
      $region17: #{_lambda_.17} parent=11 // pred_check
        %p317 = pneg %p100
      $region18: #{_lambda_.17} parent=11 // pred_check_branch
        %319 = sbr.rel (%p317) target = $region20
      $region19: #{_lambda_.17} parent=11 // pred_region
        _
      $region20: #{_lambda_.17} parent=11 // pred_fallthru
        _
      // Predicated region
      $region21: #{_lambda_.17} parent=11 // pred_check
        %p320 = pneg %p121
      $region22: #{_lambda_.17} parent=11 // pred_check_branch
        %322 = sbr.rel (%p320) target = $region24
      $region23: #{_lambda_.17} parent=11 // pred_region
        _
      $region24: #{_lambda_.17} parent=11 // pred_fallthru
        _
      // Predicated region
      $region25: #{_lambda_.17} parent=11 // pred_check
        %p323 = pneg %p142
      $region26: #{_lambda_.17} parent=11 // pred_check_branch
        %325 = sbr.rel (%p323) target = $region28
      $region27: #{_lambda_.17} parent=11 // pred_region
        _
      $region28: #{_lambda_.17} parent=11 // pred_fallthru
        _
      // Predicated region
      $region29: #{_lambda_.17} parent=11 // pred_check
        %p326 = pneg %p163
      $region30: #{_lambda_.17} parent=11 // pred_check_branch
        %328 = sbr.rel (%p326) target = $region32
      $region31: #{_lambda_.17} parent=11 // pred_region
        _
      $region32: #{_lambda_.17} parent=11 // pred_fallthru
        _
      // Predicated region
      $region33: #{_lambda_.17} parent=11 // pred_check
        %p329 = pneg %p184
      $region34: #{_lambda_.17} parent=11 // pred_check_branch
        %331 = sbr.rel (%p329) target = $region36
      $region35: #{_lambda_.17} parent=11 // pred_region
        _
      $region36: #{_lambda_.17} parent=11 // pred_fallthru
        _
      // Predicated region
      $region37: #{_lambda_.17} parent=11 // pred_check
        %p332 = pneg %p205
      $region38: #{_lambda_.17} parent=11 // pred_check_branch
        %334 = sbr.rel (%p332) target = $region40
      $region39: #{_lambda_.17} parent=11 // pred_region
        _
      $region40: #{_lambda_.17} parent=11 // pred_fallthru
        _
      // Predicated region
      $region41: #{_lambda_.17} parent=11 // pred_check
        %p335 = pneg %p226
      $region42: #{_lambda_.17} parent=11 // pred_check_branch
        %337 = sbr.rel (%p335) target = $region44
      $region43: #{_lambda_.17} parent=11 // pred_region
        _
      $region44: #{_lambda_.17} parent=11 // pred_fallthru
        _
      // Predicated region
      $region45: #{_lambda_.17} parent=11 // pred_check
        %p338 = pneg %p247
      $region46: #{_lambda_.17} parent=11 // pred_check_branch
        %340 = sbr.rel (%p338) target = $region48
      $region47: #{_lambda_.17} parent=11 // pred_region
        _
      $region48: #{_lambda_.17} parent=11 // pred_fallthru
        _
    $region12: #{_lambda_.17} parent=5 // pred_fallthru
      _
    %p341 = scmp.lt.s32.totalorder %s18, 2
    // Predicated region
    $region49: #{_lambda_.17} parent=5 // pred_check
      %p342 = pneg %p341
    $region50: #{_lambda_.17} parent=5 // pred_check_branch
      %344 = sbr.rel (%p342) target = $region52
    $region51: #{_lambda_.17} parent=5 // pred_region
      // Predicated region
      $region53: #{_lambda_.17} parent=51 // pred_check
        %p345 = pneg %p52
      $region54: #{_lambda_.17} parent=51 // pred_check_branch
        %347 = sbr.rel (%p345) target = $region56
      $region55: #{_lambda_.17} parent=51 // pred_region
        %s348 = smul.u32 2, %s26
        %p349 = scmp.lt.s32.totalorder %s25, 1
        %s350 = scalar_select %p349, %s25, 1
        %p351 = scmp.lt.s32.totalorder %s348, 1
        %s352 = scalar_select %p351, %s348, 1
        %s353 = smul.addr %s352, 4
        %s354 = smul.addr %s350, 8
        %s355 = sadd.s32 %s353, %s354
        %s356 = smul.addr %s355, 4
        %s357 = scalar_lea.vmem %s0, %s356
        %s358 = smul.u32 2, %s26
      $region56: #{_lambda_.17} parent=51 // pred_fallthru
        _
    $region52: #{_lambda_.17} parent=5 // pred_fallthru
      _
    %p359 = scmp.le.s32.totalorder 1, %s18
    %p360 = scmp.lt.s32.totalorder %s18, 3
    %p361 = pnand %p359, %p360
    %p362 = pneg %p361
    // Predicated region
    $region57: #{_lambda_.17} parent=5 // pred_check
      _
    $region58: #{_lambda_.17} parent=5 // pred_check_branch
      %364 = sbr.rel (%p361) target = $region60
    $region59: #{_lambda_.17} parent=5 // pred_region
      %s365 = ssub.s32 %s18, 1
      %s366 = smul.u32 2, %s28
      %p367 = scmp.lt.s32.totalorder %s27, 1
      %s368 = scalar_select %p367, %s27, 1
      %p369 = scmp.lt.s32.totalorder %s366, 1
      %s370 = scalar_select %p369, %s366, 1
      %s371 = smul.addr %s370, 4
      %s372 = smul.addr %s368, 8
      %s373 = sadd.s32 %s371, %s372
      %s374 = smul.addr %s373, 4
      %s375 = scalar_lea.vmem %s0, %s374
      %p376 = pneg %p58
      %p377 = pneg %p55
      %p378 = pneg %p79
      %p379 = pneg %p76
      %p380 = pneg %p100
      %p381 = pneg %p97
      %p382 = pneg %p121
      %p383 = pneg %p118
      %p384 = pneg %p142
      %p385 = pneg %p139
      %p386 = pneg %p163
      %p387 = pneg %p160
      %p388 = pneg %p184
      %p389 = pneg %p181
      %p390 = pneg %p205
      %p391 = pneg %p202
      %p392 = pneg %p226
      %p393 = pneg %p223
      %p394 = pneg %p247
      %p395 = pneg %p244
      %p396 = pneg %p273
      %p397 = pneg %p270
      %p398 = scmp.lt.s32.totalorder %s27, 1
      %s399 = scalar_select %p398, %s27, 1
      %s400 = scalar_lea.vmem %s10, %s399
      %p401 = pneg %p299
      %p402 = pneg %p296
      %p403 = scmp.lt.s32.totalorder %s27, 1
      %s404 = scalar_select %p403, %s27, 1
      %s405 = smul.addr %s404, 4
      %s406 = scalar_lea.vmem %s11, %s405
      %s407 = smul.u32 2, %s28
      %p408 = scmp.lt.s32.totalorder %s27, 1
      %s409 = scalar_select %p408, %s27, 1
      %p410 = scmp.lt.s32.totalorder %s407, 1
      %s411 = scalar_select %p410, %s407, 1
      %s412 = smul.addr %s411, 4
      %s413 = smul.addr %s409, 8
      %s414 = sadd.s32 %s412, %s413
      %s415 = smul.addr %s414, 4
      %s416 = scalar_lea.vmem %s0, %s415
      %s417 = smul.u32 2, %s28
      %p418 = scmp.lt.s32.totalorder %s27, 1
      %s419 = scalar_select %p418, %s27, 1
      %s420 = scalar_lea.vmem %s10, %s419
      %p421 = scmp.lt.s32.totalorder %s27, 1
      %s422 = scalar_select %p421, %s27, 1
      %s423 = smul.addr %s422, 4
      %s424 = scalar_lea.vmem %s11, %s423
      %p426 = scmp.eq.s32.totalorder %s28, 0
      // Predicated region
      $region61: #{_lambda_.17} parent=59 // pred_check
        %p427 = pneg %p426
      $region62: #{_lambda_.17} parent=59 // pred_check_branch
        %429 = sbr.rel (%p427) target = $region64
      $region63: #{_lambda_.17} parent=59 // pred_region
        %vm430 = vcmask 516096
        %431 = vst.msk [vmem:[#allocation2] sm:$0x1] %vm430, -inf
        %432 = vst.msk [vmem:[#allocation3] sm:$0x1] %vm430, 0.0
      $region64: #{_lambda_.17} parent=59 // pred_fallthru
        _
      %v433 = vld [vmem:[%s416] sm:$0xff]
      %v434 = vld [vmem:[%s416 + $0x8] sm:$0xff]
      %v435 = vld [vmem:[%s416 + $0x10] sm:$0xff]
      %v436 = vld [vmem:[%s416 + $0x18] sm:$0xff]
      %v437 = vld [vmem:[%s1] sm:$0xf]
      %v438 = vld [vmem:[%s1 + $0x4] sm:$0xf]
      %v439 = vld [vmem:[%s1 + $0x8] sm:$0xf]
      %v440 = vld [vmem:[%s1 + $0xc] sm:$0xf]
      %v441 = vld [vmem:[%s1 + $0x10] sm:$0xf]
      %v442 = vld [vmem:[%s1 + $0x14] sm:$0xf]
      %v443 = vld [vmem:[%s1 + $0x18] sm:$0xf]
      %v444 = vld [vmem:[%s1 + $0x1c] sm:$0xf]
      %v445 = vld [vmem:[%s1 + $0x20] sm:$0xf]
      %v446 = vld [vmem:[%s1 + $0x24] sm:$0xf]
      %v447 = vld [vmem:[%s1 + $0x28] sm:$0xf]
      %v448 = vld [vmem:[%s1 + $0x2c] sm:$0xf]
      %v449 = vld [vmem:[%s1 + $0x30] sm:$0xf]
      %v450 = vld [vmem:[%s1 + $0x34] sm:$0xf]
      %v451 = vld [vmem:[%s1 + $0x38] sm:$0xf]
      %v452 = vld [vmem:[%s1 + $0x3c] sm:$0xf]
      %v453 = vld [vmem:[%s1 + $0x40] sm:$0xf]
      %v454 = vld [vmem:[%s1 + $0x44] sm:$0xf]
      %v455 = vld [vmem:[%s1 + $0x48] sm:$0xf]
      %v456 = vld [vmem:[%s1 + $0x4c] sm:$0xf]
      %v457 = vld [vmem:[%s1 + $0x50] sm:$0xf]
      %v458 = vld [vmem:[%s1 + $0x54] sm:$0xf]
      %v459 = vld [vmem:[%s1 + $0x58] sm:$0xf]
      %v460 = vld [vmem:[%s1 + $0x5c] sm:$0xf]
      %v461 = vld [vmem:[%s1 + $0x60] sm:$0xf]
      %v462 = vld [vmem:[%s1 + $0x64] sm:$0xf]
      %v463 = vld [vmem:[%s1 + $0x68] sm:$0xf]
      %v464 = vld [vmem:[%s1 + $0x6c] sm:$0xf]
      %v465 = vld [vmem:[%s1 + $0x70] sm:$0xf]
      %v466 = vld [vmem:[%s1 + $0x74] sm:$0xf]
      %v467 = vld [vmem:[%s1 + $0x78] sm:$0xf]
      %v468 = vld [vmem:[%s1 + $0x7c] sm:$0xf]
      %v469 = vld [vmem:[%s1 + $0x80] sm:$0xf]
      %v470 = vld [vmem:[%s1 + $0x84] sm:$0xf]
      %v471 = vld [vmem:[%s1 + $0x88] sm:$0xf]
      %v472 = vld [vmem:[%s1 + $0x8c] sm:$0xf]
      %v473 = vld [vmem:[%s1 + $0x90] sm:$0xf]
      %v474 = vld [vmem:[%s1 + $0x94] sm:$0xf]
      %v475 = vld [vmem:[%s1 + $0x98] sm:$0xf]
      %v476 = vld [vmem:[%s1 + $0x9c] sm:$0xf]
      %v477 = vld [vmem:[%s1 + $0xa0] sm:$0xf]
      %v478 = vld [vmem:[%s1 + $0xa4] sm:$0xf]
      %v479 = vld [vmem:[%s1 + $0xa8] sm:$0xf]
      %v480 = vld [vmem:[%s1 + $0xac] sm:$0xf]
      %v481 = vld [vmem:[%s1 + $0xb0] sm:$0xf]
      %v482 = vld [vmem:[%s1 + $0xb4] sm:$0xf]
      %v483 = vld [vmem:[%s1 + $0xb8] sm:$0xf]
      %v484 = vld [vmem:[%s1 + $0xbc] sm:$0xf]
      %v485 = vld [vmem:[%s1 + $0xc0] sm:$0xf]
      %v486 = vld [vmem:[%s1 + $0xc4] sm:$0xf]
      %v487 = vld [vmem:[%s1 + $0xc8] sm:$0xf]
      %v488 = vld [vmem:[%s1 + $0xcc] sm:$0xf]
      %v489 = vld [vmem:[%s1 + $0xd0] sm:$0xf]
      %v490 = vld [vmem:[%s1 + $0xd4] sm:$0xf]
      %v491 = vld [vmem:[%s1 + $0xd8] sm:$0xf]
      %v492 = vld [vmem:[%s1 + $0xdc] sm:$0xf]
      %v493 = vld [vmem:[%s1 + $0xe0] sm:$0xf]
      %v494 = vld [vmem:[%s1 + $0xe4] sm:$0xf]
      %v495 = vld [vmem:[%s1 + $0xe8] sm:$0xf]
      %v496 = vld [vmem:[%s1 + $0xec] sm:$0xf]
      %v497 = vld [vmem:[%s1 + $0xf0] sm:$0xf]
      %v498 = vld [vmem:[%s1 + $0xf4] sm:$0xf]
      %v499 = vld [vmem:[%s1 + $0xf8] sm:$0xf]
      %v500 = vld [vmem:[%s1 + $0xfc] sm:$0xf]
      %v501 = vld [vmem:[%s2] sm:$0x1]
      %v503 = vlaneseq
      %v504 = vshrl.u32 %v503, 7
      %v505 = vsub.s32 0, %v504
      %v506 = vrot.slane %v501, %v505
      %v512 = vunpack.c.l.b16 %v433
      %v513 = vunpack.c.h.b16 %v433
      %v514 = vunpack.c.l.b16 %v434
      %v515 = vunpack.c.h.b16 %v434
      %v516 = vunpack.c.l.b16 %v435
      %v517 = vunpack.c.h.b16 %v435
      %v518 = vunpack.c.l.b16 %v436
      %v519 = vunpack.c.h.b16 %v436
      %v520 = vpack.c.b16 %v516, %v512
      %v521 = vpack.c.b16 %v517, %v513
      %v522 = vpack.c.b16 %v518, %v514
      %v523 = vpack.c.b16 %v519, %v515
      %v592 = vunpack.c.l.b16 %v437
      %v593 = vunpack.c.l.b16 %v438
      %v594 = vunpack.c.l.b16 %v439
      %v595 = vunpack.c.l.b16 %v440
      %v596 = vunpack.c.l.b16 %v441
      %v597 = vunpack.c.l.b16 %v442
      %v598 = vunpack.c.l.b16 %v443
      %v599 = vunpack.c.l.b16 %v444
      %v600 = vunpack.c.l.b16 %v445
      %v601 = vunpack.c.l.b16 %v446
      %v602 = vunpack.c.l.b16 %v447
      %v603 = vunpack.c.l.b16 %v448
      %v604 = vunpack.c.l.b16 %v449
      %v605 = vunpack.c.l.b16 %v450
      %v606 = vunpack.c.l.b16 %v451
      %v607 = vunpack.c.l.b16 %v452
      %v608 = vunpack.c.l.b16 %v453
      %v609 = vunpack.c.l.b16 %v454
      %v610 = vunpack.c.l.b16 %v455
      %v611 = vunpack.c.l.b16 %v456
      %v612 = vunpack.c.l.b16 %v457
      %v613 = vunpack.c.l.b16 %v458
      %v614 = vunpack.c.l.b16 %v459
      %v615 = vunpack.c.l.b16 %v460
      %v616 = vunpack.c.l.b16 %v461
      %v617 = vunpack.c.l.b16 %v462
      %v618 = vunpack.c.l.b16 %v463
      %v619 = vunpack.c.l.b16 %v464
      %v620 = vunpack.c.l.b16 %v465
      %v621 = vunpack.c.l.b16 %v466
      %v622 = vunpack.c.l.b16 %v467
      %v623 = vunpack.c.l.b16 %v468
      %v624 = vunpack.c.l.b16 %v469
      %v625 = vunpack.c.l.b16 %v470
      %v626 = vunpack.c.l.b16 %v471
      %v627 = vunpack.c.l.b16 %v472
      %v628 = vunpack.c.l.b16 %v473
      %v629 = vunpack.c.l.b16 %v474
      %v630 = vunpack.c.l.b16 %v475
      %v631 = vunpack.c.l.b16 %v476
      %v632 = vunpack.c.l.b16 %v477
      %v633 = vunpack.c.l.b16 %v478
      %v634 = vunpack.c.l.b16 %v479
      %v635 = vunpack.c.l.b16 %v480
      %v636 = vunpack.c.l.b16 %v481
      %v637 = vunpack.c.l.b16 %v482
      %v638 = vunpack.c.l.b16 %v483
      %v639 = vunpack.c.l.b16 %v484
      %v640 = vunpack.c.l.b16 %v485
      %v641 = vunpack.c.l.b16 %v486
      %v642 = vunpack.c.l.b16 %v487
      %v643 = vunpack.c.l.b16 %v488
      %v644 = vunpack.c.l.b16 %v489
      %v645 = vunpack.c.l.b16 %v490
      %v646 = vunpack.c.l.b16 %v491
      %v647 = vunpack.c.l.b16 %v492
      %v648 = vunpack.c.l.b16 %v493
      %v649 = vunpack.c.l.b16 %v494
      %v650 = vunpack.c.l.b16 %v495
      %v651 = vunpack.c.l.b16 %v496
      %v652 = vunpack.c.l.b16 %v497
      %v653 = vunpack.c.l.b16 %v498
      %v654 = vunpack.c.l.b16 %v499
      %v655 = vunpack.c.l.b16 %v500
      %v656 = vpack.c.b16 %v593, %v592
      %v657 = vpack.c.b16 %v595, %v594
      %v658 = vpack.c.b16 %v597, %v596
      %v659 = vpack.c.b16 %v599, %v598
      %v660 = vpack.c.b16 %v601, %v600
      %v661 = vpack.c.b16 %v603, %v602
      %v662 = vpack.c.b16 %v605, %v604
      %v663 = vpack.c.b16 %v607, %v606
      %v664 = vpack.c.b16 %v609, %v608
      %v665 = vpack.c.b16 %v611, %v610
      %v666 = vpack.c.b16 %v613, %v612
      %v667 = vpack.c.b16 %v615, %v614
      %v668 = vpack.c.b16 %v617, %v616
      %v669 = vpack.c.b16 %v619, %v618
      %v670 = vpack.c.b16 %v621, %v620
      %v671 = vpack.c.b16 %v623, %v622
      %v672 = vpack.c.b16 %v625, %v624
      %v673 = vpack.c.b16 %v627, %v626
      %v674 = vpack.c.b16 %v629, %v628
      %v675 = vpack.c.b16 %v631, %v630
      %v676 = vpack.c.b16 %v633, %v632
      %v677 = vpack.c.b16 %v635, %v634
      %v678 = vpack.c.b16 %v637, %v636
      %v679 = vpack.c.b16 %v639, %v638
      %v680 = vpack.c.b16 %v641, %v640
      %v681 = vpack.c.b16 %v643, %v642
      %v682 = vpack.c.b16 %v645, %v644
      %v683 = vpack.c.b16 %v647, %v646
      %v684 = vpack.c.b16 %v649, %v648
      %v685 = vpack.c.b16 %v651, %v650
      %v686 = vpack.c.b16 %v653, %v652
      %v687 = vpack.c.b16 %v655, %v654
      %720 = vmatprep.subr.bf16.mxu0 0
      %721 = vmatpush1.bf16.msra.mxu0 %v656
      %722 = vmatprep.subr.bf16.mxu0 0
      %723 = vmatpush1.bf16.msra.mxu0 %v657
      %724 = vmatprep.subr.bf16.mxu0 0
      %725 = vmatpush1.bf16.msra.mxu0 %v658
      %726 = vmatprep.subr.bf16.mxu0 0
      %727 = vmatpush1.bf16.msra.mxu0 %v659
      %728 = vmatprep.subr.bf16.mxu0 0
      %729 = vmatpush1.bf16.msra.mxu0 %v660
      %730 = vmatprep.subr.bf16.mxu0 0
      %731 = vmatpush1.bf16.msra.mxu0 %v661
      %732 = vmatprep.subr.bf16.mxu0 0
      %733 = vmatpush1.bf16.msra.mxu0 %v662
      %734 = vmatprep.subr.bf16.mxu0 0
      %735 = vmatpush1.bf16.msra.mxu0 %v663
      %736 = vmatprep.subr.bf16.mxu0 0
      %737 = vmatpush1.bf16.msra.mxu0 %v664
      %738 = vmatprep.subr.bf16.mxu0 0
      %739 = vmatpush1.bf16.msra.mxu0 %v665
      %740 = vmatprep.subr.bf16.mxu0 0
      %741 = vmatpush1.bf16.msra.mxu0 %v666
      %742 = vmatprep.subr.bf16.mxu0 0
      %743 = vmatpush1.bf16.msra.mxu0 %v667
      %744 = vmatprep.subr.bf16.mxu0 0
      %745 = vmatpush1.bf16.msra.mxu0 %v668
      %746 = vmatprep.subr.bf16.mxu0 0
      %747 = vmatpush1.bf16.msra.mxu0 %v669
      %748 = vmatprep.subr.bf16.mxu0 0
      %749 = vmatpush1.bf16.msra.mxu0 %v670
      %750 = vmatprep.subr.bf16.mxu0 0
      %751 = vmatpush1.bf16.msra.mxu0 %v671
      %752 = vmatprep.mubr.bf16.mxu0 %v521
      %753 = vmatmul.mubr.bf16.gmra.mrb[0].mxu0 %v520
      %v754 = vpop.f32.mrb[0].mxu0
      %v755 = vadd.f32 %v506, %v754
      %v756 = vpop.f32.mrb[0].mxu0
      %v757 = vpop.f32.mrb[0].mxu0
      %v758 = vadd.f32 %v506, %v757
      %v759 = vpop.f32.mrb[0].mxu0
      %760 = vdwg.mxu0
      %761 = vmatprep.subr.bf16.mxu0 0
      %762 = vmatpush1.bf16.msra.mxu0 %v672
      %763 = vmatprep.subr.bf16.mxu0 0
      %764 = vmatpush1.bf16.msra.mxu0 %v673
      %765 = vmatprep.subr.bf16.mxu0 0
      %766 = vmatpush1.bf16.msra.mxu0 %v674
      %767 = vmatprep.subr.bf16.mxu0 0
      %768 = vmatpush1.bf16.msra.mxu0 %v675
      %769 = vmatprep.subr.bf16.mxu0 0
      %770 = vmatpush1.bf16.msra.mxu0 %v676
      %771 = vmatprep.subr.bf16.mxu0 0
      %772 = vmatpush1.bf16.msra.mxu0 %v677
      %773 = vmatprep.subr.bf16.mxu0 0
      %774 = vmatpush1.bf16.msra.mxu0 %v678
      %775 = vmatprep.subr.bf16.mxu0 0
      %776 = vmatpush1.bf16.msra.mxu0 %v679
      %777 = vmatprep.subr.bf16.mxu0 0
      %778 = vmatpush1.bf16.msra.mxu0 %v680
      %779 = vmatprep.subr.bf16.mxu0 0
      %780 = vmatpush1.bf16.msra.mxu0 %v681
      %781 = vmatprep.subr.bf16.mxu0 0
      %782 = vmatpush1.bf16.msra.mxu0 %v682
      %783 = vmatprep.subr.bf16.mxu0 0
      %784 = vmatpush1.bf16.msra.mxu0 %v683
      %785 = vmatprep.subr.bf16.mxu0 0
      %786 = vmatpush1.bf16.msra.mxu0 %v684
      %787 = vmatprep.subr.bf16.mxu0 0
      %788 = vmatpush1.bf16.msra.mxu0 %v685
      %789 = vmatprep.subr.bf16.mxu0 0
      %790 = vmatpush1.bf16.msra.mxu0 %v686
      %791 = vmatprep.subr.bf16.mxu0 0
      %792 = vmatpush1.bf16.msra.mxu0 %v687
      %793 = vmatprep.mubr.bf16.mxu0 %v523
      %794 = vmatmul.mubr.bf16.gmra.mrb[0].mxu0 %v522
      %v795 = vpop.f32.mrb[0].mxu0
      %v796 = vadd.f32 %v755, %v795
      %v797 = vpop.f32.mrb[0].mxu0
      %v798 = vpop.f32.mrb[0].mxu0
      %v799 = vadd.f32 %v758, %v798
      %v800 = vpop.f32.mrb[0].mxu0
      %801 = vdwg.mxu0
      %vm802 = vcmp.gt.f32.partialorder %v796, 0.0
      %vm803 = vcmp.gt.f32.partialorder %v799, 0.0
      %v804 = vmul.f32 %v796, 0.2
      %v805 = vmul.f32 %v799, 0.2
      %v806 = vsel %vm802, %v796, %v804
      %v807 = vsel %vm803, %v799, %v805
      %v808 = vld [vmem:[#allocation2] sm:$0x1]
      %vm809 = vcmask 523264
      %v810 = vsel %vm809, %v806, -inf
      %v811 = vsel %vm809, %v807, -inf
      %v812 = vmax.f32 %v810, %v811
      %v813 = vrot.slane %v812, 4
      %v814 = vmax.f32 %v812, %v813
      %v815 = vrot.slane %v814, 2
      %v816 = vmax.f32 %v814, %v815
      %v817 = vrot.slane %v816, 1
      %v818 = vmax.f32 %v816, %v817
      %v819 = vmax.f32 %v808, %v818
      %vm820 = vcmask 516096
      %821 = vst.msk [vmem:[#allocation2] sm:$0x1] %vm820, %v819
      %v822 = vld [vmem:[#allocation3] sm:$0x1]
      %v823 = vsel %vm809, %v806, 0.0
      %v824 = vsel %vm809, %v807, 0.0
      %v825 = vadd.f32 %v823, %v824
      %v826 = vrot.slane %v825, 4
      %v827 = vadd.f32 %v825, %v826
      %v828 = vrot.slane %v827, 2
      %v829 = vadd.f32 %v827, %v828
      %v830 = vrot.slane %v829, 1
      %v831 = vadd.f32 %v829, %v830
      %v832 = vadd.f32 %v822, %v831
      %833 = vst.msk [vmem:[#allocation3] sm:$0x1] %vm820, %v832
      // Predicated region
      $region65: #{_lambda_.17} parent=59 // pred_check
        %p834 = pneg %p426
      $region66: #{_lambda_.17} parent=59 // pred_check_branch
        %836 = sbr.rel (%p834) target = $region68
      $region67: #{_lambda_.17} parent=59 // pred_region
        %v837 = vld [vmem:[#allocation2] sm:$0x1]
        %v838 = vld [vmem:[#allocation3] sm:$0x1]
        %v839 = vmul.f32 %v838, 0.0625
        %840 = vst.msk [vmem:[%s420] sm:$0x1] %vm820, %v837
        %v842 = vlaneseq
        %v843 = vshrl.u32 %v842, 7
        %v844 = vsub.s32 0, %v843
        %v845 = vrot.slane %v839, %v844
        %846 = vrot.lane.b32.xlu0 %v845, 64
        %v847 = vpop.permute.xlu0 %846
        %vm849 = vcmask 1040896
        %850 = vst.msk [vmem:[%s420] sm:$0x1] %vm849, %v847
        %v851 = vld [vmem:[%s3] sm:$0xff]
        %v852 = vld [vmem:[%s3 + $0x8] sm:$0xff]
        %v853 = vld [vmem:[%s3 + $0x10] sm:$0xff]
        %v854 = vld [vmem:[%s3 + $0x18] sm:$0xff]
        %v855 = vld [vmem:[%s3 + $0x20] sm:$0xff]
        %v856 = vld [vmem:[%s3 + $0x28] sm:$0xff]
        %v857 = vld [vmem:[%s3 + $0x30] sm:$0xff]
        %v858 = vld [vmem:[%s3 + $0x38] sm:$0xff]
        %v859 = vld [vmem:[%s4] sm:$0xff]
        %v860 = vld [vmem:[%s4 + $0x8] sm:$0xff]
        %v861 = vld [vmem:[%s4 + $0x10] sm:$0xff]
        %v862 = vld [vmem:[%s4 + $0x18] sm:$0xff]
        %v863 = vld [vmem:[%s4 + $0x20] sm:$0xff]
        %v864 = vld [vmem:[%s4 + $0x28] sm:$0xff]
        %v865 = vld [vmem:[%s4 + $0x30] sm:$0xff]
        %v866 = vld [vmem:[%s4 + $0x38] sm:$0xff]
        %v867 = vsel %vm809, %v839, 0
        %869 = vmatprep.subr.mxu0 0.0
        %870 = vmatpush1.msra.mxu0 %v859
        %871 = vmatprep.subr.mxu0 0.0
        %872 = vmatpush1.msra.mxu0 %v860
        %873 = vmatprep.subr.mxu0 0.0
        %874 = vmatpush1.msra.mxu0 %v861
        %875 = vmatprep.subr.mxu0 0.0
        %876 = vmatpush1.msra.mxu0 %v862
        %877 = vmatprep.subr.mxu0 0.0
        %878 = vmatpush1.msra.mxu0 %v863
        %879 = vmatprep.subr.mxu0 0.0
        %880 = vmatpush1.msra.mxu0 %v864
        %881 = vmatprep.subr.mxu0 0.0
        %882 = vmatpush1.msra.mxu0 %v865
        %883 = vmatprep.subr.mxu0 0.0
        %884 = vmatpush1.msra.mxu0 %v866
        %885 = vmatprep.subr.mxu0 0.0
        %886 = vmatpush1.msra.mxu0 0.0
        %887 = vmatprep.subr.mxu0 0.0
        %888 = vmatpush1.msra.mxu0 0.0
        %889 = vmatprep.subr.mxu0 0.0
        %890 = vmatpush1.msra.mxu0 0.0
        %891 = vmatprep.subr.mxu0 0.0
        %892 = vmatpush1.msra.mxu0 0.0
        %893 = vmatprep.subr.mxu0 0.0
        %894 = vmatpush1.msra.mxu0 0.0
        %895 = vmatprep.subr.mxu0 0.0
        %896 = vmatpush1.msra.mxu0 0.0
        %897 = vmatprep.subr.mxu0 0.0
        %898 = vmatpush1.msra.mxu0 0.0
        %899 = vmatprep.subr.mxu0 0.0
        %900 = vmatpush1.msra.mxu0 0.0
        %901 = vmatprep.subr.mxu0 0.0
        %902 = vmatpush1.msra.mxu0 0.0
        %903 = vmatprep.subr.mxu0 0.0
        %904 = vmatpush1.msra.mxu0 0.0
        %905 = vmatprep.subr.mxu0 0.0
        %906 = vmatpush1.msra.mxu0 0.0
        %907 = vmatprep.subr.mxu0 0.0
        %908 = vmatpush1.msra.mxu0 0.0
        %909 = vmatprep.subr.mxu0 0.0
        %910 = vmatpush1.msra.mxu0 0.0
        %911 = vmatprep.subr.mxu0 0.0
        %912 = vmatpush1.msra.mxu0 0.0
        %913 = vmatprep.subr.mxu0 0.0
        %914 = vmatpush1.msra.mxu0 0.0
        %915 = vmatprep.subr.mxu0 0.0
        %916 = vmatpush1.msra.mxu0 0.0
        %917 = vmatprep.subr.mxu0 0.0
        %918 = vmatpush1.msra.mxu0 0.0
        %919 = vmatprep.subr.mxu0 0.0
        %920 = vmatpush1.msra.mxu0 0.0
        %921 = vmatprep.subr.mxu0 0.0
        %922 = vmatpush1.msra.mxu0 0.0
        %923 = vmatprep.subr.mxu0 0.0
        %924 = vmatpush1.msra.mxu0 0.0
        %925 = vmatprep.subr.mxu0 0.0
        %926 = vmatpush1.msra.mxu0 0.0
        %927 = vmatprep.subr.mxu0 0.0
        %928 = vmatpush1.msra.mxu0 0.0
        %929 = vmatprep.subr.mxu0 0.0
        %930 = vmatpush1.msra.mxu0 0.0
        %931 = vmatprep.subr.mxu0 0.0
        %932 = vmatpush1.msra.mxu0 0.0
        %933 = vmatprep.mubr.f32.mxu0 0.0
        %934 = vmatmul.mubr.f32.gmra.mrb[0].mxu0 %v867
        %v935 = vpop.f32.mrb[0].mxu0
        %v936 = vadd.f32 0.0, %v935
        %v937 = vpop.f32.mrb[0].mxu0
        %938 = vdwg.mxu0
        %v940 = vsel %vm809, %v837, 0
        %942 = vmatprep.subr.mxu0 0.0
        %943 = vmatpush1.msra.mxu0 %v851
        %944 = vmatprep.subr.mxu0 0.0
        %945 = vmatpush1.msra.mxu0 %v852
        %946 = vmatprep.subr.mxu0 0.0
        %947 = vmatpush1.msra.mxu0 %v853
        %948 = vmatprep.subr.mxu0 0.0
        %949 = vmatpush1.msra.mxu0 %v854
        %950 = vmatprep.subr.mxu0 0.0
        %951 = vmatpush1.msra.mxu0 %v855
        %952 = vmatprep.subr.mxu0 0.0
        %953 = vmatpush1.msra.mxu0 %v856
        %954 = vmatprep.subr.mxu0 0.0
        %955 = vmatpush1.msra.mxu0 %v857
        %956 = vmatprep.subr.mxu0 0.0
        %957 = vmatpush1.msra.mxu0 %v858
        %958 = vmatprep.subr.mxu0 0.0
        %959 = vmatpush1.msra.mxu0 0.0
        %960 = vmatprep.subr.mxu0 0.0
        %961 = vmatpush1.msra.mxu0 0.0
        %962 = vmatprep.subr.mxu0 0.0
        %963 = vmatpush1.msra.mxu0 0.0
        %964 = vmatprep.subr.mxu0 0.0
        %965 = vmatpush1.msra.mxu0 0.0
        %966 = vmatprep.subr.mxu0 0.0
        %967 = vmatpush1.msra.mxu0 0.0
        %968 = vmatprep.subr.mxu0 0.0
        %969 = vmatpush1.msra.mxu0 0.0
        %970 = vmatprep.subr.mxu0 0.0
        %971 = vmatpush1.msra.mxu0 0.0
        %972 = vmatprep.subr.mxu0 0.0
        %973 = vmatpush1.msra.mxu0 0.0
        %974 = vmatprep.subr.mxu0 0.0
        %975 = vmatpush1.msra.mxu0 0.0
        %976 = vmatprep.subr.mxu0 0.0
        %977 = vmatpush1.msra.mxu0 0.0
        %978 = vmatprep.subr.mxu0 0.0
        %979 = vmatpush1.msra.mxu0 0.0
        %980 = vmatprep.subr.mxu0 0.0
        %981 = vmatpush1.msra.mxu0 0.0
        %982 = vmatprep.subr.mxu0 0.0
        %983 = vmatpush1.msra.mxu0 0.0
        %984 = vmatprep.subr.mxu0 0.0
        %985 = vmatpush1.msra.mxu0 0.0
        %986 = vmatprep.subr.mxu0 0.0
        %987 = vmatpush1.msra.mxu0 0.0
        %988 = vmatprep.subr.mxu0 0.0
        %989 = vmatpush1.msra.mxu0 0.0
        %990 = vmatprep.subr.mxu0 0.0
        %991 = vmatpush1.msra.mxu0 0.0
        %992 = vmatprep.subr.mxu0 0.0
        %993 = vmatpush1.msra.mxu0 0.0
        %994 = vmatprep.subr.mxu0 0.0
        %995 = vmatpush1.msra.mxu0 0.0
        %996 = vmatprep.subr.mxu0 0.0
        %997 = vmatpush1.msra.mxu0 0.0
        %998 = vmatprep.subr.mxu0 0.0
        %999 = vmatpush1.msra.mxu0 0.0
        %1000 = vmatprep.subr.mxu0 0.0
        %1001 = vmatpush1.msra.mxu0 0.0
        %1002 = vmatprep.subr.mxu0 0.0
        %1003 = vmatpush1.msra.mxu0 0.0
        %1004 = vmatprep.subr.mxu0 0.0
        %1005 = vmatpush1.msra.mxu0 0.0
        %1006 = vmatprep.mubr.f32.mxu0 0.0
        %1007 = vmatmul.mubr.f32.gmra.mrb[0].mxu0 %v940
        %v1008 = vpop.f32.mrb[0].mxu0
        %v1009 = vadd.f32 %v936, %v1008
        %v1010 = vpop.f32.mrb[0].mxu0
        %1011 = vdwg.mxu0
        %v1012 = vld [vmem:[%s5] sm:$0x1]
        %v1013 = vadd.f32 %v1009, %v1012
        %v1014 = vld [vmem:[%s6] sm:$0x1]
        %v1015 = vmul.f32 %v1013, %v1014
        %v1016 = vld [vmem:[%s7] sm:$0x1]
        %v1017 = vadd.f32 %v1015, %v1016
        %v1018 = vmax.f32 %v1017, 0.0
        %v1019 = vld [vmem:[%s8] sm:$0xff]
        %v1020 = vld [vmem:[%s8 + $0x8] sm:$0xff]
        %v1021 = vld [vmem:[%s8 + $0x10] sm:$0xff]
        %v1022 = vld [vmem:[%s8 + $0x18] sm:$0xff]
        %v1023 = vld [vmem:[%s8 + $0x20] sm:$0xff]
        %v1024 = vld [vmem:[%s8 + $0x28] sm:$0xff]
        %v1025 = vld [vmem:[%s8 + $0x30] sm:$0xff]
        %v1026 = vld [vmem:[%s8 + $0x38] sm:$0xff]
        %v1027 = vld [vmem:[%s8 + $0x40] sm:$0xff]
        %v1028 = vld [vmem:[%s8 + $0x48] sm:$0xff]
        %v1029 = vld [vmem:[%s8 + $0x50] sm:$0xff]
        %v1030 = vld [vmem:[%s8 + $0x58] sm:$0xff]
        %v1031 = vld [vmem:[%s8 + $0x60] sm:$0xff]
        %v1032 = vld [vmem:[%s8 + $0x68] sm:$0xff]
        %v1033 = vld [vmem:[%s8 + $0x70] sm:$0xff]
        %v1034 = vld [vmem:[%s8 + $0x78] sm:$0xff]
        %v1035 = vld [vmem:[%s8 + $0x80] sm:$0xff]
        %v1036 = vld [vmem:[%s8 + $0x88] sm:$0xff]
        %v1037 = vld [vmem:[%s8 + $0x90] sm:$0xff]
        %v1038 = vld [vmem:[%s8 + $0x98] sm:$0xff]
        %v1039 = vld [vmem:[%s8 + $0xa0] sm:$0xff]
        %v1040 = vld [vmem:[%s8 + $0xa8] sm:$0xff]
        %v1041 = vld [vmem:[%s8 + $0xb0] sm:$0xff]
        %v1042 = vld [vmem:[%s8 + $0xb8] sm:$0xff]
        %v1043 = vld [vmem:[%s8 + $0xc0] sm:$0xff]
        %v1044 = vld [vmem:[%s8 + $0xc8] sm:$0xff]
        %v1045 = vld [vmem:[%s8 + $0xd0] sm:$0xff]
        %v1046 = vld [vmem:[%s8 + $0xd8] sm:$0xff]
        %v1047 = vld [vmem:[%s8 + $0xe0] sm:$0xff]
        %v1048 = vld [vmem:[%s8 + $0xe8] sm:$0xff]
        %v1049 = vld [vmem:[%s8 + $0xf0] sm:$0xff]
        %v1050 = vld [vmem:[%s8 + $0xf8] sm:$0xff]
        %v1051 = vld [vmem:[%s9] sm:$0xf]
        %v1053 = vlaneseq
        %v1054 = vshrl.u32 %v1053, 7
        %v1055 = vsub.s32 0, %v1054
        %v1056 = vrot.slane %v1051, %v1055
        %v1057 = vlaneseq
        %v1058 = vshrl.u32 %v1057, 7
        %v1059 = vsub.s32 1, %v1058
        %v1060 = vrot.slane %v1051, %v1059
        %v1061 = vlaneseq
        %v1062 = vshrl.u32 %v1061, 7
        %v1063 = vsub.s32 2, %v1062
        %v1064 = vrot.slane %v1051, %v1063
        %v1065 = vlaneseq
        %v1066 = vshrl.u32 %v1065, 7
        %v1067 = vsub.s32 3, %v1066
        %v1068 = vrot.slane %v1051, %v1067
        %v1074 = vsel %vm809, %v1018, 0
        %1076 = vmatprep.subr.mxu0 %v1020
        %1077 = vmatpush1.msra.mxu0 %v1019
        %1078 = vmatprep.subr.mxu0 %v1024
        %1079 = vmatpush1.msra.mxu0 %v1023
        %1080 = vmatprep.subr.mxu0 %v1028
        %1081 = vmatpush1.msra.mxu0 %v1027
        %1082 = vmatprep.subr.mxu0 %v1032
        %1083 = vmatpush1.msra.mxu0 %v1031
        %1084 = vmatprep.subr.mxu0 %v1036
        %1085 = vmatpush1.msra.mxu0 %v1035
        %1086 = vmatprep.subr.mxu0 %v1040
        %1087 = vmatpush1.msra.mxu0 %v1039
        %1088 = vmatprep.subr.mxu0 %v1044
        %1089 = vmatpush1.msra.mxu0 %v1043
        %1090 = vmatprep.subr.mxu0 %v1048
        %1091 = vmatpush1.msra.mxu0 %v1047
        %1092 = vmatprep.subr.mxu0 0.0
        %1093 = vmatpush1.msra.mxu0 0.0
        %1094 = vmatprep.subr.mxu0 0.0
        %1095 = vmatpush1.msra.mxu0 0.0
        %1096 = vmatprep.subr.mxu0 0.0
        %1097 = vmatpush1.msra.mxu0 0.0
        %1098 = vmatprep.subr.mxu0 0.0
        %1099 = vmatpush1.msra.mxu0 0.0
        %1100 = vmatprep.subr.mxu0 0.0
        %1101 = vmatpush1.msra.mxu0 0.0
        %1102 = vmatprep.subr.mxu0 0.0
        %1103 = vmatpush1.msra.mxu0 0.0
        %1104 = vmatprep.subr.mxu0 0.0
        %1105 = vmatpush1.msra.mxu0 0.0
        %1106 = vmatprep.subr.mxu0 0.0
        %1107 = vmatpush1.msra.mxu0 0.0
        %1108 = vmatprep.subr.mxu0 0.0
        %1109 = vmatpush1.msra.mxu0 0.0
        %1110 = vmatprep.subr.mxu0 0.0
        %1111 = vmatpush1.msra.mxu0 0.0
        %1112 = vmatprep.subr.mxu0 0.0
        %1113 = vmatpush1.msra.mxu0 0.0
        %1114 = vmatprep.subr.mxu0 0.0
        %1115 = vmatpush1.msra.mxu0 0.0
        %1116 = vmatprep.subr.mxu0 0.0
        %1117 = vmatpush1.msra.mxu0 0.0
        %1118 = vmatprep.subr.mxu0 0.0
        %1119 = vmatpush1.msra.mxu0 0.0
        %1120 = vmatprep.subr.mxu0 0.0
        %1121 = vmatpush1.msra.mxu0 0.0
        %1122 = vmatprep.subr.mxu0 0.0
        %1123 = vmatpush1.msra.mxu0 0.0
        %1124 = vmatprep.subr.mxu0 0.0
        %1125 = vmatpush1.msra.mxu0 0.0
        %1126 = vmatprep.subr.mxu0 0.0
        %1127 = vmatpush1.msra.mxu0 0.0
        %1128 = vmatprep.subr.mxu0 0.0
        %1129 = vmatpush1.msra.mxu0 0.0
        %1130 = vmatprep.subr.mxu0 0.0
        %1131 = vmatpush1.msra.mxu0 0.0
        %1132 = vmatprep.subr.mxu0 0.0
        %1133 = vmatpush1.msra.mxu0 0.0
        %1134 = vmatprep.subr.mxu0 0.0
        %1135 = vmatpush1.msra.mxu0 0.0
        %1136 = vmatprep.subr.mxu0 0.0
        %1137 = vmatpush1.msra.mxu0 0.0
        %1138 = vmatprep.subr.mxu0 0.0
        %1139 = vmatpush1.msra.mxu0 0.0
        %1140 = vmatprep.mubr.f32.mxu0 0.0
        %1141 = vmatmul.mubr.f32.gmra.mrb[0].mxu0 %v1074
        %v1142 = vpop.f32.mrb[0].mxu0
        %v1143 = vadd.f32 %v1056, %v1142
        %v1144 = vpop.f32.mrb[0].mxu0
        %v1145 = vadd.f32 %v1060, %v1144
        %1146 = vdwg.mxu0
        %1147 = vmatprep.subr.mxu0 %v1022
        %1148 = vmatpush1.msra.mxu0 %v1021
        %1149 = vmatprep.subr.mxu0 %v1026
        %1150 = vmatpush1.msra.mxu0 %v1025
        %1151 = vmatprep.subr.mxu0 %v1030
        %1152 = vmatpush1.msra.mxu0 %v1029
        %1153 = vmatprep.subr.mxu0 %v1034
        %1154 = vmatpush1.msra.mxu0 %v1033
        %1155 = vmatprep.subr.mxu0 %v1038
        %1156 = vmatpush1.msra.mxu0 %v1037
        %1157 = vmatprep.subr.mxu0 %v1042
        %1158 = vmatpush1.msra.mxu0 %v1041
        %1159 = vmatprep.subr.mxu0 %v1046
        %1160 = vmatpush1.msra.mxu0 %v1045
        %1161 = vmatprep.subr.mxu0 %v1050
        %1162 = vmatpush1.msra.mxu0 %v1049
        %1163 = vmatprep.subr.mxu0 0.0
        %1164 = vmatpush1.msra.mxu0 0.0
        %1165 = vmatprep.subr.mxu0 0.0
        %1166 = vmatpush1.msra.mxu0 0.0
        %1167 = vmatprep.subr.mxu0 0.0
        %1168 = vmatpush1.msra.mxu0 0.0
        %1169 = vmatprep.subr.mxu0 0.0
        %1170 = vmatpush1.msra.mxu0 0.0
        %1171 = vmatprep.subr.mxu0 0.0
        %1172 = vmatpush1.msra.mxu0 0.0
        %1173 = vmatprep.subr.mxu0 0.0
        %1174 = vmatpush1.msra.mxu0 0.0
        %1175 = vmatprep.subr.mxu0 0.0
        %1176 = vmatpush1.msra.mxu0 0.0
        %1177 = vmatprep.subr.mxu0 0.0
        %1178 = vmatpush1.msra.mxu0 0.0
        %1179 = vmatprep.subr.mxu0 0.0
        %1180 = vmatpush1.msra.mxu0 0.0
        %1181 = vmatprep.subr.mxu0 0.0
        %1182 = vmatpush1.msra.mxu0 0.0
        %1183 = vmatprep.subr.mxu0 0.0
        %1184 = vmatpush1.msra.mxu0 0.0
        %1185 = vmatprep.subr.mxu0 0.0
        %1186 = vmatpush1.msra.mxu0 0.0
        %1187 = vmatprep.subr.mxu0 0.0
        %1188 = vmatpush1.msra.mxu0 0.0
        %1189 = vmatprep.subr.mxu0 0.0
        %1190 = vmatpush1.msra.mxu0 0.0
        %1191 = vmatprep.subr.mxu0 0.0
        %1192 = vmatpush1.msra.mxu0 0.0
        %1193 = vmatprep.subr.mxu0 0.0
        %1194 = vmatpush1.msra.mxu0 0.0
        %1195 = vmatprep.subr.mxu0 0.0
        %1196 = vmatpush1.msra.mxu0 0.0
        %1197 = vmatprep.subr.mxu0 0.0
        %1198 = vmatpush1.msra.mxu0 0.0
        %1199 = vmatprep.subr.mxu0 0.0
        %1200 = vmatpush1.msra.mxu0 0.0
        %1201 = vmatprep.subr.mxu0 0.0
        %1202 = vmatpush1.msra.mxu0 0.0
        %1203 = vmatprep.subr.mxu0 0.0
        %1204 = vmatpush1.msra.mxu0 0.0
        %1205 = vmatprep.subr.mxu0 0.0
        %1206 = vmatpush1.msra.mxu0 0.0
        %1207 = vmatprep.subr.mxu0 0.0
        %1208 = vmatpush1.msra.mxu0 0.0
        %1209 = vmatprep.subr.mxu0 0.0
        %1210 = vmatpush1.msra.mxu0 0.0
        %1211 = vmatprep.mubr.f32.mxu0 0.0
        %1212 = vmatmul.mubr.f32.gmra.mrb[0].mxu0 %v1074
        %v1213 = vpop.f32.mrb[0].mxu0
        %v1214 = vadd.f32 %v1064, %v1213
        %v1215 = vpop.f32.mrb[0].mxu0
        %v1216 = vadd.f32 %v1068, %v1215
        %1217 = vdwg.mxu0
        %v1222 = vcombine.low %v1143, %v1145
        %v1223 = vcombine.low %v1214, %v1216
        %v1225 = vunpack.c.l.s4 1966171168
        %v1226 = vunpack.c.0.s8 %v1225
        %v1227 = vlaneseq
        %v1228 = vshrl.u32 %v1227, 7
        %v1229 = vsub.s32 %v1226, %v1228
        %v1230 = vrot.slane %v1222, %v1229
        %v1232 = vunpack.c.l.s4 1966171168
        %v1233 = vunpack.c.0.s8 %v1232
        %v1234 = vlaneseq
        %v1235 = vshrl.u32 %v1234, 7
        %v1236 = vsub.s32 %v1233, %v1235
        %v1237 = vrot.slane %v1223, %v1236
        %v1238 = vcombine.low %v1230, %v1237
        %v1240 = vunpack.c.l.s4 1966171168
        %v1241 = vunpack.c.0.s8 %v1240
        %v1242 = vlaneseq
        %v1243 = vshrl.u32 %v1242, 7
        %v1244 = vsub.s32 %v1241, %v1243
        %v1245 = vrot.slane %v1238, %v1244
        %v1247 = vlaneseq
        %vm1248 = vcmp.ge.s32.totalorder %v1247, 0
        %vm1249 = vcmp.lt.s32.totalorder %v1247, 512
        %vm1250 = vmand %vm1248, %vm1249
        %1251 = vst.msk [vmem:[%s424] sm:$0xf] %vm1250, %v1245
      $region68: #{_lambda_.17} parent=59 // pred_fallthru
        _
      %p1252 = scmp.lt.s32.totalorder %s27, 1
      %s1253 = scalar_select %p1252, %s27, 1
      %s1254 = scalar_lea.vmem %s10, %s1253
      %p1255 = scmp.lt.s32.totalorder %s27, 1
      %s1256 = scalar_select %p1255, %s27, 1
      %s1257 = smul.addr %s1256, 4
      %s1258 = scalar_lea.vmem %s11, %s1257
      // Predicated region
      $region69: #{_lambda_.17} parent=59 // pred_check
        %p1259 = pneg %p270
      $region70: #{_lambda_.17} parent=59 // pred_check_branch
        %1261 = sbr.rel (%p1259) target = $region72
      $region71: #{_lambda_.17} parent=59 // pred_region
        _
      $region72: #{_lambda_.17} parent=59 // pred_fallthru
        _
      // Predicated region
      $region73: #{_lambda_.17} parent=59 // pred_check
        %p1262 = pneg %p296
      $region74: #{_lambda_.17} parent=59 // pred_check_branch
        %1264 = sbr.rel (%p1262) target = $region76
      $region75: #{_lambda_.17} parent=59 // pred_region
        _
      $region76: #{_lambda_.17} parent=59 // pred_fallthru
        _
    $region60: #{_lambda_.17} parent=5 // pred_fallthru
      _
    %p1265 = scmp.le.s32.totalorder 2, %s18
    // Predicated region
    $region77: #{_lambda_.17} parent=5 // pred_check
      %p1266 = pneg %p1265
    $region78: #{_lambda_.17} parent=5 // pred_check_branch
      %1268 = sbr.rel (%p1266) target = $region80
    $region79: #{_lambda_.17} parent=5 // pred_region
      %s1269 = ssub.s32 %s18, 2
      // Predicated region
      $region81: #{_lambda_.17} parent=79 // pred_check
        %p1270 = pneg %p276
      $region82: #{_lambda_.17} parent=79 // pred_check_branch
        %1272 = sbr.rel (%p1270) target = $region84
      $region83: #{_lambda_.17} parent=79 // pred_region
        %p1273 = scmp.lt.s32.totalorder %s29, 1
        %s1274 = scalar_select %p1273, %s29, 1
        %s1275 = scalar_lea.vmem %s10, %s1274
      $region84: #{_lambda_.17} parent=79 // pred_fallthru
        _
      // Predicated region
      $region85: #{_lambda_.17} parent=79 // pred_check
        %p1276 = pneg %p302
      $region86: #{_lambda_.17} parent=79 // pred_check_branch
        %1278 = sbr.rel (%p1276) target = $region88
      $region87: #{_lambda_.17} parent=79 // pred_region
        %p1279 = scmp.lt.s32.totalorder %s29, 1
        %s1280 = scalar_select %p1279, %s29, 1
        %s1281 = smul.addr %s1280, 4
        %s1282 = scalar_lea.vmem %s11, %s1281
      $region88: #{_lambda_.17} parent=79 // pred_fallthru
        _
    $region80: #{_lambda_.17} parent=5 // pred_fallthru
      _
  $region6: #{_lambda_.17} parent=0 // loop_footer
    %s22 = sadd.s32 1, %s18
  $region7: #{_lambda_.17} parent=0 // loop_footer_branch
    %17 = sbr.rel target = $region3
  $region8: #{_lambda_.17} parent=0 // loop_exit
    _

</llo_original>
